<compile_context>
chip_gen: v7x
topology: tpu7x:2x2x1
jax: 0.10.0
libtpu: 0.0.40
codegen_flags: <defaults>
</compile_context>

<pallas_src>
import functools

import jax
import jax.numpy as jnp
from jax.experimental import pallas as pl
from jax.experimental.pallas import tpu as pltpu

C_PAD = 128  # classifier lane padding (num_classes = 8 -> 128 lanes)


# ----------------------------------------------------------------------------
# Pallas kernel: TB sequences -> lm_head -> L x GCN -> concat cls -> CE
# ----------------------------------------------------------------------------
def lm_gcn_kernel(h_ref, adj_ref, lmW_ref, lmb_ref, gcnW_ref, gcnb_ref,
                  clsW_ref, clsb_ref, labels_ref, att_ref,
                  logits_ref, losssum_ref, count_ref, *, num_gcn_layers):
    h = h_ref[...]                                   # (M, 1024) bf16, M = TB*S
    adj = adj_ref[...]                               # (M, M)    bf16 block-diag
    m = h.shape[0]
    c_pad = clsb_ref.shape[-1]

    # ---- lm_head: Linear(1024 -> H); f32 accumulation, bf16 copy kept live --
    lm_f32 = jnp.dot(h, lmW_ref[...],
                     preferred_element_type=jnp.float32) + lmb_ref[...]
    lm_out = lm_f32.astype(jnp.bfloat16)             # (M, H); f32 copy is dead
    # dropout(0.1) == identity at inference

    # ---- GCN stack: out = relu(A_hat @ (out @ W_l) + b_l) -------------------
    out = lm_out
    for l in range(num_gcn_layers):                  # static unroll
        xw = jnp.dot(out, gcnW_ref[l],
                     preferred_element_type=jnp.float32)            # (M, H) f32
        ax = jnp.dot(adj, xw.astype(jnp.bfloat16),
                     preferred_element_type=jnp.float32)            # (M, H) f32
        out = jnp.maximum(ax + gcnb_ref[l], 0.0).astype(jnp.bfloat16)
        # dropout(0.1) == identity at inference

    # ---- classifier: concat([lm_out, out]) @ W_cls, single K=256 MXU dot ----
    cat = jnp.concatenate([lm_out, out], axis=-1)                   # (M, 2H) bf16
    logits = jnp.dot(cat, clsW_ref[...],
                     preferred_element_type=jnp.float32) + clsb_ref[...]
    # clsb carries -1e9 on padded class lanes -> they never win the softmax max
    logits_ref[...] = logits.astype(jnp.bfloat16)    # lane-dense bf16 writeback

    # ---- masked token CE (ignore_index = -100) ------------------------------
    lab = labels_ref[...]                            # (M, 1) int32 sublane-major
    msk = att_ref[...]                               # (M, 1) int32
    active = jnp.where(msk == 1, lab, -100)          # torch.where(mask==1, ...)
    valid = (active != -100).astype(jnp.float32)     # (M, 1)

    # NOTE: out-of-range labels other than -100 silently contribute lse only
    # (PyTorch's CrossEntropyLoss would raise).
    cls_ids = jax.lax.broadcasted_iota(jnp.int32, (m, c_pad), 1)
    onehot = (cls_ids == active).astype(jnp.float32)                # (M, C_PAD)

    mx = jnp.max(logits, axis=-1, keepdims=True)
    lse = mx + jnp.log(jnp.sum(jnp.exp(logits - mx), axis=-1, keepdims=True))
    picked = jnp.sum(onehot * logits, axis=-1, keepdims=True)
    per_tok = (lse - picked) * valid                                # (M, 1)

    # Per-grid-step partial sums (keeps the batch grid axis fully "parallel").
    losssum_ref[...] = jnp.zeros((1, 1, c_pad), jnp.float32) + jnp.sum(per_tok)
    count_ref[...] = jnp.zeros((1, 1, c_pad), jnp.float32) + jnp.sum(valid)


# ----------------------------------------------------------------------------
# Wrapper helpers
# ----------------------------------------------------------------------------
def _pick_seqs_per_block(batch, seq, target_rows=256):
    """Sequences per grid step: fill the MXU M dimension (>=128 rows; 256 on
    v6e/v7x) while keeping the grid length >= 2 so both v7x TCs get work."""
    if batch < 2:
        return 1
    tb = max(1, min(batch // 2, max(1, target_rows // seq)))
    while batch % tb:
        tb -= 1
    return tb


def _block_diag_adj(adj, tb):
    """[B, S, S] per-sequence adjacency -> row-stacked block-diagonal
    [(B//tb)*tb*S, tb*S]: one (tb*S, tb*S) block-diagonal matrix per grid
    step (the chain graphs never cross sequences)."""
    b, s, _ = adj.shape
    nb = b // tb
    blocks = adj.reshape(nb, tb, s, s)
    eye_tb = jnp.eye(tb, dtype=adj.dtype)
    bd = jnp.einsum('gtij,tu->gtiuj', blocks, eye_tb)
    return bd.reshape(nb * tb * s, tb * s)


def _cost_estimate(n_rows, m_rows, d_lm, hidden, layers):
    flops = (2 * n_rows * d_lm * hidden
             + layers * (2 * n_rows * hidden * hidden + 2 * n_rows * m_rows * hidden)
             + 2 * n_rows * (2 * hidden) * C_PAD)
    transcendentals = n_rows * C_PAD + n_rows
    bytes_accessed = (n_rows * d_lm * 2 + n_rows * m_rows * 2           # h, adj
                      + d_lm * hidden * 2 + layers * hidden * hidden * 2
                      + 2 * hidden * C_PAD * 2                          # bf16 weights
                      + (hidden + layers * hidden + C_PAD) * 4          # f32 biases
                      + 2 * n_rows * 4                                  # labels + mask
                      + n_rows * C_PAD * 2                              # bf16 logits
                      + 2 * (n_rows // m_rows) * C_PAD * 4)             # loss partials
    return pl.CostEstimate(flops=flops, transcendentals=transcendentals,
                           bytes_accessed=bytes_accessed)


def lm_freeze_concat_forward(last_hidden_state, adj, params, labels,
                             attention_mask, *, num_gcn_layers, hidden_dim,
                             num_classes, seqs_per_block=None):
    B, S, D = last_hidden_state.shape
    H, L = hidden_dim, num_gcn_layers
    TB = seqs_per_block or _pick_seqs_per_block(B, S)
    assert B % TB == 0, "batch must be divisible by seqs_per_block"
    NB, M = B // TB, TB * S

    # bf16 MXU operands (accumulation stays f32 inside the kernel).
    h2 = last_hidden_state.reshape(B * S, D).astype(jnp.bfloat16)
    adj_bd = _block_diag_adj(adj, TB).astype(jnp.bfloat16)              # (B*S, M)
    lm_W = params['lm_W'].astype(jnp.bfloat16)
    gcn_W = params['gcn_W'].astype(jnp.bfloat16)

    # Lane-dense classifier head: pad num_classes -> 128 lanes and bake the
    # padded-class mask into the bias (-1e9) so the kernel needs no select.
    cls_W_pad = (jnp.zeros((2 * H, C_PAD), jnp.float32)
                 .at[:, :num_classes].set(params['cls_W'])).astype(jnp.bfloat16)
    cls_b_pad = (jnp.full((1, C_PAD), -1e9, jnp.float32)
                 .at[:, :num_classes].set(params['cls_b']))

    # Sublane-major labels / mask: zero-cost wrapper-side layout plumbing.
    labels2 = labels.reshape(B * S, 1).astype(jnp.int32)
    att2 = attention_mask.reshape(B * S, 1).astype(jnp.int32)

    kernel = functools.partial(lm_gcn_kernel, num_gcn_layers=L)

    grid_spec = pltpu.PrefetchScalarGridSpec(
        num_scalar_prefetch=0,
        grid=(NB,),
        in_specs=[
            pl.BlockSpec((M, D), lambda g: (g, 0)),            # h (TB sequences)
            pl.BlockSpec((M, M), lambda g: (g, 0)),            # block-diag A_hat
            # Weights: constant index_map -> resident across the grid.  For much
            # larger TB*S on v7x, add pipeline_mode=pl.Buffered(1) here to drop
            # their second buffer; ample VMEM headroom at these sizes.
            pl.BlockSpec((D, H), lambda g: (0, 0)),            # lm_W
            pl.BlockSpec((1, H), lambda g: (0, 0)),            # lm_b
            pl.BlockSpec((L, H, H), lambda g: (0, 0, 0)),      # gcn_W
            pl.BlockSpec((L, 1, H), lambda g: (0, 0, 0)),      # gcn_b
            pl.BlockSpec((2 * H, C_PAD), lambda g: (0, 0)),    # cls_W (padded)
            pl.BlockSpec((1, C_PAD), lambda g: (0, 0)),        # cls_b (padded+mask)
            pl.BlockSpec((M, 1), lambda g: (g, 0)),            # labels
            pl.BlockSpec((M, 1), lambda g: (g, 0)),            # attention_mask
        ],
        out_specs=(
            pl.BlockSpec((M, C_PAD), lambda g: (g, 0)),        # bf16 logits slab
            pl.BlockSpec((1, 1, C_PAD), lambda g: (g, 0, 0)),  # loss partial sum
            pl.BlockSpec((1, 1, C_PAD), lambda g: (g, 0, 0)),  # valid-token count
        ),
    )

    logits_pad, loss_sums, valid_counts = pl.pallas_call(
        kernel,
        out_shape=(jax.ShapeDtypeStruct((B * S, C_PAD), jnp.bfloat16),
                   jax.ShapeDtypeStruct((NB, 1, C_PAD), jnp.float32),
                   jax.ShapeDtypeStruct((NB, 1, C_PAD), jnp.float32)),
        grid_spec=grid_spec,
        compiler_params=pltpu.CompilerParams(
            dimension_semantics=("parallel",),                 # megacore on v7x
            vmem_limit_bytes=32 * 1024 * 1024),
        cost_estimate=_cost_estimate(B * S, M, D, H, L),
    )(h2, adj_bd, lm_W, params['lm_b'], gcn_W, params['gcn_b'],
      cls_W_pad, cls_b_pad, labels2, att2)

    logits = logits_pad[:, :num_classes].astype(jnp.float32)           # (B*S, C)
    total_valid = jnp.sum(valid_counts[:, 0, 0])
    loss = jnp.sum(loss_sums[:, 0, 0]) / jnp.maximum(total_valid, 1.0)
    return logits, loss


# ----------------------------------------------------------------------------
# JAX glue: PyG-style symmetric GCN norm as per-sequence [B, S, S] adjacency
# ----------------------------------------------------------------------------
def gcn_norm_block_adj(edge_index, batch, seq):
    # TODO(synk): assumes no cross-sequence edges (true for the per-sequence
    #             chain graphs this model builds); a general graph would need
    #             the dense [N, N] adjacency path.
    src, dst = edge_index[0], edge_index[1]
    b = dst // seq
    a = jnp.zeros((batch, seq, seq), jnp.float32)
    a = a.at[b, dst % seq, src % seq].add(1.0)            # A[target, source]
    a = a + jnp.eye(seq, dtype=jnp.float32)[None]         # add self-loops
    deg = jnp.sum(a, axis=-1)
    dinv = jnp.where(deg > 0, 1.0 / jnp.sqrt(deg), 0.0)
    return dinv[:, :, None] * a * dinv[:, None, :]


# ----------------------------------------------------------------------------
# Pure-JAX f32 reference (for correctness check)
# ----------------------------------------------------------------------------
def reference_forward(h, adj, params, labels, att, num_gcn_layers, num_classes):
    lm_out = h @ params['lm_W'] + params['lm_b']                      # [B,S,H]
    out = lm_out
    for l in range(num_gcn_layers):
        xw = out @ params['gcn_W'][l]
        out = jnp.einsum('bij,bjh->bih', adj, xw) + params['gcn_b'][l]
        out = jnp.maximum(out, 0.0)
    logits = jnp.concatenate([lm_out, out], -1) @ params['cls_W'] + params['cls_b']
    logits = logits.reshape(-1, num_classes)
    lab = labels.reshape(-1)
    msk = att.reshape(-1)
    active = jnp.where(msk == 1, lab, -100)
    valid = (active != -100).astype(jnp.float32)
    lse = jax.scipy.special.logsumexp(logits, axis=-1)
    onehot = jax.nn.one_hot(jnp.clip(active, 0, num_classes - 1), num_classes)
    picked = jnp.sum(onehot * logits, axis=-1)
    loss = jnp.sum((lse - picked) * valid) / jnp.sum(valid)
    return logits, loss


if __name__ == "__main__":
    B, S = 8, 32               # batch x seq (TB=4 -> M=128 MXU rows, grid=2)
    D_LM = 1024                # DistilProtBert hidden size
    HID = 128                  # hidden_dim
    C = 8                      # num_classes (8 secondary-structure labels)
    L = 2                      # num_gcn_layers
    N = B * S

    key = jax.random.PRNGKey(0)
    k = jax.random.split(key, 8)

    # Synthetic frozen-LM output (stands in for language_model(...).last_hidden_state)
    last_hidden = jax.random.normal(k[0], (B, S, D_LM), jnp.float32)

    # Chain graph per sequence (bidirectional), no cross-sequence edges.
    edges = []
    for b in range(B):
        base = b * S
        for i in range(S - 1):
            edges.append((base + i, base + i + 1))
            edges.append((base + i + 1, base + i))
    edge_index = jnp.asarray(edges, dtype=jnp.int32).T          # [2, E]
    adj = gcn_norm_block_adj(edge_index, B, S)                  # [B, S, S]

    labels = jax.random.randint(k[1], (B, S), 0, C, jnp.int32)
    attention_mask = jnp.ones((B, S), jnp.int32).at[:, S - 4:].set(0)  # pad tail

    # Deterministic parameter init (xavier_uniform / glorot, zero biases).
    def xavier(kk, shape):
        bound = (6.0 / (shape[0] + shape[1])) ** 0.5
        return jax.random.uniform(kk, shape, jnp.float32, -bound, bound)

    gcn_keys = jax.random.split(k[3], L)
    params = dict(
        lm_W=xavier(k[2], (D_LM, HID)),                 # stored [in, out]
        lm_b=jnp.zeros((1, HID), jnp.float32),
        gcn_W=jnp.stack([xavier(kk, (HID, HID)) for kk in gcn_keys]),
        gcn_b=jnp.zeros((L, 1, HID), jnp.float32),
        cls_W=xavier(k[4], (2 * HID, C)),
        cls_b=jax.random.uniform(k[5], (1, C), jnp.float32, -0.05, 0.05),
    )

    logits, loss = lm_freeze_concat_forward(
        last_hidden, adj, params, labels, attention_mask,
        num_gcn_layers=L, hidden_dim=HID, num_classes=C)
    jax.block_until_ready((logits, loss))

    ref_logits, ref_loss = reference_forward(
        last_hidden, adj, params, labels, attention_mask, L, C)

    assert logits.shape == (N, C)
    assert jnp.allclose(logits, ref_logits, rtol=5e-2, atol=5e-2), "logits mismatch"
    assert jnp.allclose(loss, ref_loss, rtol=5e-2, atol=5e-2), "loss mismatch"
    print("KERNEL_OK")
</pallas_src>

<mosaic_0001>
module attributes {stable_mosaic.version = 11 : i64} {
  func.func @lm_gcn_kernel(%arg0: i32, %arg1: memref<128x1024xbf16, #tpu.memory_space<vmem>>, %arg2: memref<128x128xbf16, #tpu.memory_space<vmem>>, %arg3: memref<1024x128xbf16, #tpu.memory_space<vmem>>, %arg4: memref<1x128xf32, #tpu.memory_space<vmem>>, %arg5: memref<2x128x128xbf16, #tpu.memory_space<vmem>>, %arg6: memref<2x1x128xf32, #tpu.memory_space<vmem>>, %arg7: memref<256x128xbf16, #tpu.memory_space<vmem>>, %arg8: memref<1x128xf32, #tpu.memory_space<vmem>>, %arg9: memref<128x1xi32, #tpu.memory_space<vmem>>, %arg10: memref<128x1xi32, #tpu.memory_space<vmem>>, %arg11: memref<128x128xbf16, #tpu.memory_space<vmem>>, %arg12: memref<1x1x128xf32, #tpu.memory_space<vmem>>, %arg13: memref<1x1x128xf32, #tpu.memory_space<vmem>>) attributes {dimension_semantics = [#tpu.dimension_semantics<parallel>], iteration_bounds = array<i64: 2>, scalar_prefetch = 0 : i64, scratch_operands = 0 : i64, tpu.core_type = #tpu.core_type<tc>, window_params = [{transform_indices = @transform_0, window_bounds = array<i64: 128, 1024>}, {transform_indices = @transform_1, window_bounds = array<i64: 128, 128>}, {pipeline_mode = #tpu.pipeline_mode<synchronous>, transform_indices = @transform_2, window_bounds = array<i64: 1024, 128>}, {pipeline_mode = #tpu.pipeline_mode<synchronous>, transform_indices = @transform_3, window_bounds = array<i64: 1, 128>}, {pipeline_mode = #tpu.pipeline_mode<synchronous>, transform_indices = @transform_4, window_bounds = array<i64: 2, 128, 128>}, {pipeline_mode = #tpu.pipeline_mode<synchronous>, transform_indices = @transform_5, window_bounds = array<i64: 2, 1, 128>}, {pipeline_mode = #tpu.pipeline_mode<synchronous>, transform_indices = @transform_6, window_bounds = array<i64: 256, 128>}, {pipeline_mode = #tpu.pipeline_mode<synchronous>, transform_indices = @transform_7, window_bounds = array<i64: 1, 128>}, {transform_indices = @transform_8, window_bounds = array<i64: 128, 1>}, {transform_indices = @transform_9, window_bounds = array<i64: 128, 1>}, {transform_indices = @transform_10, window_bounds = array<i64: 128, 128>}, {transform_indices = @transform_11, window_bounds = array<i64: 1, 1, 128>}, {transform_indices = @transform_12, window_bounds = array<i64: 1, 1, 128>}]} {
    %c0 = arith.constant 0 : index
    %c0_0 = arith.constant 0 : index
    %0 = vector.load %arg1[%c0, %c0_0] : memref<128x1024xbf16, #tpu.memory_space<vmem>>, vector<128x1024xbf16>
    %c0_1 = arith.constant 0 : index
    %c0_2 = arith.constant 0 : index
    %1 = vector.load %arg2[%c0_1, %c0_2] : memref<128x128xbf16, #tpu.memory_space<vmem>>, vector<128x128xbf16>
    %c0_3 = arith.constant 0 : index
    %c0_4 = arith.constant 0 : index
    %2 = vector.load %arg3[%c0_3, %c0_4] : memref<1024x128xbf16, #tpu.memory_space<vmem>>, vector<1024x128xbf16>
    %cst = arith.constant dense<0.000000e+00> : vector<128x128xf32>
    %3 = tpu.matmul %0, %2, %cst {dimension_numbers = #tpu.dot_dimension_numbers<[1], [0], [0], [1], [0, 0, 1, 1], [], []>} : vector<128x1024xbf16>, vector<1024x128xbf16>, vector<128x128xf32> -> vector<128x128xf32>
    %c0_5 = arith.constant 0 : index
    %c0_6 = arith.constant 0 : index
    %4 = vector.load %arg4[%c0_5, %c0_6] : memref<1x128xf32, #tpu.memory_space<vmem>>, vector<1x128xf32>
    %5 = vector.broadcast %4 : vector<1x128xf32> to vector<128x128xf32>
    %6 = arith.addf %3, %5 : vector<128x128xf32>
    %7 = arith.truncf %6 : vector<128x128xf32> to vector<128x128xbf16>
    %c0_7 = arith.constant 0 : index
    %c0_8 = arith.constant 0 : index
    %c0_9 = arith.constant 0 : index
    %8 = vector.load %arg5[%c0_7, %c0_8, %c0_9] : memref<2x128x128xbf16, #tpu.memory_space<vmem>>, vector<1x128x128xbf16>
    %9 = vector.shape_cast %8 : vector<1x128x128xbf16> to vector<128x128xbf16>
    %cst_10 = arith.constant dense<0.000000e+00> : vector<128x128xf32>
    %10 = tpu.matmul %7, %9, %cst_10 {dimension_numbers = #tpu.dot_dimension_numbers<[1], [0], [0], [1], [0, 0, 1, 1], [], []>} : vector<128x128xbf16>, vector<128x128xbf16>, vector<128x128xf32> -> vector<128x128xf32>
    %11 = arith.truncf %10 : vector<128x128xf32> to vector<128x128xbf16>
    %cst_11 = arith.constant dense<0.000000e+00> : vector<128x128xf32>
    %12 = tpu.matmul %1, %11, %cst_11 {dimension_numbers = #tpu.dot_dimension_numbers<[1], [0], [0], [1], [0, 0, 1, 1], [], []>} : vector<128x128xbf16>, vector<128x128xbf16>, vector<128x128xf32> -> vector<128x128xf32>
    %c0_12 = arith.constant 0 : index
    %c0_13 = arith.constant 0 : index
    %c0_14 = arith.constant 0 : index
    %13 = vector.load %arg6[%c0_12, %c0_13, %c0_14] : memref<2x1x128xf32, #tpu.memory_space<vmem>>, vector<1x1x128xf32>
    %14 = vector.shape_cast %13 : vector<1x1x128xf32> to vector<1x128xf32>
    %15 = vector.broadcast %14 : vector<1x128xf32> to vector<128x128xf32>
    %16 = arith.addf %12, %15 : vector<128x128xf32>
    %cst_15 = arith.constant 0.000000e+00 : f32
    %17 = vector.broadcast %cst_15 : f32 to vector<128x128xf32>
    %18 = arith.maximumf %16, %17 : vector<128x128xf32>
    %19 = arith.truncf %18 : vector<128x128xf32> to vector<128x128xbf16>
    %c1 = arith.constant 1 : index
    %c0_16 = arith.constant 0 : index
    %c0_17 = arith.constant 0 : index
    %20 = vector.load %arg5[%c1, %c0_16, %c0_17] : memref<2x128x128xbf16, #tpu.memory_space<vmem>>, vector<1x128x128xbf16>
    %21 = vector.shape_cast %20 : vector<1x128x128xbf16> to vector<128x128xbf16>
    %cst_18 = arith.constant dense<0.000000e+00> : vector<128x128xf32>
    %22 = tpu.matmul %19, %21, %cst_18 {dimension_numbers = #tpu.dot_dimension_numbers<[1], [0], [0], [1], [0, 0, 1, 1], [], []>} : vector<128x128xbf16>, vector<128x128xbf16>, vector<128x128xf32> -> vector<128x128xf32>
    %23 = arith.truncf %22 : vector<128x128xf32> to vector<128x128xbf16>
    %cst_19 = arith.constant dense<0.000000e+00> : vector<128x128xf32>
    %24 = tpu.matmul %1, %23, %cst_19 {dimension_numbers = #tpu.dot_dimension_numbers<[1], [0], [0], [1], [0, 0, 1, 1], [], []>} : vector<128x128xbf16>, vector<128x128xbf16>, vector<128x128xf32> -> vector<128x128xf32>
    %c1_20 = arith.constant 1 : index
    %c0_21 = arith.constant 0 : index
    %c0_22 = arith.constant 0 : index
    %25 = vector.load %arg6[%c1_20, %c0_21, %c0_22] : memref<2x1x128xf32, #tpu.memory_space<vmem>>, vector<1x1x128xf32>
    %26 = vector.shape_cast %25 : vector<1x1x128xf32> to vector<1x128xf32>
    %27 = vector.broadcast %26 : vector<1x128xf32> to vector<128x128xf32>
    %28 = arith.addf %24, %27 : vector<128x128xf32>
    %cst_23 = arith.constant 0.000000e+00 : f32
    %29 = vector.broadcast %cst_23 : f32 to vector<128x128xf32>
    %30 = arith.maximumf %28, %29 : vector<128x128xf32>
    %31 = arith.truncf %30 : vector<128x128xf32> to vector<128x128xbf16>
    %32 = tpu.concatenate %7, %31 in 1 : vector<128x128xbf16>, vector<128x128xbf16> -> vector<128x256xbf16>
    %c0_24 = arith.constant 0 : index
    %c0_25 = arith.constant 0 : index
    %33 = vector.load %arg7[%c0_24, %c0_25] : memref<256x128xbf16, #tpu.memory_space<vmem>>, vector<256x128xbf16>
    %cst_26 = arith.constant dense<0.000000e+00> : vector<128x128xf32>
    %34 = tpu.matmul %32, %33, %cst_26 {dimension_numbers = #tpu.dot_dimension_numbers<[1], [0], [0], [1], [0, 0, 1, 1], [], []>} : vector<128x256xbf16>, vector<256x128xbf16>, vector<128x128xf32> -> vector<128x128xf32>
    %c0_27 = arith.constant 0 : index
    %c0_28 = arith.constant 0 : index
    %35 = vector.load %arg8[%c0_27, %c0_28] : memref<1x128xf32, #tpu.memory_space<vmem>>, vector<1x128xf32>
    %36 = vector.broadcast %35 : vector<1x128xf32> to vector<128x128xf32>
    %37 = arith.addf %34, %36 : vector<128x128xf32>
    %38 = arith.truncf %37 : vector<128x128xf32> to vector<128x128xbf16>
    %c0_29 = arith.constant 0 : index
    %c0_30 = arith.constant 0 : index
    %39 = vector.load %arg11[%c0_29, %c0_30] : memref<128x128xbf16, #tpu.memory_space<vmem>>, vector<128x128xbf16>
    tpu.vector_store %arg11[%c0_29, %c0_30], %38 {strides = array<i32>} : memref<128x128xbf16, #tpu.memory_space<vmem>>, vector<128x128xbf16>,
    %c0_31 = arith.constant 0 : index
    %c0_32 = arith.constant 0 : index
    %40 = vector.load %arg9[%c0_31, %c0_32] : memref<128x1xi32, #tpu.memory_space<vmem>>, vector<128x1xi32>
    %c0_33 = arith.constant 0 : index
    %c0_34 = arith.constant 0 : index
    %41 = vector.load %arg10[%c0_33, %c0_34] : memref<128x1xi32, #tpu.memory_space<vmem>>, vector<128x1xi32>
    %c1_i32 = arith.constant 1 : i32
    %42 = vector.broadcast %c1_i32 : i32 to vector<128x1xi32>
    %43 = arith.cmpi eq, %41, %42 : vector<128x1xi32>
    %c-100_i32 = arith.constant -100 : i32
    %44 = vector.broadcast %c-100_i32 : i32 to vector<128x1xi32>
    %45 = arith.select %43, %40, %44 : vector<128x1xi1>, vector<128x1xi32>
    %c-100_i32_35 = arith.constant -100 : i32
    %46 = vector.broadcast %c-100_i32_35 : i32 to vector<128x1xi32>
    %47 = arith.cmpi ne, %45, %46 : vector<128x1xi32>
    %48 = arith.extui %47 : vector<128x1xi1> to vector<128x1xi32>
    %49 = arith.sitofp %48 : vector<128x1xi32> to vector<128x1xf32>
    %50 = tpu.iota {dimensions = array<i32: 1>} : vector<128x128xi32>
    %51 = vector.broadcast %45 : vector<128x1xi32> to vector<128x128xi32>
    %52 = arith.cmpi eq, %50, %51 : vector<128x128xi32>
    %53 = arith.extui %52 : vector<128x128xi1> to vector<128x128xi32>
    %54 = arith.sitofp %53 : vector<128x128xi32> to vector<128x128xf32>
    %cst_36 = arith.constant dense<0xFF800000> : vector<128xf32>
    %55 = vector.multi_reduction <maximumf>, %37, %cst_36 [1] : vector<128x128xf32> to vector<128xf32>
    %56 = vector.shape_cast %55 : vector<128xf32> to vector<128x1xf32>
    %57 = vector.broadcast %56 : vector<128x1xf32> to vector<128x128xf32>
    %58 = arith.subf %37, %57 : vector<128x128xf32>
    %59 = math.exp %58 : vector<128x128xf32>
    %cst_37 = arith.constant dense<0.000000e+00> : vector<128xf32>
    %60 = vector.multi_reduction <add>, %59, %cst_37 [1] : vector<128x128xf32> to vector<128xf32>
    %61 = vector.shape_cast %60 : vector<128xf32> to vector<128x1xf32>
    %62 = math.log %61 : vector<128x1xf32>
    %63 = arith.addf %56, %62 : vector<128x1xf32>
    %64 = arith.mulf %54, %37 : vector<128x128xf32>
    %cst_38 = arith.constant dense<0.000000e+00> : vector<128xf32>
    %65 = vector.multi_reduction <add>, %64, %cst_38 [1] : vector<128x128xf32> to vector<128xf32>
    %66 = vector.shape_cast %65 : vector<128xf32> to vector<128x1xf32>
    %67 = arith.subf %63, %66 : vector<128x1xf32>
    %68 = arith.mulf %67, %49 : vector<128x1xf32>
    %cst_39 = arith.constant 0.000000e+00 : f32
    %69 = vector.broadcast %cst_39 : f32 to vector<1x1x128xf32>
    %70 = vector.shape_cast %68 : vector<128x1xf32> to vector<1x128x1xf32>
    %cst_40 = arith.constant dense<0.000000e+00> : vector<1xf32>
    %71 = vector.multi_reduction <add>, %70, %cst_40 [1, 2] : vector<1x128x1xf32> to vector<1xf32>
    %72 = vector.shape_cast %71 : vector<1xf32> to vector<1x1x1xf32>
    %73 = vector.extract %72[0, 0, 0] : f32 from vector<1x1x1xf32>
    %74 = vector.broadcast %73 : f32 to vector<1x1x128xf32>
    %75 = arith.addf %69, %74 : vector<1x1x128xf32>
    %c0_41 = arith.constant 0 : index
    %c0_42 = arith.constant 0 : index
    %c0_43 = arith.constant 0 : index
    %76 = vector.load %arg12[%c0_41, %c0_42, %c0_43] : memref<1x1x128xf32, #tpu.memory_space<vmem>>, vector<1x1x128xf32>
    tpu.vector_store %arg12[%c0_41, %c0_42, %c0_43], %75 {strides = array<i32>} : memref<1x1x128xf32, #tpu.memory_space<vmem>>, vector<1x1x128xf32>,
    %cst_44 = arith.constant 0.000000e+00 : f32
    %77 = vector.broadcast %cst_44 : f32 to vector<1x1x128xf32>
    %78 = vector.shape_cast %49 : vector<128x1xf32> to vector<1x128x1xf32>
    %cst_45 = arith.constant dense<0.000000e+00> : vector<1xf32>
    %79 = vector.multi_reduction <add>, %78, %cst_45 [1, 2] : vector<1x128x1xf32> to vector<1xf32>
    %80 = vector.shape_cast %79 : vector<1xf32> to vector<1x1x1xf32>
    %81 = vector.extract %80[0, 0, 0] : f32 from vector<1x1x1xf32>
    %82 = vector.broadcast %81 : f32 to vector<1x1x128xf32>
    %83 = arith.addf %77, %82 : vector<1x1x128xf32>
    %c0_46 = arith.constant 0 : index
    %c0_47 = arith.constant 0 : index
    %c0_48 = arith.constant 0 : index
    %84 = vector.load %arg13[%c0_46, %c0_47, %c0_48] : memref<1x1x128xf32, #tpu.memory_space<vmem>>, vector<1x1x128xf32>
    tpu.vector_store %arg13[%c0_46, %c0_47, %c0_48], %83 {strides = array<i32>} : memref<1x1x128xf32, #tpu.memory_space<vmem>>, vector<1x1x128xf32>,
    return
  }
  func.func @transform_0(%arg0: i32) -> (i32, i32) {
    %c0_i32 = arith.constant 0 : i32
    %c0_i32_0 = arith.constant 0 : i32
    return %arg0, %c0_i32 : i32, i32
  }
  func.func @transform_1(%arg0: i32) -> (i32, i32) {
    %c0_i32 = arith.constant 0 : i32
    %c0_i32_0 = arith.constant 0 : i32
    return %arg0, %c0_i32 : i32, i32
  }
  func.func @transform_2(%arg0: i32) -> (i32, i32) {
    %c0_i32 = arith.constant 0 : i32
    %c0_i32_0 = arith.constant 0 : i32
    %c0_i32_1 = arith.constant 0 : i32
    return %c0_i32, %c0_i32_0 : i32, i32
  }
  func.func @transform_3(%arg0: i32) -> (i32, i32) {
    %c0_i32 = arith.constant 0 : i32
    %c0_i32_0 = arith.constant 0 : i32
    %c0_i32_1 = arith.constant 0 : i32
    return %c0_i32, %c0_i32_0 : i32, i32
  }
  func.func @transform_4(%arg0: i32) -> (i32, i32, i32) {
    %c0_i32 = arith.constant 0 : i32
    %c0_i32_0 = arith.constant 0 : i32
    %c0_i32_1 = arith.constant 0 : i32
    %c0_i32_2 = arith.constant 0 : i32
    return %c0_i32, %c0_i32_0, %c0_i32_1 : i32, i32, i32
  }
  func.func @transform_5(%arg0: i32) -> (i32, i32, i32) {
    %c0_i32 = arith.constant 0 : i32
    %c0_i32_0 = arith.constant 0 : i32
    %c0_i32_1 = arith.constant 0 : i32
    %c0_i32_2 = arith.constant 0 : i32
    return %c0_i32, %c0_i32_0, %c0_i32_1 : i32, i32, i32
  }
  func.func @transform_6(%arg0: i32) -> (i32, i32) {
    %c0_i32 = arith.constant 0 : i32
    %c0_i32_0 = arith.constant 0 : i32
    %c0_i32_1 = arith.constant 0 : i32
    return %c0_i32, %c0_i32_0 : i32, i32
  }
  func.func @transform_7(%arg0: i32) -> (i32, i32) {
    %c0_i32 = arith.constant 0 : i32
    %c0_i32_0 = arith.constant 0 : i32
    %c0_i32_1 = arith.constant 0 : i32
    return %c0_i32, %c0_i32_0 : i32, i32
  }
  func.func @transform_8(%arg0: i32) -> (i32, i32) {
    %c0_i32 = arith.constant 0 : i32
    %c0_i32_0 = arith.constant 0 : i32
    return %arg0, %c0_i32 : i32, i32
  }
  func.func @transform_9(%arg0: i32) -> (i32, i32) {
    %c0_i32 = arith.constant 0 : i32
    %c0_i32_0 = arith.constant 0 : i32
    return %arg0, %c0_i32 : i32, i32
  }
  func.func @transform_10(%arg0: i32) -> (i32, i32) {
    %c0_i32 = arith.constant 0 : i32
    %c0_i32_0 = arith.constant 0 : i32
    return %arg0, %c0_i32 : i32, i32
  }
  func.func @transform_11(%arg0: i32) -> (i32, i32, i32) {
    %c0_i32 = arith.constant 0 : i32
    %c0_i32_0 = arith.constant 0 : i32
    %c0_i32_1 = arith.constant 0 : i32
    return %arg0, %c0_i32, %c0_i32_0 : i32, i32, i32
  }
  func.func @transform_12(%arg0: i32) -> (i32, i32, i32) {
    %c0_i32 = arith.constant 0 : i32
    %c0_i32_0 = arith.constant 0 : i32
    %c0_i32_1 = arith.constant 0 : i32
    return %arg0, %c0_i32, %c0_i32_0 : i32, i32, i32
  }
}

</mosaic_0001>

<llo_original>
// kernel: tpu_custom_call.1
$region0: #{tpu_custom_call.1}
  #allocation0 [shape = 'u32[]', space=smem, size = 0x4, offset = 0x4, fixed_abs, tag = 'smem constant byte address 0x4 - core index']
  #allocation1 [shape = 'u32[144,128]{1,0:T(1,128)}', space=vmem, size = 0x12000, scoped, tag = 'internal scratch']
  %s0 = inlined_call_operand.hbm [shape: bf16[256,1024], index: 0, kind: input, shape index: {}]
  %s1 = inlined_call_operand.hbm [shape: bf16[256,128], index: 1, kind: input, shape index: {}]
  %s2 = inlined_call_operand.vmem [shape: bf16[1024,128], index: 2, kind: input, shape index: {}]
  %s3 = inlined_call_operand.vmem [shape: f32[1,128], index: 3, kind: input, shape index: {}]
  %s4 = inlined_call_operand.hbm [shape: bf16[2,128,128], index: 4, kind: input, shape index: {}]
  %s5 = inlined_call_operand.vmem [shape: f32[2,1,128], index: 5, kind: input, shape index: {}]
  %s6 = inlined_call_operand.hbm [shape: bf16[256,128], index: 6, kind: input, shape index: {}]
  %s7 = inlined_call_operand.vmem [shape: f32[1,128], index: 7, kind: input, shape index: {}]
  %s8 = inlined_call_operand.vmem [shape: s32[256,1], index: 8, kind: input, shape index: {}]
  %s9 = inlined_call_operand.vmem [shape: s32[256,1], index: 9, kind: input, shape index: {}]
  %s10 = inlined_call_operand.hbm [shape: bf16[256,128], index: 10, kind: output, shape index: {0}]
  %s11 = inlined_call_operand.hbm [shape: f32[2,1,128], index: 11, kind: output, shape index: {1}]
  %s12 = inlined_call_operand.hbm [shape: f32[2,1,128], index: 12, kind: output, shape index: {2}]
  %13 = xla_tuple %s10, %s11, %s12
  %s14 = sld [smem:[#allocation0]]
  $region105: #{tpu_custom_call.1} parent=0
    _
  %s16 = ssub.s32 1, %s14
  %s17 = scalar_select 0, %s16, %s14
  $region1: #{tpu_custom_call.1} parent=0
    #allocation2 [shape = 'u8[524288]{0}', space=vmem, size = 0x80000, scoped, tag = 'input window, operand 0']
    #allocation3 [shape = 's32[2]{0}', space=sflag, size = 0x8, scoped, tag = 'scoped memory for tpu_custom_call.1']
    #allocation4 [shape = 's32[2]{0}', space=sflag, size = 0x8, scoped, tag = 'scoped memory for tpu_custom_call.1']
    #allocation5 [shape = 'u8[65536]{0}', space=vmem, size = 0x10000, scoped, tag = 'input window, operand 1']
    #allocation6 [shape = 's32[2]{0}', space=sflag, size = 0x8, scoped, tag = 'scoped memory for tpu_custom_call.1']
    #allocation7 [shape = 'u8[65536]{0}', space=vmem, size = 0x10000, scoped, tag = 'input window, operand 4, single buffered']
    #allocation8 [shape = 'u8[65536]{0}', space=vmem, size = 0x10000, scoped, tag = 'input window, operand 6, single buffered']
    #allocation9 [shape = 's32[1]{0}', space=sflag, size = 0x4, scoped, tag = 'scoped memory for tpu_custom_call.1']
    #allocation10 [shape = 'u8[65536]{0}', space=vmem, size = 0x10000, scoped, tag = 'output window, operand 0']
    #allocation11 [shape = 'u8[1024]{0}', space=vmem, size = 0x400, scoped, tag = 'output window, operand 1']
    #allocation12 [shape = 's32[2]{0}', space=sflag, size = 0x8, scoped, tag = 'scoped memory for tpu_custom_call.1']
    #allocation13 [shape = 'u8[1024]{0}', space=vmem, size = 0x400, scoped, tag = 'output window, operand 2']
    %18 = vsyncpa [#allocation3], 0
    %s19 = scalar_lea.sflag [#allocation3], 1
    %20 = vsyncpa %s19, 0
    %21 = vsyncpa [#allocation6], 0
    %s22 = scalar_lea.sflag [#allocation6], 1
    %23 = vsyncpa %s22, 0
    %24 = vsyncpa [#allocation9], 0
    %25 = vsyncpa [#allocation4], 0
    %s26 = scalar_lea.sflag [#allocation4], 1
    %27 = vsyncpa %s26, 0
    %28 = vsyncpa [#allocation12], 0
    %s29 = scalar_lea.sflag [#allocation12], 1
    %30 = vsyncpa %s29, 0
    loop: start=0, step=1, limit=4
    $region2: #{tpu_custom_call.1} parent=1 // loop_pre_header
      _
    $region3: #{tpu_custom_call.1} parent=1 // loop_header
      %s32 = sphi 0, %s36
      %p33 = scmp.ge.s32.totalorder %s32, 4
      %s42 = sphi 0, %s44
      %s45 = sphi 0, %s42
      %s46 = sphi 0, %s45
      %s62 = sphi 0, %s46
      %s68 = sphi 0, %s70
      %s71 = sphi 0, %s68
      %s72 = sphi 0, %s71
      %s88 = sphi 0, %s72
      %s92 = sphi 0, %s92
      %s94 = sphi 0, %s92
      %s95 = sphi 0, %s94
      %s109 = sphi 0, %s95
      %s113 = sphi 0, %s113
      %s115 = sphi 0, %s113
      %s116 = sphi 0, %s115
      %s130 = sphi 0, %s116
      %s134 = sphi 0, %s134
      %s136 = sphi 0, %s134
      %s137 = sphi 0, %s136
      %s151 = sphi 0, %s137
      %s155 = sphi 0, %s155
      %s157 = sphi 0, %s155
      %s158 = sphi 0, %s157
      %s172 = sphi 0, %s158
      %s176 = sphi 0, %s176
      %s178 = sphi 0, %s176
      %s179 = sphi 0, %s178
      %s193 = sphi 0, %s179
      %s197 = sphi 0, %s197
      %s199 = sphi 0, %s197
      %s200 = sphi 0, %s199
      %s214 = sphi 0, %s200
      %s220 = sphi 0, %s222
      %s223 = sphi 0, %s220
      %s224 = sphi 0, %s223
      %s240 = sphi 0, %s224
      %s246 = sphi 0, %s248
      %s249 = sphi 0, %s246
      %s250 = sphi 0, %s249
      %s266 = sphi 0, %s250
      %s272 = sphi 0, %s274
      %s275 = sphi 0, %s272
      %s276 = sphi 0, %s275
      %s292 = sphi 0, %s276
      %s298 = sphi 0, %s300
      %s301 = sphi 0, %s298
      %s302 = sphi 0, %s301
      %s318 = sphi 0, %s302
      %s324 = sphi 0, %s326
      %s327 = sphi 0, %s324
      %s328 = sphi 0, %s327
      %s344 = sphi 0, %s328
    $region4: #{tpu_custom_call.1} parent=1 // loop_header_branch
      %35 = sbr.rel (%p33) target = $region8
    $region5: #{tpu_custom_call.1} parent=1 // loop_body
      %s37 = ssub.s32 %s32, 1
      %s38 = ssub.s32 %s32, 2
      %s39 = sadd.s32 %s32, 1
      %s40 = ssub.s32 %s32, %s39
      %p41 = scmp.eq.s32.totalorder %s40, 0
      %s43 = sadd.s32 %s42, 1
      %s44 = scalar_select %p41, %s42, %s43
      %p47 = pneg %p41
      %p48 = scmp.eq.s32.totalorder %s32, 1
      %p49 = por %p47, %p48
      %p50 = scmp.ne.s32.totalorder %s42, %s45
      %p51 = scmp.eq.s32.totalorder %s32, 0
      %p52 = por %p50, %p51
      %p53 = scmp.ne.s32.totalorder %s42, %s45
      %p54 = scmp.eq.s32.totalorder %s37, 1
      %p55 = por %p53, %p54
      %p56 = scmp.ne.s32.totalorder %s45, %s46
      %p57 = scmp.eq.s32.totalorder %s37, 0
      %p58 = por %p56, %p57
      %p59 = scmp.ne.s32.totalorder %s45, %s46
      %p60 = scmp.eq.s32.totalorder %s38, 1
      %p61 = por %p59, %p60
      %p63 = scmp.ne.s32.totalorder %s46, %s62
      %p64 = scmp.eq.s32.totalorder %s38, 0
      %p65 = por %p63, %p64
      %s66 = ssub.s32 %s32, %s39
      %p67 = scmp.eq.s32.totalorder %s66, 0
      %s69 = sadd.s32 %s68, 1
      %s70 = scalar_select %p67, %s68, %s69
      %p73 = pneg %p67
      %p74 = scmp.eq.s32.totalorder %s32, 1
      %p75 = por %p73, %p74
      %p76 = scmp.ne.s32.totalorder %s68, %s71
      %p77 = scmp.eq.s32.totalorder %s32, 0
      %p78 = por %p76, %p77
      %p79 = scmp.ne.s32.totalorder %s68, %s71
      %p80 = scmp.eq.s32.totalorder %s37, 1
      %p81 = por %p79, %p80
      %p82 = scmp.ne.s32.totalorder %s71, %s72
      %p83 = scmp.eq.s32.totalorder %s37, 0
      %p84 = por %p82, %p83
      %p85 = scmp.ne.s32.totalorder %s71, %s72
      %p86 = scmp.eq.s32.totalorder %s38, 1
      %p87 = por %p85, %p86
      %p89 = scmp.ne.s32.totalorder %s72, %s88
      %p90 = scmp.eq.s32.totalorder %s38, 0
      %p91 = por %p89, %p90
      %s93 = sadd.s32 %s92, 1
      %p96 = scmp.eq.s32.totalorder %s32, 1
      %p97 = scmp.ne.s32.totalorder %s92, %s94
      %p98 = scmp.eq.s32.totalorder %s32, 0
      %p99 = por %p97, %p98
      %p100 = scmp.ne.s32.totalorder %s92, %s94
      %p101 = scmp.eq.s32.totalorder %s37, 1
      %p102 = por %p100, %p101
      %p103 = scmp.ne.s32.totalorder %s94, %s95
      %p104 = scmp.eq.s32.totalorder %s37, 0
      %p105 = por %p103, %p104
      %p106 = scmp.ne.s32.totalorder %s94, %s95
      %p107 = scmp.eq.s32.totalorder %s38, 1
      %p108 = por %p106, %p107
      %p110 = scmp.ne.s32.totalorder %s95, %s109
      %p111 = scmp.eq.s32.totalorder %s38, 0
      %p112 = por %p110, %p111
      %s114 = sadd.s32 %s113, 1
      %p117 = scmp.eq.s32.totalorder %s32, 1
      %p118 = scmp.ne.s32.totalorder %s113, %s115
      %p119 = scmp.eq.s32.totalorder %s32, 0
      %p120 = por %p118, %p119
      %p121 = scmp.ne.s32.totalorder %s113, %s115
      %p122 = scmp.eq.s32.totalorder %s37, 1
      %p123 = por %p121, %p122
      %p124 = scmp.ne.s32.totalorder %s115, %s116
      %p125 = scmp.eq.s32.totalorder %s37, 0
      %p126 = por %p124, %p125
      %p127 = scmp.ne.s32.totalorder %s115, %s116
      %p128 = scmp.eq.s32.totalorder %s38, 1
      %p129 = por %p127, %p128
      %p131 = scmp.ne.s32.totalorder %s116, %s130
      %p132 = scmp.eq.s32.totalorder %s38, 0
      %p133 = por %p131, %p132
      %s135 = sadd.s32 %s134, 1
      %p138 = scmp.eq.s32.totalorder %s32, 1
      %p139 = scmp.ne.s32.totalorder %s134, %s136
      %p140 = scmp.eq.s32.totalorder %s32, 0
      %p141 = por %p139, %p140
      %p142 = scmp.ne.s32.totalorder %s134, %s136
      %p143 = scmp.eq.s32.totalorder %s37, 1
      %p144 = por %p142, %p143
      %p145 = scmp.ne.s32.totalorder %s136, %s137
      %p146 = scmp.eq.s32.totalorder %s37, 0
      %p147 = por %p145, %p146
      %p148 = scmp.ne.s32.totalorder %s136, %s137
      %p149 = scmp.eq.s32.totalorder %s38, 1
      %p150 = por %p148, %p149
      %p152 = scmp.ne.s32.totalorder %s137, %s151
      %p153 = scmp.eq.s32.totalorder %s38, 0
      %p154 = por %p152, %p153
      %s156 = sadd.s32 %s155, 1
      %p159 = scmp.eq.s32.totalorder %s32, 1
      %p160 = scmp.ne.s32.totalorder %s155, %s157
      %p161 = scmp.eq.s32.totalorder %s32, 0
      %p162 = por %p160, %p161
      %p163 = scmp.ne.s32.totalorder %s155, %s157
      %p164 = scmp.eq.s32.totalorder %s37, 1
      %p165 = por %p163, %p164
      %p166 = scmp.ne.s32.totalorder %s157, %s158
      %p167 = scmp.eq.s32.totalorder %s37, 0
      %p168 = por %p166, %p167
      %p169 = scmp.ne.s32.totalorder %s157, %s158
      %p170 = scmp.eq.s32.totalorder %s38, 1
      %p171 = por %p169, %p170
      %p173 = scmp.ne.s32.totalorder %s158, %s172
      %p174 = scmp.eq.s32.totalorder %s38, 0
      %p175 = por %p173, %p174
      %s177 = sadd.s32 %s176, 1
      %p180 = scmp.eq.s32.totalorder %s32, 1
      %p181 = scmp.ne.s32.totalorder %s176, %s178
      %p182 = scmp.eq.s32.totalorder %s32, 0
      %p183 = por %p181, %p182
      %p184 = scmp.ne.s32.totalorder %s176, %s178
      %p185 = scmp.eq.s32.totalorder %s37, 1
      %p186 = por %p184, %p185
      %p187 = scmp.ne.s32.totalorder %s178, %s179
      %p188 = scmp.eq.s32.totalorder %s37, 0
      %p189 = por %p187, %p188
      %p190 = scmp.ne.s32.totalorder %s178, %s179
      %p191 = scmp.eq.s32.totalorder %s38, 1
      %p192 = por %p190, %p191
      %p194 = scmp.ne.s32.totalorder %s179, %s193
      %p195 = scmp.eq.s32.totalorder %s38, 0
      %p196 = por %p194, %p195
      %s198 = sadd.s32 %s197, 1
      %p201 = scmp.eq.s32.totalorder %s32, 1
      %p202 = scmp.ne.s32.totalorder %s197, %s199
      %p203 = scmp.eq.s32.totalorder %s32, 0
      %p204 = por %p202, %p203
      %p205 = scmp.ne.s32.totalorder %s197, %s199
      %p206 = scmp.eq.s32.totalorder %s37, 1
      %p207 = por %p205, %p206
      %p208 = scmp.ne.s32.totalorder %s199, %s200
      %p209 = scmp.eq.s32.totalorder %s37, 0
      %p210 = por %p208, %p209
      %p211 = scmp.ne.s32.totalorder %s199, %s200
      %p212 = scmp.eq.s32.totalorder %s38, 1
      %p213 = por %p211, %p212
      %p215 = scmp.ne.s32.totalorder %s200, %s214
      %p216 = scmp.eq.s32.totalorder %s38, 0
      %p217 = por %p215, %p216
      %s218 = ssub.s32 %s32, %s39
      %p219 = scmp.eq.s32.totalorder %s218, 0
      %s221 = sadd.s32 %s220, 1
      %s222 = scalar_select %p219, %s220, %s221
      %p225 = pneg %p219
      %p226 = scmp.eq.s32.totalorder %s32, 1
      %p227 = por %p225, %p226
      %p228 = scmp.ne.s32.totalorder %s220, %s223
      %p229 = scmp.eq.s32.totalorder %s32, 0
      %p230 = por %p228, %p229
      %p231 = scmp.ne.s32.totalorder %s220, %s223
      %p232 = scmp.eq.s32.totalorder %s37, 1
      %p233 = por %p231, %p232
      %p234 = scmp.ne.s32.totalorder %s223, %s224
      %p235 = scmp.eq.s32.totalorder %s37, 0
      %p236 = por %p234, %p235
      %p237 = scmp.ne.s32.totalorder %s223, %s224
      %p238 = scmp.eq.s32.totalorder %s38, 1
      %p239 = por %p237, %p238
      %p241 = scmp.ne.s32.totalorder %s224, %s240
      %p242 = scmp.eq.s32.totalorder %s38, 0
      %p243 = por %p241, %p242
      %s244 = ssub.s32 %s32, %s39
      %p245 = scmp.eq.s32.totalorder %s244, 0
      %s247 = sadd.s32 %s246, 1
      %s248 = scalar_select %p245, %s246, %s247
      %p251 = pneg %p245
      %p252 = scmp.eq.s32.totalorder %s32, 1
      %p253 = por %p251, %p252
      %p254 = scmp.ne.s32.totalorder %s246, %s249
      %p255 = scmp.eq.s32.totalorder %s32, 0
      %p256 = por %p254, %p255
      %p257 = scmp.ne.s32.totalorder %s246, %s249
      %p258 = scmp.eq.s32.totalorder %s37, 1
      %p259 = por %p257, %p258
      %p260 = scmp.ne.s32.totalorder %s249, %s250
      %p261 = scmp.eq.s32.totalorder %s37, 0
      %p262 = por %p260, %p261
      %p263 = scmp.ne.s32.totalorder %s249, %s250
      %p264 = scmp.eq.s32.totalorder %s38, 1
      %p265 = por %p263, %p264
      %p267 = scmp.ne.s32.totalorder %s250, %s266
      %p268 = scmp.eq.s32.totalorder %s38, 0
      %p269 = por %p267, %p268
      %s270 = ssub.s32 %s32, %s39
      %p271 = scmp.eq.s32.totalorder %s270, 0
      %s273 = sadd.s32 %s272, 1
      %s274 = scalar_select %p271, %s272, %s273
      %p277 = pneg %p271
      %p278 = scmp.eq.s32.totalorder %s32, 1
      %p279 = por %p277, %p278
      %p280 = scmp.ne.s32.totalorder %s272, %s275
      %p281 = scmp.eq.s32.totalorder %s32, 0
      %p282 = por %p280, %p281
      %p283 = scmp.ne.s32.totalorder %s272, %s275
      %p284 = scmp.eq.s32.totalorder %s37, 1
      %p285 = por %p283, %p284
      %p286 = scmp.ne.s32.totalorder %s275, %s276
      %p287 = scmp.eq.s32.totalorder %s37, 0
      %p288 = por %p286, %p287
      %p289 = scmp.ne.s32.totalorder %s275, %s276
      %p290 = scmp.eq.s32.totalorder %s38, 1
      %p291 = por %p289, %p290
      %p293 = scmp.ne.s32.totalorder %s276, %s292
      %p294 = scmp.eq.s32.totalorder %s38, 0
      %p295 = por %p293, %p294
      %s296 = ssub.s32 %s32, %s39
      %p297 = scmp.eq.s32.totalorder %s296, 0
      %s299 = sadd.s32 %s298, 1
      %s300 = scalar_select %p297, %s298, %s299
      %p303 = pneg %p297
      %p304 = scmp.eq.s32.totalorder %s32, 1
      %p305 = por %p303, %p304
      %p306 = scmp.ne.s32.totalorder %s298, %s301
      %p307 = scmp.eq.s32.totalorder %s32, 0
      %p308 = por %p306, %p307
      %p309 = scmp.ne.s32.totalorder %s298, %s301
      %p310 = scmp.eq.s32.totalorder %s37, 1
      %p311 = por %p309, %p310
      %p312 = scmp.ne.s32.totalorder %s301, %s302
      %p313 = scmp.eq.s32.totalorder %s37, 0
      %p314 = por %p312, %p313
      %p315 = scmp.ne.s32.totalorder %s301, %s302
      %p316 = scmp.eq.s32.totalorder %s38, 1
      %p317 = por %p315, %p316
      %p319 = scmp.ne.s32.totalorder %s302, %s318
      %p320 = scmp.eq.s32.totalorder %s38, 0
      %p321 = por %p319, %p320
      %s322 = ssub.s32 %s32, %s39
      %p323 = scmp.eq.s32.totalorder %s322, 0
      %s325 = sadd.s32 %s324, 1
      %s326 = scalar_select %p323, %s324, %s325
      %p329 = pneg %p323
      %p330 = scmp.eq.s32.totalorder %s32, 1
      %p331 = por %p329, %p330
      %p332 = scmp.ne.s32.totalorder %s324, %s327
      %p333 = scmp.eq.s32.totalorder %s32, 0
      %p334 = por %p332, %p333
      %p335 = scmp.ne.s32.totalorder %s324, %s327
      %p336 = scmp.eq.s32.totalorder %s37, 1
      %p337 = por %p335, %p336
      %p338 = scmp.ne.s32.totalorder %s327, %s328
      %p339 = scmp.eq.s32.totalorder %s37, 0
      %p340 = por %p338, %p339
      %p341 = scmp.ne.s32.totalorder %s327, %s328
      %p342 = scmp.eq.s32.totalorder %s38, 1
      %p343 = por %p341, %p342
      %p345 = scmp.ne.s32.totalorder %s328, %s344
      %p346 = scmp.eq.s32.totalorder %s38, 0
      %p347 = por %p345, %p346
      %p348 = scmp.le.s32.totalorder 1, %s32
      %p349 = scmp.lt.s32.totalorder %s32, 3
      %p350 = pnand %p348, %p349
      %p351 = pneg %p350
      // Predicated region
      $region9: #{tpu_custom_call.1} parent=5 // pred_check
        _
      $region10: #{tpu_custom_call.1} parent=5 // pred_check_branch
        %353 = sbr.rel (%p350) target = $region12
      $region11: #{tpu_custom_call.1} parent=5 // pred_region
        %s354 = ssub.s32 %s32, 1
        // Predicated region
        $region13: #{tpu_custom_call.1} parent=11 // pred_check
          %p355 = pneg %p105
        $region14: #{tpu_custom_call.1} parent=11 // pred_check_branch
          %357 = sbr.rel (%p355) target = $region16
        $region15: #{tpu_custom_call.1} parent=11 // pred_region
          _
        $region16: #{tpu_custom_call.1} parent=11 // pred_fallthru
          _
        // Predicated region
        $region17: #{tpu_custom_call.1} parent=11 // pred_check
          %p358 = pneg %p126
        $region18: #{tpu_custom_call.1} parent=11 // pred_check_branch
          %360 = sbr.rel (%p358) target = $region20
        $region19: #{tpu_custom_call.1} parent=11 // pred_region
          _
        $region20: #{tpu_custom_call.1} parent=11 // pred_fallthru
          _
        // Predicated region
        $region21: #{tpu_custom_call.1} parent=11 // pred_check
          %p361 = pneg %p147
        $region22: #{tpu_custom_call.1} parent=11 // pred_check_branch
          %363 = sbr.rel (%p361) target = $region24
        $region23: #{tpu_custom_call.1} parent=11 // pred_region
          %s365 = ssub.s32 2048, 2048
          %366 = vsyncadd [#allocation6], %s365
          %s367 = sshll.u32 [#allocation7], 4
          %s368 = int_to_ptr.vmem [resolvable:$true] %s367
          %373 = dma.hbm_to_vmem [thread:$0]  %s4, 2048, %s368, [#allocation6], 64, 64, 4
        $region24: #{tpu_custom_call.1} parent=11 // pred_fallthru
          _
        // Predicated region
        $region25: #{tpu_custom_call.1} parent=11 // pred_check
          %p374 = pneg %p168
        $region26: #{tpu_custom_call.1} parent=11 // pred_check_branch
          %376 = sbr.rel (%p374) target = $region28
        $region27: #{tpu_custom_call.1} parent=11 // pred_region
          _
        $region28: #{tpu_custom_call.1} parent=11 // pred_fallthru
          _
        // Predicated region
        $region29: #{tpu_custom_call.1} parent=11 // pred_check
          %p377 = pneg %p189
        $region30: #{tpu_custom_call.1} parent=11 // pred_check_branch
          %379 = sbr.rel (%p377) target = $region32
        $region31: #{tpu_custom_call.1} parent=11 // pred_region
          %s381 = ssub.s32 2048, 2048
          %382 = vsyncadd [#allocation9], %s381
          %s383 = sshll.u32 [#allocation8], 4
          %s384 = int_to_ptr.vmem [resolvable:$true] %s383
          %389 = dma.hbm_to_vmem [thread:$0]  %s6, 2048, %s384, [#allocation9], 64, 64, 4
        $region32: #{tpu_custom_call.1} parent=11 // pred_fallthru
          _
        // Predicated region
        $region33: #{tpu_custom_call.1} parent=11 // pred_check
          %p390 = pneg %p210
        $region34: #{tpu_custom_call.1} parent=11 // pred_check_branch
          %392 = sbr.rel (%p390) target = $region36
        $region35: #{tpu_custom_call.1} parent=11 // pred_region
          _
        $region36: #{tpu_custom_call.1} parent=11 // pred_fallthru
          _
      $region12: #{tpu_custom_call.1} parent=5 // pred_fallthru
        _
      %p393 = scmp.lt.s32.totalorder %s32, 2
      // Predicated region
      $region37: #{tpu_custom_call.1} parent=5 // pred_check
        %p394 = pneg %p393
      $region38: #{tpu_custom_call.1} parent=5 // pred_check_branch
        %396 = sbr.rel (%p394) target = $region40
      $region39: #{tpu_custom_call.1} parent=5 // pred_region
        // Predicated region
        $region41: #{tpu_custom_call.1} parent=39 // pred_check
          %p397 = pneg %p52
        $region42: #{tpu_custom_call.1} parent=39 // pred_check_branch
          %399 = sbr.rel (%p397) target = $region44
        $region43: #{tpu_custom_call.1} parent=39 // pred_region
          %s400 = sand.u32 %s42, 1
          %s401 = scalar_lea.sflag [#allocation3], %s400
          %s402 = sand.u32 %s42, 1
          %s403 = smul.addr %s402, 512
          %s404 = scalar_lea.vmem [#allocation2], %s403
          %s405 = smul.u32 16, %s32
          %s407 = ssub.s32 8192, 8192
          %408 = vsyncadd %s401, %s407
          %s409 = smul.addr %s405, 8
          %s410 = smul.addr %s409, 64
          %s411 = scalar_lea.hbm %s0, %s410
          %s412 = sshll.u32 %s404, 4
          %s413 = int_to_ptr.vmem [resolvable:$true] %s412
          %418 = dma.hbm_to_vmem [thread:$0]  %s411, 8192, %s413, %s401, 512, 512, 32
        $region44: #{tpu_custom_call.1} parent=39 // pred_fallthru
          _
        // Predicated region
        $region45: #{tpu_custom_call.1} parent=39 // pred_check
          %p419 = pneg %p78
        $region46: #{tpu_custom_call.1} parent=39 // pred_check_branch
          %421 = sbr.rel (%p419) target = $region48
        $region47: #{tpu_custom_call.1} parent=39 // pred_region
          %s422 = sand.u32 %s32, 1
          %s423 = scalar_lea.sflag [#allocation6], %s422
          %s424 = sand.u32 %s68, 1
          %s425 = smul.addr %s424, 64
          %s426 = scalar_lea.vmem [#allocation5], %s425
          %s427 = smul.u32 16, %s32
          %s429 = ssub.s32 1024, 1024
          %430 = vsyncadd %s423, %s429
          %s431 = smul.addr %s427, 64
          %s432 = scalar_lea.hbm %s1, %s431
          %s433 = sshll.u32 %s426, 4
          %s434 = int_to_ptr.vmem [resolvable:$true] %s433
          %439 = dma.hbm_to_vmem [thread:$0]  %s432, 1024, %s434, %s423, 64, 64, 4
        $region48: #{tpu_custom_call.1} parent=39 // pred_fallthru
          _
        // Predicated region
        $region49: #{tpu_custom_call.1} parent=39 // pred_check
          %p440 = pneg %p230
        $region50: #{tpu_custom_call.1} parent=39 // pred_check_branch
          %442 = sbr.rel (%p440) target = $region52
        $region51: #{tpu_custom_call.1} parent=39 // pred_region
          %s443 = smul.u32 16, %s32
          %p444 = scmp.lt.s32.totalorder %s443, 31
          %s445 = scalar_select %p444, %s443, 31
          %s446 = smul.addr %s445, 8
          %s447 = scalar_lea.vmem %s8, %s446
          %s448 = smul.u32 16, %s32
        $region52: #{tpu_custom_call.1} parent=39 // pred_fallthru
          _
        // Predicated region
        $region53: #{tpu_custom_call.1} parent=39 // pred_check
          %p449 = pneg %p256
        $region54: #{tpu_custom_call.1} parent=39 // pred_check_branch
          %451 = sbr.rel (%p449) target = $region56
        $region55: #{tpu_custom_call.1} parent=39 // pred_region
          %s452 = smul.u32 16, %s32
          %p453 = scmp.lt.s32.totalorder %s452, 31
          %s454 = scalar_select %p453, %s452, 31
          %s455 = smul.addr %s454, 8
          %s456 = scalar_lea.vmem %s9, %s455
          %s457 = smul.u32 16, %s32
        $region56: #{tpu_custom_call.1} parent=39 // pred_fallthru
          _
      $region40: #{tpu_custom_call.1} parent=5 // pred_fallthru
        _
      %p458 = scmp.le.s32.totalorder 1, %s32
      %p459 = scmp.lt.s32.totalorder %s32, 3
      %p460 = pnand %p458, %p459
      %p461 = pneg %p460
      // Predicated region
      $region57: #{tpu_custom_call.1} parent=5 // pred_check
        _
      $region58: #{tpu_custom_call.1} parent=5 // pred_check_branch
        %463 = sbr.rel (%p460) target = $region60
      $region59: #{tpu_custom_call.1} parent=5 // pred_region
        %s464 = ssub.s32 %s32, 1
        %s465 = sand.u32 %s45, 1
        %s466 = scalar_lea.sflag [#allocation3], %s465
        %s467 = sand.u32 %s45, 1
        %s468 = smul.addr %s467, 512
        %s469 = scalar_lea.vmem [#allocation2], %s468
        // Predicated region
        $region61: #{tpu_custom_call.1} parent=59 // pred_check
          %p470 = pneg %p58
        $region62: #{tpu_custom_call.1} parent=59 // pred_check_branch
          %472 = sbr.rel (%p470) target = $region64
        $region63: #{tpu_custom_call.1} parent=59 // pred_region
          %473 = dma.done %s466, 8192
        $region64: #{tpu_custom_call.1} parent=59 // pred_fallthru
          _
        %s474 = sand.u32 %s37, 1
        %s475 = scalar_lea.sflag [#allocation6], %s474
        %s476 = sand.u32 %s71, 1
        %s477 = smul.addr %s476, 64
        %s478 = scalar_lea.vmem [#allocation5], %s477
        // Predicated region
        $region65: #{tpu_custom_call.1} parent=59 // pred_check
          %p479 = pneg %p84
        $region66: #{tpu_custom_call.1} parent=59 // pred_check_branch
          %481 = sbr.rel (%p479) target = $region68
        $region67: #{tpu_custom_call.1} parent=59 // pred_region
          %482 = dma.done %s475, 1024
        $region68: #{tpu_custom_call.1} parent=59 // pred_fallthru
          _
        // Predicated region
        $region69: #{tpu_custom_call.1} parent=59 // pred_check
          %p483 = pneg %p147
        $region70: #{tpu_custom_call.1} parent=59 // pred_check_branch
          %485 = sbr.rel (%p483) target = $region72
        $region71: #{tpu_custom_call.1} parent=59 // pred_region
          %486 = dma.done [#allocation6], 2048
        $region72: #{tpu_custom_call.1} parent=59 // pred_fallthru
          _
        // Predicated region
        $region73: #{tpu_custom_call.1} parent=59 // pred_check
          %p487 = pneg %p189
        $region74: #{tpu_custom_call.1} parent=59 // pred_check_branch
          %489 = sbr.rel (%p487) target = $region76
        $region75: #{tpu_custom_call.1} parent=59 // pred_region
          %490 = dma.done [#allocation9], 2048
        $region76: #{tpu_custom_call.1} parent=59 // pred_fallthru
          _
        %s491 = sand.u32 %s45, 1
        %s492 = scalar_lea.sflag [#allocation3], %s491
        %s493 = sand.u32 %s45, 1
        %s494 = smul.addr %s493, 512
        %s495 = scalar_lea.vmem [#allocation2], %s494
        %p496 = pneg %p58
        %p497 = pneg %p55
        %s498 = sand.u32 %s37, 1
        %s499 = scalar_lea.sflag [#allocation6], %s498
        %s500 = sand.u32 %s71, 1
        %s501 = smul.addr %s500, 64
        %s502 = scalar_lea.vmem [#allocation5], %s501
        %p503 = pneg %p84
        %p504 = pneg %p81
        %p505 = pneg %p105
        %p506 = pneg %p102
        %p507 = pneg %p126
        %p508 = pneg %p123
        %p509 = pneg %p147
        %p510 = pneg %p144
        %p511 = pneg %p168
        %p512 = pneg %p165
        %p513 = pneg %p189
        %p514 = pneg %p186
        %p515 = pneg %p210
        %p516 = pneg %p207
        %s517 = smul.u32 16, %s37
        %p518 = scmp.lt.s32.totalorder %s517, 31
        %s519 = scalar_select %p518, %s517, 31
        %s520 = smul.addr %s519, 8
        %s521 = scalar_lea.vmem %s8, %s520
        %p522 = pneg %p236
        %p523 = pneg %p233
        %s524 = smul.u32 16, %s37
        %p525 = scmp.lt.s32.totalorder %s524, 31
        %s526 = scalar_select %p525, %s524, 31
        %s527 = smul.addr %s526, 8
        %s528 = scalar_lea.vmem %s9, %s527
        %p529 = pneg %p262
        %p530 = pneg %p259
        %p531 = pneg %p288
        %p532 = pneg %p285
        %s533 = sand.u32 %s275, 1
        %s534 = scalar_lea.sflag [#allocation4], %s533
        %s535 = sand.u32 %s275, 1
        %s536 = smul.addr %s535, 64
        %s537 = scalar_lea.vmem [#allocation10], %s536
        %p538 = pneg %p314
        %p539 = pneg %p311
        %s540 = sand.u32 %s37, 1
        %s541 = scalar_lea.sflag [#allocation12], %s540
        %s542 = sand.u32 %s301, 1
        %s543 = scalar_lea.vmem [#allocation11], %s542
        %p544 = pneg %p340
        %p545 = pneg %p337
        %s546 = sand.u32 %s37, 1
        %s547 = scalar_lea.sflag [#allocation12], %s546
        %s548 = sand.u32 %s327, 1
        %s549 = scalar_lea.vmem [#allocation13], %s548
        %s550 = smul.u32 16, %s37
        %s551 = smul.u32 16, %s37
        %s552 = smul.u32 16, %s37
        %p553 = scmp.lt.s32.totalorder %s552, 31
        %s554 = scalar_select %p553, %s552, 31
        %s555 = smul.addr %s554, 8
        %s556 = scalar_lea.vmem %s8, %s555
        %s557 = smul.u32 16, %s37
        %s558 = smul.u32 16, %s37
        %p559 = scmp.lt.s32.totalorder %s558, 31
        %s560 = scalar_select %p559, %s558, 31
        %s561 = smul.addr %s560, 8
        %s562 = scalar_lea.vmem %s9, %s561
        %s563 = smul.u32 16, %s37
        %s564 = smul.u32 16, %s37
        %v566 = vld [vmem:[%s469] sm:$0xff]
        %v567 = vld [vmem:[%s469 + $0x8] sm:$0xff]
        %v568 = vld [vmem:[%s469 + $0x10] sm:$0xff]
        %v569 = vld [vmem:[%s469 + $0x18] sm:$0xff]
        %v570 = vld [vmem:[%s469 + $0x20] sm:$0xff]
        %v571 = vld [vmem:[%s469 + $0x28] sm:$0xff]
        %v572 = vld [vmem:[%s469 + $0x30] sm:$0xff]
        %v573 = vld [vmem:[%s469 + $0x38] sm:$0xff]
        %v574 = vld [vmem:[%s469 + $0x40] sm:$0xff]
        %v575 = vld [vmem:[%s469 + $0x48] sm:$0xff]
        %v576 = vld [vmem:[%s469 + $0x50] sm:$0xff]
        %v577 = vld [vmem:[%s469 + $0x58] sm:$0xff]
        %v578 = vld [vmem:[%s469 + $0x60] sm:$0xff]
        %v579 = vld [vmem:[%s469 + $0x68] sm:$0xff]
        %v580 = vld [vmem:[%s469 + $0x70] sm:$0xff]
        %v581 = vld [vmem:[%s469 + $0x78] sm:$0xff]
        %v582 = vld [vmem:[%s469 + $0x80] sm:$0xff]
        %v583 = vld [vmem:[%s469 + $0x88] sm:$0xff]
        %v584 = vld [vmem:[%s469 + $0x90] sm:$0xff]
        %v585 = vld [vmem:[%s469 + $0x98] sm:$0xff]
        %v586 = vld [vmem:[%s469 + $0xa0] sm:$0xff]
        %v587 = vld [vmem:[%s469 + $0xa8] sm:$0xff]
        %v588 = vld [vmem:[%s469 + $0xb0] sm:$0xff]
        %v589 = vld [vmem:[%s469 + $0xb8] sm:$0xff]
        %v590 = vld [vmem:[%s469 + $0xc0] sm:$0xff]
        %v591 = vld [vmem:[%s469 + $0xc8] sm:$0xff]
        %v592 = vld [vmem:[%s469 + $0xd0] sm:$0xff]
        %v593 = vld [vmem:[%s469 + $0xd8] sm:$0xff]
        %v594 = vld [vmem:[%s469 + $0xe0] sm:$0xff]
        %v595 = vld [vmem:[%s469 + $0xe8] sm:$0xff]
        %v596 = vld [vmem:[%s469 + $0xf0] sm:$0xff]
        %v597 = vld [vmem:[%s469 + $0xf8] sm:$0xff]
        %v598 = vld [vmem:[%s469 + $0x100] sm:$0xff]
        %v599 = vld [vmem:[%s469 + $0x108] sm:$0xff]
        %v600 = vld [vmem:[%s469 + $0x110] sm:$0xff]
        %v601 = vld [vmem:[%s469 + $0x118] sm:$0xff]
        %v602 = vld [vmem:[%s469 + $0x120] sm:$0xff]
        %v603 = vld [vmem:[%s469 + $0x128] sm:$0xff]
        %v604 = vld [vmem:[%s469 + $0x130] sm:$0xff]
        %v605 = vld [vmem:[%s469 + $0x138] sm:$0xff]
        %v606 = vld [vmem:[%s469 + $0x140] sm:$0xff]
        %v607 = vld [vmem:[%s469 + $0x148] sm:$0xff]
        %v608 = vld [vmem:[%s469 + $0x150] sm:$0xff]
        %v609 = vld [vmem:[%s469 + $0x158] sm:$0xff]
        %v610 = vld [vmem:[%s469 + $0x160] sm:$0xff]
        %v611 = vld [vmem:[%s469 + $0x168] sm:$0xff]
        %v612 = vld [vmem:[%s469 + $0x170] sm:$0xff]
        %v613 = vld [vmem:[%s469 + $0x178] sm:$0xff]
        %v614 = vld [vmem:[%s469 + $0x180] sm:$0xff]
        %v615 = vld [vmem:[%s469 + $0x188] sm:$0xff]
        %v616 = vld [vmem:[%s469 + $0x190] sm:$0xff]
        %v617 = vld [vmem:[%s469 + $0x198] sm:$0xff]
        %v618 = vld [vmem:[%s469 + $0x1a0] sm:$0xff]
        %v619 = vld [vmem:[%s469 + $0x1a8] sm:$0xff]
        %v620 = vld [vmem:[%s469 + $0x1b0] sm:$0xff]
        %v621 = vld [vmem:[%s469 + $0x1b8] sm:$0xff]
        %v622 = vld [vmem:[%s469 + $0x1c0] sm:$0xff]
        %v623 = vld [vmem:[%s469 + $0x1c8] sm:$0xff]
        %v624 = vld [vmem:[%s469 + $0x1d0] sm:$0xff]
        %v625 = vld [vmem:[%s469 + $0x1d8] sm:$0xff]
        %v626 = vld [vmem:[%s469 + $0x1e0] sm:$0xff]
        %v627 = vld [vmem:[%s469 + $0x1e8] sm:$0xff]
        %v628 = vld [vmem:[%s469 + $0x1f0] sm:$0xff]
        %v629 = vld [vmem:[%s469 + $0x1f8] sm:$0xff]
        %v630 = vld [vmem:[%s478] sm:$0xf]
        %v631 = vld [vmem:[%s478 + $0x4] sm:$0xf]
        %v632 = vld [vmem:[%s478 + $0x8] sm:$0xf]
        %v633 = vld [vmem:[%s478 + $0xc] sm:$0xf]
        %v634 = vld [vmem:[%s478 + $0x10] sm:$0xf]
        %v635 = vld [vmem:[%s478 + $0x14] sm:$0xf]
        %v636 = vld [vmem:[%s478 + $0x18] sm:$0xf]
        %v637 = vld [vmem:[%s478 + $0x1c] sm:$0xf]
        %v638 = vld [vmem:[%s478 + $0x20] sm:$0xf]
        %v639 = vld [vmem:[%s478 + $0x24] sm:$0xf]
        %v640 = vld [vmem:[%s478 + $0x28] sm:$0xf]
        %v641 = vld [vmem:[%s478 + $0x2c] sm:$0xf]
        %v642 = vld [vmem:[%s478 + $0x30] sm:$0xf]
        %v643 = vld [vmem:[%s478 + $0x34] sm:$0xf]
        %v644 = vld [vmem:[%s478 + $0x38] sm:$0xf]
        %v645 = vld [vmem:[%s478 + $0x3c] sm:$0xf]
        %v646 = vld [vmem:[%s2] sm:$0xf]
        %v647 = vld [vmem:[%s2 + $0x4] sm:$0xf]
        %v648 = vld [vmem:[%s2 + $0x8] sm:$0xf]
        %v649 = vld [vmem:[%s2 + $0xc] sm:$0xf]
        %v650 = vld [vmem:[%s2 + $0x10] sm:$0xf]
        %v651 = vld [vmem:[%s2 + $0x14] sm:$0xf]
        %v652 = vld [vmem:[%s2 + $0x18] sm:$0xf]
        %v653 = vld [vmem:[%s2 + $0x1c] sm:$0xf]
        %v654 = vld [vmem:[%s2 + $0x20] sm:$0xf]
        %v655 = vld [vmem:[%s2 + $0x24] sm:$0xf]
        %v656 = vld [vmem:[%s2 + $0x28] sm:$0xf]
        %v657 = vld [vmem:[%s2 + $0x2c] sm:$0xf]
        %v658 = vld [vmem:[%s2 + $0x30] sm:$0xf]
        %v659 = vld [vmem:[%s2 + $0x34] sm:$0xf]
        %v660 = vld [vmem:[%s2 + $0x38] sm:$0xf]
        %v661 = vld [vmem:[%s2 + $0x3c] sm:$0xf]
        %v662 = vld [vmem:[%s2 + $0x40] sm:$0xf]
        %v663 = vld [vmem:[%s2 + $0x44] sm:$0xf]
        %v664 = vld [vmem:[%s2 + $0x48] sm:$0xf]
        %v665 = vld [vmem:[%s2 + $0x4c] sm:$0xf]
        %v666 = vld [vmem:[%s2 + $0x50] sm:$0xf]
        %v667 = vld [vmem:[%s2 + $0x54] sm:$0xf]
        %v668 = vld [vmem:[%s2 + $0x58] sm:$0xf]
        %v669 = vld [vmem:[%s2 + $0x5c] sm:$0xf]
        %v670 = vld [vmem:[%s2 + $0x60] sm:$0xf]
        %v671 = vld [vmem:[%s2 + $0x64] sm:$0xf]
        %v672 = vld [vmem:[%s2 + $0x68] sm:$0xf]
        %v673 = vld [vmem:[%s2 + $0x6c] sm:$0xf]
        %v674 = vld [vmem:[%s2 + $0x70] sm:$0xf]
        %v675 = vld [vmem:[%s2 + $0x74] sm:$0xf]
        %v676 = vld [vmem:[%s2 + $0x78] sm:$0xf]
        %v677 = vld [vmem:[%s2 + $0x7c] sm:$0xf]
        %v678 = vld [vmem:[%s2 + $0x80] sm:$0xf]
        %v679 = vld [vmem:[%s2 + $0x84] sm:$0xf]
        %v680 = vld [vmem:[%s2 + $0x88] sm:$0xf]
        %v681 = vld [vmem:[%s2 + $0x8c] sm:$0xf]
        %v682 = vld [vmem:[%s2 + $0x90] sm:$0xf]
        %v683 = vld [vmem:[%s2 + $0x94] sm:$0xf]
        %v684 = vld [vmem:[%s2 + $0x98] sm:$0xf]
        %v685 = vld [vmem:[%s2 + $0x9c] sm:$0xf]
        %v686 = vld [vmem:[%s2 + $0xa0] sm:$0xf]
        %v687 = vld [vmem:[%s2 + $0xa4] sm:$0xf]
        %v688 = vld [vmem:[%s2 + $0xa8] sm:$0xf]
        %v689 = vld [vmem:[%s2 + $0xac] sm:$0xf]
        %v690 = vld [vmem:[%s2 + $0xb0] sm:$0xf]
        %v691 = vld [vmem:[%s2 + $0xb4] sm:$0xf]
        %v692 = vld [vmem:[%s2 + $0xb8] sm:$0xf]
        %v693 = vld [vmem:[%s2 + $0xbc] sm:$0xf]
        %v694 = vld [vmem:[%s2 + $0xc0] sm:$0xf]
        %v695 = vld [vmem:[%s2 + $0xc4] sm:$0xf]
        %v696 = vld [vmem:[%s2 + $0xc8] sm:$0xf]
        %v697 = vld [vmem:[%s2 + $0xcc] sm:$0xf]
        %v698 = vld [vmem:[%s2 + $0xd0] sm:$0xf]
        %v699 = vld [vmem:[%s2 + $0xd4] sm:$0xf]
        %v700 = vld [vmem:[%s2 + $0xd8] sm:$0xf]
        %v701 = vld [vmem:[%s2 + $0xdc] sm:$0xf]
        %v702 = vld [vmem:[%s2 + $0xe0] sm:$0xf]
        %v703 = vld [vmem:[%s2 + $0xe4] sm:$0xf]
        %v704 = vld [vmem:[%s2 + $0xe8] sm:$0xf]
        %v705 = vld [vmem:[%s2 + $0xec] sm:$0xf]
        %v706 = vld [vmem:[%s2 + $0xf0] sm:$0xf]
        %v707 = vld [vmem:[%s2 + $0xf4] sm:$0xf]
        %v708 = vld [vmem:[%s2 + $0xf8] sm:$0xf]
        %v709 = vld [vmem:[%s2 + $0xfc] sm:$0xf]
        %v710 = vld [vmem:[%s2 + $0x100] sm:$0xf]
        %v711 = vld [vmem:[%s2 + $0x104] sm:$0xf]
        %v712 = vld [vmem:[%s2 + $0x108] sm:$0xf]
        %v713 = vld [vmem:[%s2 + $0x10c] sm:$0xf]
        %v714 = vld [vmem:[%s2 + $0x110] sm:$0xf]
        %v715 = vld [vmem:[%s2 + $0x114] sm:$0xf]
        %v716 = vld [vmem:[%s2 + $0x118] sm:$0xf]
        %v717 = vld [vmem:[%s2 + $0x11c] sm:$0xf]
        %v718 = vld [vmem:[%s2 + $0x120] sm:$0xf]
        %v719 = vld [vmem:[%s2 + $0x124] sm:$0xf]
        %v720 = vld [vmem:[%s2 + $0x128] sm:$0xf]
        %v721 = vld [vmem:[%s2 + $0x12c] sm:$0xf]
        %v722 = vld [vmem:[%s2 + $0x130] sm:$0xf]
        %v723 = vld [vmem:[%s2 + $0x134] sm:$0xf]
        %v724 = vld [vmem:[%s2 + $0x138] sm:$0xf]
        %v725 = vld [vmem:[%s2 + $0x13c] sm:$0xf]
        %v726 = vld [vmem:[%s2 + $0x140] sm:$0xf]
        %v727 = vld [vmem:[%s2 + $0x144] sm:$0xf]
        %v728 = vld [vmem:[%s2 + $0x148] sm:$0xf]
        %v729 = vld [vmem:[%s2 + $0x14c] sm:$0xf]
        %v730 = vld [vmem:[%s2 + $0x150] sm:$0xf]
        %v731 = vld [vmem:[%s2 + $0x154] sm:$0xf]
        %v732 = vld [vmem:[%s2 + $0x158] sm:$0xf]
        %v733 = vld [vmem:[%s2 + $0x15c] sm:$0xf]
        %v734 = vld [vmem:[%s2 + $0x160] sm:$0xf]
        %v735 = vld [vmem:[%s2 + $0x164] sm:$0xf]
        %v736 = vld [vmem:[%s2 + $0x168] sm:$0xf]
        %v737 = vld [vmem:[%s2 + $0x16c] sm:$0xf]
        %v738 = vld [vmem:[%s2 + $0x170] sm:$0xf]
        %v739 = vld [vmem:[%s2 + $0x174] sm:$0xf]
        %v740 = vld [vmem:[%s2 + $0x178] sm:$0xf]
        %v741 = vld [vmem:[%s2 + $0x17c] sm:$0xf]
        %v742 = vld [vmem:[%s2 + $0x180] sm:$0xf]
        %v743 = vld [vmem:[%s2 + $0x184] sm:$0xf]
        %v744 = vld [vmem:[%s2 + $0x188] sm:$0xf]
        %v745 = vld [vmem:[%s2 + $0x18c] sm:$0xf]
        %v746 = vld [vmem:[%s2 + $0x190] sm:$0xf]
        %v747 = vld [vmem:[%s2 + $0x194] sm:$0xf]
        %v748 = vld [vmem:[%s2 + $0x198] sm:$0xf]
        %v749 = vld [vmem:[%s2 + $0x19c] sm:$0xf]
        %v750 = vld [vmem:[%s2 + $0x1a0] sm:$0xf]
        %v751 = vld [vmem:[%s2 + $0x1a4] sm:$0xf]
        %v752 = vld [vmem:[%s2 + $0x1a8] sm:$0xf]
        %v753 = vld [vmem:[%s2 + $0x1ac] sm:$0xf]
        %v754 = vld [vmem:[%s2 + $0x1b0] sm:$0xf]
        %v755 = vld [vmem:[%s2 + $0x1b4] sm:$0xf]
        %v756 = vld [vmem:[%s2 + $0x1b8] sm:$0xf]
        %v757 = vld [vmem:[%s2 + $0x1bc] sm:$0xf]
        %v758 = vld [vmem:[%s2 + $0x1c0] sm:$0xf]
        %v759 = vld [vmem:[%s2 + $0x1c4] sm:$0xf]
        %v760 = vld [vmem:[%s2 + $0x1c8] sm:$0xf]
        %v761 = vld [vmem:[%s2 + $0x1cc] sm:$0xf]
        %v762 = vld [vmem:[%s2 + $0x1d0] sm:$0xf]
        %v763 = vld [vmem:[%s2 + $0x1d4] sm:$0xf]
        %v764 = vld [vmem:[%s2 + $0x1d8] sm:$0xf]
        %v765 = vld [vmem:[%s2 + $0x1dc] sm:$0xf]
        %v766 = vld [vmem:[%s2 + $0x1e0] sm:$0xf]
        %v767 = vld [vmem:[%s2 + $0x1e4] sm:$0xf]
        %v768 = vld [vmem:[%s2 + $0x1e8] sm:$0xf]
        %v769 = vld [vmem:[%s2 + $0x1ec] sm:$0xf]
        %v770 = vld [vmem:[%s2 + $0x1f0] sm:$0xf]
        %v771 = vld [vmem:[%s2 + $0x1f4] sm:$0xf]
        %v772 = vld [vmem:[%s2 + $0x1f8] sm:$0xf]
        %v773 = vld [vmem:[%s2 + $0x1fc] sm:$0xf]
        %v774 = vld [vmem:[%s3] sm:$0x1]
        %v776 = vlaneseq
        %v777 = vshrl.u32 %v776, 7
        %v778 = vsub.s32 0, %v777
        %v779 = vrot.slane %v774, %v778
        %v845 = vunpack.c.l.b16 %v566
        %v846 = vunpack.c.h.b16 %v566
        %v847 = vunpack.c.l.b16 %v567
        %v848 = vunpack.c.h.b16 %v567
        %v849 = vunpack.c.l.b16 %v568
        %v850 = vunpack.c.h.b16 %v568
        %v851 = vunpack.c.l.b16 %v569
        %v852 = vunpack.c.h.b16 %v569
        %v853 = vunpack.c.l.b16 %v570
        %v854 = vunpack.c.h.b16 %v570
        %v855 = vunpack.c.l.b16 %v571
        %v856 = vunpack.c.h.b16 %v571
        %v857 = vunpack.c.l.b16 %v572
        %v858 = vunpack.c.h.b16 %v572
        %v859 = vunpack.c.l.b16 %v573
        %v860 = vunpack.c.h.b16 %v573
        %v861 = vunpack.c.l.b16 %v574
        %v862 = vunpack.c.h.b16 %v574
        %v863 = vunpack.c.l.b16 %v575
        %v864 = vunpack.c.h.b16 %v575
        %v865 = vunpack.c.l.b16 %v576
        %v866 = vunpack.c.h.b16 %v576
        %v867 = vunpack.c.l.b16 %v577
        %v868 = vunpack.c.h.b16 %v577
        %v869 = vunpack.c.l.b16 %v578
        %v870 = vunpack.c.h.b16 %v578
        %v871 = vunpack.c.l.b16 %v579
        %v872 = vunpack.c.h.b16 %v579
        %v873 = vunpack.c.l.b16 %v580
        %v874 = vunpack.c.h.b16 %v580
        %v875 = vunpack.c.l.b16 %v581
        %v876 = vunpack.c.h.b16 %v581
        %v877 = vunpack.c.l.b16 %v582
        %v878 = vunpack.c.h.b16 %v582
        %v879 = vunpack.c.l.b16 %v583
        %v880 = vunpack.c.h.b16 %v583
        %v881 = vunpack.c.l.b16 %v584
        %v882 = vunpack.c.h.b16 %v584
        %v883 = vunpack.c.l.b16 %v585
        %v884 = vunpack.c.h.b16 %v585
        %v885 = vunpack.c.l.b16 %v586
        %v886 = vunpack.c.h.b16 %v586
        %v887 = vunpack.c.l.b16 %v587
        %v888 = vunpack.c.h.b16 %v587
        %v889 = vunpack.c.l.b16 %v588
        %v890 = vunpack.c.h.b16 %v588
        %v891 = vunpack.c.l.b16 %v589
        %v892 = vunpack.c.h.b16 %v589
        %v893 = vunpack.c.l.b16 %v590
        %v894 = vunpack.c.h.b16 %v590
        %v895 = vunpack.c.l.b16 %v591
        %v896 = vunpack.c.h.b16 %v591
        %v897 = vunpack.c.l.b16 %v592
        %v898 = vunpack.c.h.b16 %v592
        %v899 = vunpack.c.l.b16 %v593
        %v900 = vunpack.c.h.b16 %v593
        %v901 = vunpack.c.l.b16 %v594
        %v902 = vunpack.c.h.b16 %v594
        %v903 = vunpack.c.l.b16 %v595
        %v904 = vunpack.c.h.b16 %v595
        %v905 = vunpack.c.l.b16 %v596
        %v906 = vunpack.c.h.b16 %v596
        %v907 = vunpack.c.l.b16 %v597
        %v908 = vunpack.c.h.b16 %v597
        %v909 = vunpack.c.l.b16 %v598
        %v910 = vunpack.c.h.b16 %v598
        %v911 = vunpack.c.l.b16 %v599
        %v912 = vunpack.c.h.b16 %v599
        %v913 = vunpack.c.l.b16 %v600
        %v914 = vunpack.c.h.b16 %v600
        %v915 = vunpack.c.l.b16 %v601
        %v916 = vunpack.c.h.b16 %v601
        %v917 = vunpack.c.l.b16 %v602
        %v918 = vunpack.c.h.b16 %v602
        %v919 = vunpack.c.l.b16 %v603
        %v920 = vunpack.c.h.b16 %v603
        %v921 = vunpack.c.l.b16 %v604
        %v922 = vunpack.c.h.b16 %v604
        %v923 = vunpack.c.l.b16 %v605
        %v924 = vunpack.c.h.b16 %v605
        %v925 = vunpack.c.l.b16 %v606
        %v926 = vunpack.c.h.b16 %v606
        %v927 = vunpack.c.l.b16 %v607
        %v928 = vunpack.c.h.b16 %v607
        %v929 = vunpack.c.l.b16 %v608
        %v930 = vunpack.c.h.b16 %v608
        %v931 = vunpack.c.l.b16 %v609
        %v932 = vunpack.c.h.b16 %v609
        %v933 = vunpack.c.l.b16 %v610
        %v934 = vunpack.c.h.b16 %v610
        %v935 = vunpack.c.l.b16 %v611
        %v936 = vunpack.c.h.b16 %v611
        %v937 = vunpack.c.l.b16 %v612
        %v938 = vunpack.c.h.b16 %v612
        %v939 = vunpack.c.l.b16 %v613
        %v940 = vunpack.c.h.b16 %v613
        %v941 = vunpack.c.l.b16 %v614
        %v942 = vunpack.c.h.b16 %v614
        %v943 = vunpack.c.l.b16 %v615
        %v944 = vunpack.c.h.b16 %v615
        %v945 = vunpack.c.l.b16 %v616
        %v946 = vunpack.c.h.b16 %v616
        %v947 = vunpack.c.l.b16 %v617
        %v948 = vunpack.c.h.b16 %v617
        %v949 = vunpack.c.l.b16 %v618
        %v950 = vunpack.c.h.b16 %v618
        %v951 = vunpack.c.l.b16 %v619
        %v952 = vunpack.c.h.b16 %v619
        %v953 = vunpack.c.l.b16 %v620
        %v954 = vunpack.c.h.b16 %v620
        %v955 = vunpack.c.l.b16 %v621
        %v956 = vunpack.c.h.b16 %v621
        %v957 = vunpack.c.l.b16 %v622
        %v958 = vunpack.c.h.b16 %v622
        %v959 = vunpack.c.l.b16 %v623
        %v960 = vunpack.c.h.b16 %v623
        %v961 = vunpack.c.l.b16 %v624
        %v962 = vunpack.c.h.b16 %v624
        %v963 = vunpack.c.l.b16 %v625
        %v964 = vunpack.c.h.b16 %v625
        %v965 = vunpack.c.l.b16 %v626
        %v966 = vunpack.c.h.b16 %v626
        %v967 = vunpack.c.l.b16 %v627
        %v968 = vunpack.c.h.b16 %v627
        %v969 = vunpack.c.l.b16 %v628
        %v970 = vunpack.c.h.b16 %v628
        %v971 = vunpack.c.l.b16 %v629
        %v972 = vunpack.c.h.b16 %v629
        %v973 = vpack.c.b16 %v853, %v845
        %v974 = vpack.c.b16 %v854, %v846
        %v975 = vpack.c.b16 %v855, %v847
        %v976 = vpack.c.b16 %v856, %v848
        %v977 = vpack.c.b16 %v857, %v849
        %v978 = vpack.c.b16 %v858, %v850
        %v979 = vpack.c.b16 %v859, %v851
        %v980 = vpack.c.b16 %v860, %v852
        %v981 = vpack.c.b16 %v869, %v861
        %v982 = vpack.c.b16 %v870, %v862
        %v983 = vpack.c.b16 %v871, %v863
        %v984 = vpack.c.b16 %v872, %v864
        %v985 = vpack.c.b16 %v873, %v865
        %v986 = vpack.c.b16 %v874, %v866
        %v987 = vpack.c.b16 %v875, %v867
        %v988 = vpack.c.b16 %v876, %v868
        %v989 = vpack.c.b16 %v885, %v877
        %v990 = vpack.c.b16 %v886, %v878
        %v991 = vpack.c.b16 %v887, %v879
        %v992 = vpack.c.b16 %v888, %v880
        %v993 = vpack.c.b16 %v889, %v881
        %v994 = vpack.c.b16 %v890, %v882
        %v995 = vpack.c.b16 %v891, %v883
        %v996 = vpack.c.b16 %v892, %v884
        %v997 = vpack.c.b16 %v901, %v893
        %v998 = vpack.c.b16 %v902, %v894
        %v999 = vpack.c.b16 %v903, %v895
        %v1000 = vpack.c.b16 %v904, %v896
        %v1001 = vpack.c.b16 %v905, %v897
        %v1002 = vpack.c.b16 %v906, %v898
        %v1003 = vpack.c.b16 %v907, %v899
        %v1004 = vpack.c.b16 %v908, %v900
        %v1005 = vpack.c.b16 %v917, %v909
        %v1006 = vpack.c.b16 %v918, %v910
        %v1007 = vpack.c.b16 %v919, %v911
        %v1008 = vpack.c.b16 %v920, %v912
        %v1009 = vpack.c.b16 %v921, %v913
        %v1010 = vpack.c.b16 %v922, %v914
        %v1011 = vpack.c.b16 %v923, %v915
        %v1012 = vpack.c.b16 %v924, %v916
        %v1013 = vpack.c.b16 %v933, %v925
        %v1014 = vpack.c.b16 %v934, %v926
        %v1015 = vpack.c.b16 %v935, %v927
        %v1016 = vpack.c.b16 %v936, %v928
        %v1017 = vpack.c.b16 %v937, %v929
        %v1018 = vpack.c.b16 %v938, %v930
        %v1019 = vpack.c.b16 %v939, %v931
        %v1020 = vpack.c.b16 %v940, %v932
        %v1021 = vpack.c.b16 %v949, %v941
        %v1022 = vpack.c.b16 %v950, %v942
        %v1023 = vpack.c.b16 %v951, %v943
        %v1024 = vpack.c.b16 %v952, %v944
        %v1025 = vpack.c.b16 %v953, %v945
        %v1026 = vpack.c.b16 %v954, %v946
        %v1027 = vpack.c.b16 %v955, %v947
        %v1028 = vpack.c.b16 %v956, %v948
        %v1029 = vpack.c.b16 %v965, %v957
        %v1030 = vpack.c.b16 %v966, %v958
        %v1031 = vpack.c.b16 %v967, %v959
        %v1032 = vpack.c.b16 %v968, %v960
        %v1033 = vpack.c.b16 %v969, %v961
        %v1034 = vpack.c.b16 %v970, %v962
        %v1035 = vpack.c.b16 %v971, %v963
        %v1036 = vpack.c.b16 %v972, %v964
        %v1229 = vunpack.c.l.b16 %v646
        %v1230 = vunpack.c.l.b16 %v647
        %v1231 = vunpack.c.l.b16 %v648
        %v1232 = vunpack.c.l.b16 %v649
        %v1233 = vunpack.c.l.b16 %v650
        %v1234 = vunpack.c.l.b16 %v651
        %v1235 = vunpack.c.l.b16 %v652
        %v1236 = vunpack.c.l.b16 %v653
        %v1237 = vunpack.c.l.b16 %v654
        %v1238 = vunpack.c.l.b16 %v655
        %v1239 = vunpack.c.l.b16 %v656
        %v1240 = vunpack.c.l.b16 %v657
        %v1241 = vunpack.c.l.b16 %v658
        %v1242 = vunpack.c.l.b16 %v659
        %v1243 = vunpack.c.l.b16 %v660
        %v1244 = vunpack.c.l.b16 %v661
        %v1245 = vunpack.c.l.b16 %v662
        %v1246 = vunpack.c.l.b16 %v663
        %v1247 = vunpack.c.l.b16 %v664
        %v1248 = vunpack.c.l.b16 %v665
        %v1249 = vunpack.c.l.b16 %v666
        %v1250 = vunpack.c.l.b16 %v667
        %v1251 = vunpack.c.l.b16 %v668
        %v1252 = vunpack.c.l.b16 %v669
        %v1253 = vunpack.c.l.b16 %v670
        %v1254 = vunpack.c.l.b16 %v671
        %v1255 = vunpack.c.l.b16 %v672
        %v1256 = vunpack.c.l.b16 %v673
        %v1257 = vunpack.c.l.b16 %v674
        %v1258 = vunpack.c.l.b16 %v675
        %v1259 = vunpack.c.l.b16 %v676
        %v1260 = vunpack.c.l.b16 %v677
        %v1261 = vunpack.c.l.b16 %v678
        %v1262 = vunpack.c.l.b16 %v679
        %v1263 = vunpack.c.l.b16 %v680
        %v1264 = vunpack.c.l.b16 %v681
        %v1265 = vunpack.c.l.b16 %v682
        %v1266 = vunpack.c.l.b16 %v683
        %v1267 = vunpack.c.l.b16 %v684
        %v1268 = vunpack.c.l.b16 %v685
        %v1269 = vunpack.c.l.b16 %v686
        %v1270 = vunpack.c.l.b16 %v687
        %v1271 = vunpack.c.l.b16 %v688
        %v1272 = vunpack.c.l.b16 %v689
        %v1273 = vunpack.c.l.b16 %v690
        %v1274 = vunpack.c.l.b16 %v691
        %v1275 = vunpack.c.l.b16 %v692
        %v1276 = vunpack.c.l.b16 %v693
        %v1277 = vunpack.c.l.b16 %v694
        %v1278 = vunpack.c.l.b16 %v695
        %v1279 = vunpack.c.l.b16 %v696
        %v1280 = vunpack.c.l.b16 %v697
        %v1281 = vunpack.c.l.b16 %v698
        %v1282 = vunpack.c.l.b16 %v699
        %v1283 = vunpack.c.l.b16 %v700
        %v1284 = vunpack.c.l.b16 %v701
        %v1285 = vunpack.c.l.b16 %v702
        %v1286 = vunpack.c.l.b16 %v703
        %v1287 = vunpack.c.l.b16 %v704
        %v1288 = vunpack.c.l.b16 %v705
        %v1289 = vunpack.c.l.b16 %v706
        %v1290 = vunpack.c.l.b16 %v707
        %v1291 = vunpack.c.l.b16 %v708
        %v1292 = vunpack.c.l.b16 %v709
        %v1293 = vunpack.c.l.b16 %v710
        %v1294 = vunpack.c.l.b16 %v711
        %v1295 = vunpack.c.l.b16 %v712
        %v1296 = vunpack.c.l.b16 %v713
        %v1297 = vunpack.c.l.b16 %v714
        %v1298 = vunpack.c.l.b16 %v715
        %v1299 = vunpack.c.l.b16 %v716
        %v1300 = vunpack.c.l.b16 %v717
        %v1301 = vunpack.c.l.b16 %v718
        %v1302 = vunpack.c.l.b16 %v719
        %v1303 = vunpack.c.l.b16 %v720
        %v1304 = vunpack.c.l.b16 %v721
        %v1305 = vunpack.c.l.b16 %v722
        %v1306 = vunpack.c.l.b16 %v723
        %v1307 = vunpack.c.l.b16 %v724
        %v1308 = vunpack.c.l.b16 %v725
        %v1309 = vunpack.c.l.b16 %v726
        %v1310 = vunpack.c.l.b16 %v727
        %v1311 = vunpack.c.l.b16 %v728
        %v1312 = vunpack.c.l.b16 %v729
        %v1313 = vunpack.c.l.b16 %v730
        %v1314 = vunpack.c.l.b16 %v731
        %v1315 = vunpack.c.l.b16 %v732
        %v1316 = vunpack.c.l.b16 %v733
        %v1317 = vunpack.c.l.b16 %v734
        %v1318 = vunpack.c.l.b16 %v735
        %v1319 = vunpack.c.l.b16 %v736
        %v1320 = vunpack.c.l.b16 %v737
        %v1321 = vunpack.c.l.b16 %v738
        %v1322 = vunpack.c.l.b16 %v739
        %v1323 = vunpack.c.l.b16 %v740
        %v1324 = vunpack.c.l.b16 %v741
        %v1325 = vunpack.c.l.b16 %v742
        %v1326 = vunpack.c.l.b16 %v743
        %v1327 = vunpack.c.l.b16 %v744
        %v1328 = vunpack.c.l.b16 %v745
        %v1329 = vunpack.c.l.b16 %v746
        %v1330 = vunpack.c.l.b16 %v747
        %v1331 = vunpack.c.l.b16 %v748
        %v1332 = vunpack.c.l.b16 %v749
        %v1333 = vunpack.c.l.b16 %v750
        %v1334 = vunpack.c.l.b16 %v751
        %v1335 = vunpack.c.l.b16 %v752
        %v1336 = vunpack.c.l.b16 %v753
        %v1337 = vunpack.c.l.b16 %v754
        %v1338 = vunpack.c.l.b16 %v755
        %v1339 = vunpack.c.l.b16 %v756
        %v1340 = vunpack.c.l.b16 %v757
        %v1341 = vunpack.c.l.b16 %v758
        %v1342 = vunpack.c.l.b16 %v759
        %v1343 = vunpack.c.l.b16 %v760
        %v1344 = vunpack.c.l.b16 %v761
        %v1345 = vunpack.c.l.b16 %v762
        %v1346 = vunpack.c.l.b16 %v763
        %v1347 = vunpack.c.l.b16 %v764
        %v1348 = vunpack.c.l.b16 %v765
        %v1349 = vunpack.c.l.b16 %v766
        %v1350 = vunpack.c.l.b16 %v767
        %v1351 = vunpack.c.l.b16 %v768
        %v1352 = vunpack.c.l.b16 %v769
        %v1353 = vunpack.c.l.b16 %v770
        %v1354 = vunpack.c.l.b16 %v771
        %v1355 = vunpack.c.l.b16 %v772
        %v1356 = vunpack.c.l.b16 %v773
        %v1357 = vpack.c.b16 %v1230, %v1229
        %v1358 = vpack.c.b16 %v1232, %v1231
        %v1359 = vpack.c.b16 %v1234, %v1233
        %v1360 = vpack.c.b16 %v1236, %v1235
        %v1361 = vpack.c.b16 %v1238, %v1237
        %v1362 = vpack.c.b16 %v1240, %v1239
        %v1363 = vpack.c.b16 %v1242, %v1241
        %v1364 = vpack.c.b16 %v1244, %v1243
        %v1365 = vpack.c.b16 %v1246, %v1245
        %v1366 = vpack.c.b16 %v1248, %v1247
        %v1367 = vpack.c.b16 %v1250, %v1249
        %v1368 = vpack.c.b16 %v1252, %v1251
        %v1369 = vpack.c.b16 %v1254, %v1253
        %v1370 = vpack.c.b16 %v1256, %v1255
        %v1371 = vpack.c.b16 %v1258, %v1257
        %v1372 = vpack.c.b16 %v1260, %v1259
        %v1373 = vpack.c.b16 %v1262, %v1261
        %v1374 = vpack.c.b16 %v1264, %v1263
        %v1375 = vpack.c.b16 %v1266, %v1265
        %v1376 = vpack.c.b16 %v1268, %v1267
        %v1377 = vpack.c.b16 %v1270, %v1269
        %v1378 = vpack.c.b16 %v1272, %v1271
        %v1379 = vpack.c.b16 %v1274, %v1273
        %v1380 = vpack.c.b16 %v1276, %v1275
        %v1381 = vpack.c.b16 %v1278, %v1277
        %v1382 = vpack.c.b16 %v1280, %v1279
        %v1383 = vpack.c.b16 %v1282, %v1281
        %v1384 = vpack.c.b16 %v1284, %v1283
        %v1385 = vpack.c.b16 %v1286, %v1285
        %v1386 = vpack.c.b16 %v1288, %v1287
        %v1387 = vpack.c.b16 %v1290, %v1289
        %v1388 = vpack.c.b16 %v1292, %v1291
        %v1389 = vpack.c.b16 %v1294, %v1293
        %v1390 = vpack.c.b16 %v1296, %v1295
        %v1391 = vpack.c.b16 %v1298, %v1297
        %v1392 = vpack.c.b16 %v1300, %v1299
        %v1393 = vpack.c.b16 %v1302, %v1301
        %v1394 = vpack.c.b16 %v1304, %v1303
        %v1395 = vpack.c.b16 %v1306, %v1305
        %v1396 = vpack.c.b16 %v1308, %v1307
        %v1397 = vpack.c.b16 %v1310, %v1309
        %v1398 = vpack.c.b16 %v1312, %v1311
        %v1399 = vpack.c.b16 %v1314, %v1313
        %v1400 = vpack.c.b16 %v1316, %v1315
        %v1401 = vpack.c.b16 %v1318, %v1317
        %v1402 = vpack.c.b16 %v1320, %v1319
        %v1403 = vpack.c.b16 %v1322, %v1321
        %v1404 = vpack.c.b16 %v1324, %v1323
        %v1405 = vpack.c.b16 %v1326, %v1325
        %v1406 = vpack.c.b16 %v1328, %v1327
        %v1407 = vpack.c.b16 %v1330, %v1329
        %v1408 = vpack.c.b16 %v1332, %v1331
        %v1409 = vpack.c.b16 %v1334, %v1333
        %v1410 = vpack.c.b16 %v1336, %v1335
        %v1411 = vpack.c.b16 %v1338, %v1337
        %v1412 = vpack.c.b16 %v1340, %v1339
        %v1413 = vpack.c.b16 %v1342, %v1341
        %v1414 = vpack.c.b16 %v1344, %v1343
        %v1415 = vpack.c.b16 %v1346, %v1345
        %v1416 = vpack.c.b16 %v1348, %v1347
        %v1417 = vpack.c.b16 %v1350, %v1349
        %v1418 = vpack.c.b16 %v1352, %v1351
        %v1419 = vpack.c.b16 %v1354, %v1353
        %v1420 = vpack.c.b16 %v1356, %v1355
        %1485 = vmatprep.subr.bf16.mxu0 0
        %1486 = vmatpush1.bf16.msra.mxu0 %v1357
        %1487 = vmatprep.subr.bf16.mxu0 0
        %1488 = vmatpush1.bf16.msra.mxu0 %v1358
        %1489 = vmatprep.subr.bf16.mxu0 0
        %1490 = vmatpush1.bf16.msra.mxu0 %v1359
        %1491 = vmatprep.subr.bf16.mxu0 0
        %1492 = vmatpush1.bf16.msra.mxu0 %v1360
        %1493 = vmatprep.subr.bf16.mxu0 0
        %1494 = vmatpush1.bf16.msra.mxu0 %v1361
        %1495 = vmatprep.subr.bf16.mxu0 0
        %1496 = vmatpush1.bf16.msra.mxu0 %v1362
        %1497 = vmatprep.subr.bf16.mxu0 0
        %1498 = vmatpush1.bf16.msra.mxu0 %v1363
        %1499 = vmatprep.subr.bf16.mxu0 0
        %1500 = vmatpush1.bf16.msra.mxu0 %v1364
        %1501 = vmatprep.subr.bf16.mxu0 0
        %1502 = vmatpush1.bf16.msra.mxu0 %v1365
        %1503 = vmatprep.subr.bf16.mxu0 0
        %1504 = vmatpush1.bf16.msra.mxu0 %v1366
        %1505 = vmatprep.subr.bf16.mxu0 0
        %1506 = vmatpush1.bf16.msra.mxu0 %v1367
        %1507 = vmatprep.subr.bf16.mxu0 0
        %1508 = vmatpush1.bf16.msra.mxu0 %v1368
        %1509 = vmatprep.subr.bf16.mxu0 0
        %1510 = vmatpush1.bf16.msra.mxu0 %v1369
        %1511 = vmatprep.subr.bf16.mxu0 0
        %1512 = vmatpush1.bf16.msra.mxu0 %v1370
        %1513 = vmatprep.subr.bf16.mxu0 0
        %1514 = vmatpush1.bf16.msra.mxu0 %v1371
        %1515 = vmatprep.subr.bf16.mxu0 0
        %1516 = vmatpush1.bf16.msra.mxu0 %v1372
        %1517 = vmatprep.mubr.bf16.mxu0 %v974
        %1518 = vmatmul.mubr.bf16.gmra.mrb[0].mxu0 %v973
        %v1519 = vpop.f32.mrb[0].mxu0
        %v1520 = vadd.f32 %v779, %v1519
        %v1521 = vpop.f32.mrb[0].mxu0
        %v1522 = vpop.f32.mrb[0].mxu0
        %v1523 = vadd.f32 %v779, %v1522
        %v1524 = vpop.f32.mrb[0].mxu0
        %1525 = vmatprep.mubr.bf16.mxu0 %v982
        %1526 = vmatmul.mubr.bf16.gmra.mrb[0].mxu0 %v981
        %v1527 = vpop.f32.mrb[0].mxu0
        %v1528 = vadd.f32 %v779, %v1527
        %v1529 = vpop.f32.mrb[0].mxu0
        %v1530 = vpop.f32.mrb[0].mxu0
        %v1531 = vadd.f32 %v779, %v1530
        %v1532 = vpop.f32.mrb[0].mxu0
        %1533 = vmatprep.mubr.bf16.mxu0 %v990
        %1534 = vmatmul.mubr.bf16.gmra.mrb[0].mxu0 %v989
        %v1535 = vpop.f32.mrb[0].mxu0
        %v1536 = vadd.f32 %v779, %v1535
        %v1537 = vpop.f32.mrb[0].mxu0
        %v1538 = vpop.f32.mrb[0].mxu0
        %v1539 = vadd.f32 %v779, %v1538
        %v1540 = vpop.f32.mrb[0].mxu0
        %1541 = vmatprep.mubr.bf16.mxu0 %v998
        %1542 = vmatmul.mubr.bf16.gmra.mrb[0].mxu0 %v997
        %v1543 = vpop.f32.mrb[0].mxu0
        %v1544 = vadd.f32 %v779, %v1543
        %v1545 = vpop.f32.mrb[0].mxu0
        %v1546 = vpop.f32.mrb[0].mxu0
        %v1547 = vadd.f32 %v779, %v1546
        %v1548 = vpop.f32.mrb[0].mxu0
        %1549 = vmatprep.mubr.bf16.mxu0 %v1006
        %1550 = vmatmul.mubr.bf16.gmra.mrb[0].mxu0 %v1005
        %v1551 = vpop.f32.mrb[0].mxu0
        %v1552 = vadd.f32 %v779, %v1551
        %v1553 = vpop.f32.mrb[0].mxu0
        %v1554 = vpop.f32.mrb[0].mxu0
        %v1555 = vadd.f32 %v779, %v1554
        %v1556 = vpop.f32.mrb[0].mxu0
        %1557 = vmatprep.mubr.bf16.mxu0 %v1014
        %1558 = vmatmul.mubr.bf16.gmra.mrb[0].mxu0 %v1013
        %v1559 = vpop.f32.mrb[0].mxu0
        %v1560 = vadd.f32 %v779, %v1559
        %v1561 = vpop.f32.mrb[0].mxu0
        %v1562 = vpop.f32.mrb[0].mxu0
        %v1563 = vadd.f32 %v779, %v1562
        %v1564 = vpop.f32.mrb[0].mxu0
        %1565 = vmatprep.mubr.bf16.mxu0 %v1022
        %1566 = vmatmul.mubr.bf16.gmra.mrb[0].mxu0 %v1021
        %v1567 = vpop.f32.mrb[0].mxu0
        %v1568 = vadd.f32 %v779, %v1567
        %v1569 = vpop.f32.mrb[0].mxu0
        %v1570 = vpop.f32.mrb[0].mxu0
        %v1571 = vadd.f32 %v779, %v1570
        %v1572 = vpop.f32.mrb[0].mxu0
        %1573 = vmatprep.mubr.bf16.mxu0 %v1030
        %1574 = vmatmul.mubr.bf16.gmra.mrb[0].mxu0 %v1029
        %v1575 = vpop.f32.mrb[0].mxu0
        %v1576 = vadd.f32 %v779, %v1575
        %v1577 = vpop.f32.mrb[0].mxu0
        %v1578 = vpop.f32.mrb[0].mxu0
        %v1579 = vadd.f32 %v779, %v1578
        %v1580 = vpop.f32.mrb[0].mxu0
        %1581 = vdwg.mxu0
        %1582 = vmatprep.subr.bf16.mxu0 0
        %1583 = vmatpush1.bf16.msra.mxu0 %v1373
        %1584 = vmatprep.subr.bf16.mxu0 0
        %1585 = vmatpush1.bf16.msra.mxu0 %v1374
        %1586 = vmatprep.subr.bf16.mxu0 0
        %1587 = vmatpush1.bf16.msra.mxu0 %v1375
        %1588 = vmatprep.subr.bf16.mxu0 0
        %1589 = vmatpush1.bf16.msra.mxu0 %v1376
        %1590 = vmatprep.subr.bf16.mxu0 0
        %1591 = vmatpush1.bf16.msra.mxu0 %v1377
        %1592 = vmatprep.subr.bf16.mxu0 0
        %1593 = vmatpush1.bf16.msra.mxu0 %v1378
        %1594 = vmatprep.subr.bf16.mxu0 0
        %1595 = vmatpush1.bf16.msra.mxu0 %v1379
        %1596 = vmatprep.subr.bf16.mxu0 0
        %1597 = vmatpush1.bf16.msra.mxu0 %v1380
        %1598 = vmatprep.subr.bf16.mxu0 0
        %1599 = vmatpush1.bf16.msra.mxu0 %v1381
        %1600 = vmatprep.subr.bf16.mxu0 0
        %1601 = vmatpush1.bf16.msra.mxu0 %v1382
        %1602 = vmatprep.subr.bf16.mxu0 0
        %1603 = vmatpush1.bf16.msra.mxu0 %v1383
        %1604 = vmatprep.subr.bf16.mxu0 0
        %1605 = vmatpush1.bf16.msra.mxu0 %v1384
        %1606 = vmatprep.subr.bf16.mxu0 0
        %1607 = vmatpush1.bf16.msra.mxu0 %v1385
        %1608 = vmatprep.subr.bf16.mxu0 0
        %1609 = vmatpush1.bf16.msra.mxu0 %v1386
        %1610 = vmatprep.subr.bf16.mxu0 0
        %1611 = vmatpush1.bf16.msra.mxu0 %v1387
        %1612 = vmatprep.subr.bf16.mxu0 0
        %1613 = vmatpush1.bf16.msra.mxu0 %v1388
        %1614 = vmatprep.mubr.bf16.mxu0 %v976
        %1615 = vmatmul.mubr.bf16.gmra.mrb[0].mxu0 %v975
        %v1616 = vpop.f32.mrb[0].mxu0
        %v1617 = vadd.f32 %v1520, %v1616
        %v1618 = vpop.f32.mrb[0].mxu0
        %v1619 = vpop.f32.mrb[0].mxu0
        %v1620 = vadd.f32 %v1523, %v1619
        %v1621 = vpop.f32.mrb[0].mxu0
        %1622 = vmatprep.mubr.bf16.mxu0 %v984
        %1623 = vmatmul.mubr.bf16.gmra.mrb[0].mxu0 %v983
        %v1624 = vpop.f32.mrb[0].mxu0
        %v1625 = vadd.f32 %v1528, %v1624
        %v1626 = vpop.f32.mrb[0].mxu0
        %v1627 = vpop.f32.mrb[0].mxu0
        %v1628 = vadd.f32 %v1531, %v1627
        %v1629 = vpop.f32.mrb[0].mxu0
        %1630 = vmatprep.mubr.bf16.mxu0 %v992
        %1631 = vmatmul.mubr.bf16.gmra.mrb[0].mxu0 %v991
        %v1632 = vpop.f32.mrb[0].mxu0
        %v1633 = vadd.f32 %v1536, %v1632
        %v1634 = vpop.f32.mrb[0].mxu0
        %v1635 = vpop.f32.mrb[0].mxu0
        %v1636 = vadd.f32 %v1539, %v1635
        %v1637 = vpop.f32.mrb[0].mxu0
        %1638 = vmatprep.mubr.bf16.mxu0 %v1000
        %1639 = vmatmul.mubr.bf16.gmra.mrb[0].mxu0 %v999
        %v1640 = vpop.f32.mrb[0].mxu0
        %v1641 = vadd.f32 %v1544, %v1640
        %v1642 = vpop.f32.mrb[0].mxu0
        %v1643 = vpop.f32.mrb[0].mxu0
        %v1644 = vadd.f32 %v1547, %v1643
        %v1645 = vpop.f32.mrb[0].mxu0
        %1646 = vmatprep.mubr.bf16.mxu0 %v1008
        %1647 = vmatmul.mubr.bf16.gmra.mrb[0].mxu0 %v1007
        %v1648 = vpop.f32.mrb[0].mxu0
        %v1649 = vadd.f32 %v1552, %v1648
        %v1650 = vpop.f32.mrb[0].mxu0
        %v1651 = vpop.f32.mrb[0].mxu0
        %v1652 = vadd.f32 %v1555, %v1651
        %v1653 = vpop.f32.mrb[0].mxu0
        %1654 = vmatprep.mubr.bf16.mxu0 %v1016
        %1655 = vmatmul.mubr.bf16.gmra.mrb[0].mxu0 %v1015
        %v1656 = vpop.f32.mrb[0].mxu0
        %v1657 = vadd.f32 %v1560, %v1656
        %v1658 = vpop.f32.mrb[0].mxu0
        %v1659 = vpop.f32.mrb[0].mxu0
        %v1660 = vadd.f32 %v1563, %v1659
        %v1661 = vpop.f32.mrb[0].mxu0
        %1662 = vmatprep.mubr.bf16.mxu0 %v1024
        %1663 = vmatmul.mubr.bf16.gmra.mrb[0].mxu0 %v1023
        %v1664 = vpop.f32.mrb[0].mxu0
        %v1665 = vadd.f32 %v1568, %v1664
        %v1666 = vpop.f32.mrb[0].mxu0
        %v1667 = vpop.f32.mrb[0].mxu0
        %v1668 = vadd.f32 %v1571, %v1667
        %v1669 = vpop.f32.mrb[0].mxu0
        %1670 = vmatprep.mubr.bf16.mxu0 %v1032
        %1671 = vmatmul.mubr.bf16.gmra.mrb[0].mxu0 %v1031
        %v1672 = vpop.f32.mrb[0].mxu0
        %v1673 = vadd.f32 %v1576, %v1672
        %v1674 = vpop.f32.mrb[0].mxu0
        %v1675 = vpop.f32.mrb[0].mxu0
        %v1676 = vadd.f32 %v1579, %v1675
        %v1677 = vpop.f32.mrb[0].mxu0
        %1678 = vdwg.mxu0
        %1679 = vmatprep.subr.bf16.mxu0 0
        %1680 = vmatpush1.bf16.msra.mxu0 %v1389
        %1681 = vmatprep.subr.bf16.mxu0 0
        %1682 = vmatpush1.bf16.msra.mxu0 %v1390
        %1683 = vmatprep.subr.bf16.mxu0 0
        %1684 = vmatpush1.bf16.msra.mxu0 %v1391
        %1685 = vmatprep.subr.bf16.mxu0 0
        %1686 = vmatpush1.bf16.msra.mxu0 %v1392
        %1687 = vmatprep.subr.bf16.mxu0 0
        %1688 = vmatpush1.bf16.msra.mxu0 %v1393
        %1689 = vmatprep.subr.bf16.mxu0 0
        %1690 = vmatpush1.bf16.msra.mxu0 %v1394
        %1691 = vmatprep.subr.bf16.mxu0 0
        %1692 = vmatpush1.bf16.msra.mxu0 %v1395
        %1693 = vmatprep.subr.bf16.mxu0 0
        %1694 = vmatpush1.bf16.msra.mxu0 %v1396
        %1695 = vmatprep.subr.bf16.mxu0 0
        %1696 = vmatpush1.bf16.msra.mxu0 %v1397
        %1697 = vmatprep.subr.bf16.mxu0 0
        %1698 = vmatpush1.bf16.msra.mxu0 %v1398
        %1699 = vmatprep.subr.bf16.mxu0 0
        %1700 = vmatpush1.bf16.msra.mxu0 %v1399
        %1701 = vmatprep.subr.bf16.mxu0 0
        %1702 = vmatpush1.bf16.msra.mxu0 %v1400
        %1703 = vmatprep.subr.bf16.mxu0 0
        %1704 = vmatpush1.bf16.msra.mxu0 %v1401
        %1705 = vmatprep.subr.bf16.mxu0 0
        %1706 = vmatpush1.bf16.msra.mxu0 %v1402
        %1707 = vmatprep.subr.bf16.mxu0 0
        %1708 = vmatpush1.bf16.msra.mxu0 %v1403
        %1709 = vmatprep.subr.bf16.mxu0 0
        %1710 = vmatpush1.bf16.msra.mxu0 %v1404
        %1711 = vmatprep.mubr.bf16.mxu0 %v978
        %1712 = vmatmul.mubr.bf16.gmra.mrb[0].mxu0 %v977
        %v1713 = vpop.f32.mrb[0].mxu0
        %v1714 = vadd.f32 %v1617, %v1713
        %v1715 = vpop.f32.mrb[0].mxu0
        %v1716 = vpop.f32.mrb[0].mxu0
        %v1717 = vadd.f32 %v1620, %v1716
        %v1718 = vpop.f32.mrb[0].mxu0
        %1719 = vmatprep.mubr.bf16.mxu0 %v986
        %1720 = vmatmul.mubr.bf16.gmra.mrb[0].mxu0 %v985
        %v1721 = vpop.f32.mrb[0].mxu0
        %v1722 = vadd.f32 %v1625, %v1721
        %v1723 = vpop.f32.mrb[0].mxu0
        %v1724 = vpop.f32.mrb[0].mxu0
        %v1725 = vadd.f32 %v1628, %v1724
        %v1726 = vpop.f32.mrb[0].mxu0
        %1727 = vmatprep.mubr.bf16.mxu0 %v994
        %1728 = vmatmul.mubr.bf16.gmra.mrb[0].mxu0 %v993
        %v1729 = vpop.f32.mrb[0].mxu0
        %v1730 = vadd.f32 %v1633, %v1729
        %v1731 = vpop.f32.mrb[0].mxu0
        %v1732 = vpop.f32.mrb[0].mxu0
        %v1733 = vadd.f32 %v1636, %v1732
        %v1734 = vpop.f32.mrb[0].mxu0
        %1735 = vmatprep.mubr.bf16.mxu0 %v1002
        %1736 = vmatmul.mubr.bf16.gmra.mrb[0].mxu0 %v1001
        %v1737 = vpop.f32.mrb[0].mxu0
        %v1738 = vadd.f32 %v1641, %v1737
        %v1739 = vpop.f32.mrb[0].mxu0
        %v1740 = vpop.f32.mrb[0].mxu0
        %v1741 = vadd.f32 %v1644, %v1740
        %v1742 = vpop.f32.mrb[0].mxu0
        %1743 = vmatprep.mubr.bf16.mxu0 %v1010
        %1744 = vmatmul.mubr.bf16.gmra.mrb[0].mxu0 %v1009
        %v1745 = vpop.f32.mrb[0].mxu0
        %v1746 = vadd.f32 %v1649, %v1745
        %v1747 = vpop.f32.mrb[0].mxu0
        %v1748 = vpop.f32.mrb[0].mxu0
        %v1749 = vadd.f32 %v1652, %v1748
        %v1750 = vpop.f32.mrb[0].mxu0
        %1751 = vmatprep.mubr.bf16.mxu0 %v1018
        %1752 = vmatmul.mubr.bf16.gmra.mrb[0].mxu0 %v1017
        %v1753 = vpop.f32.mrb[0].mxu0
        %v1754 = vadd.f32 %v1657, %v1753
        %v1755 = vpop.f32.mrb[0].mxu0
        %v1756 = vpop.f32.mrb[0].mxu0
        %v1757 = vadd.f32 %v1660, %v1756
        %v1758 = vpop.f32.mrb[0].mxu0
        %1759 = vmatprep.mubr.bf16.mxu0 %v1026
        %1760 = vmatmul.mubr.bf16.gmra.mrb[0].mxu0 %v1025
        %v1761 = vpop.f32.mrb[0].mxu0
        %v1762 = vadd.f32 %v1665, %v1761
        %v1763 = vpop.f32.mrb[0].mxu0
        %v1764 = vpop.f32.mrb[0].mxu0
        %v1765 = vadd.f32 %v1668, %v1764
        %v1766 = vpop.f32.mrb[0].mxu0
        %1767 = vmatprep.mubr.bf16.mxu0 %v1034
        %1768 = vmatmul.mubr.bf16.gmra.mrb[0].mxu0 %v1033
        %v1769 = vpop.f32.mrb[0].mxu0
        %v1770 = vadd.f32 %v1673, %v1769
        %v1771 = vpop.f32.mrb[0].mxu0
        %v1772 = vpop.f32.mrb[0].mxu0
        %v1773 = vadd.f32 %v1676, %v1772
        %v1774 = vpop.f32.mrb[0].mxu0
        %1775 = vdwg.mxu0
        %1776 = vmatprep.subr.bf16.mxu0 0
        %1777 = vmatpush1.bf16.msra.mxu0 %v1405
        %1778 = vmatprep.subr.bf16.mxu0 0
        %1779 = vmatpush1.bf16.msra.mxu0 %v1406
        %1780 = vmatprep.subr.bf16.mxu0 0
        %1781 = vmatpush1.bf16.msra.mxu0 %v1407
        %1782 = vmatprep.subr.bf16.mxu0 0
        %1783 = vmatpush1.bf16.msra.mxu0 %v1408
        %1784 = vmatprep.subr.bf16.mxu0 0
        %1785 = vmatpush1.bf16.msra.mxu0 %v1409
        %1786 = vmatprep.subr.bf16.mxu0 0
        %1787 = vmatpush1.bf16.msra.mxu0 %v1410
        %1788 = vmatprep.subr.bf16.mxu0 0
        %1789 = vmatpush1.bf16.msra.mxu0 %v1411
        %1790 = vmatprep.subr.bf16.mxu0 0
        %1791 = vmatpush1.bf16.msra.mxu0 %v1412
        %1792 = vmatprep.subr.bf16.mxu0 0
        %1793 = vmatpush1.bf16.msra.mxu0 %v1413
        %1794 = vmatprep.subr.bf16.mxu0 0
        %1795 = vmatpush1.bf16.msra.mxu0 %v1414
        %1796 = vmatprep.subr.bf16.mxu0 0
        %1797 = vmatpush1.bf16.msra.mxu0 %v1415
        %1798 = vmatprep.subr.bf16.mxu0 0
        %1799 = vmatpush1.bf16.msra.mxu0 %v1416
        %1800 = vmatprep.subr.bf16.mxu0 0
        %1801 = vmatpush1.bf16.msra.mxu0 %v1417
        %1802 = vmatprep.subr.bf16.mxu0 0
        %1803 = vmatpush1.bf16.msra.mxu0 %v1418
        %1804 = vmatprep.subr.bf16.mxu0 0
        %1805 = vmatpush1.bf16.msra.mxu0 %v1419
        %1806 = vmatprep.subr.bf16.mxu0 0
        %1807 = vmatpush1.bf16.msra.mxu0 %v1420
        %1808 = vmatprep.mubr.bf16.mxu0 %v980
        %1809 = vmatmul.mubr.bf16.gmra.mrb[0].mxu0 %v979
        %v1810 = vpop.f32.mrb[0].mxu0
        %v1811 = vadd.f32 %v1714, %v1810
        %v1812 = vpop.f32.mrb[0].mxu0
        %v1813 = vpop.f32.mrb[0].mxu0
        %v1814 = vadd.f32 %v1717, %v1813
        %v1815 = vpop.f32.mrb[0].mxu0
        %1816 = vmatprep.mubr.bf16.mxu0 %v988
        %1817 = vmatmul.mubr.bf16.gmra.mrb[0].mxu0 %v987
        %v1818 = vpop.f32.mrb[0].mxu0
        %v1819 = vadd.f32 %v1722, %v1818
        %v1820 = vpop.f32.mrb[0].mxu0
        %v1821 = vpop.f32.mrb[0].mxu0
        %v1822 = vadd.f32 %v1725, %v1821
        %v1823 = vpop.f32.mrb[0].mxu0
        %1824 = vmatprep.mubr.bf16.mxu0 %v996
        %1825 = vmatmul.mubr.bf16.gmra.mrb[0].mxu0 %v995
        %v1826 = vpop.f32.mrb[0].mxu0
        %v1827 = vadd.f32 %v1730, %v1826
        %v1828 = vpop.f32.mrb[0].mxu0
        %v1829 = vpop.f32.mrb[0].mxu0
        %v1830 = vadd.f32 %v1733, %v1829
        %v1831 = vpop.f32.mrb[0].mxu0
        %1832 = vmatprep.mubr.bf16.mxu0 %v1004
        %1833 = vmatmul.mubr.bf16.gmra.mrb[0].mxu0 %v1003
        %v1834 = vpop.f32.mrb[0].mxu0
        %v1835 = vadd.f32 %v1738, %v1834
        %v1836 = vpop.f32.mrb[0].mxu0
        %v1837 = vpop.f32.mrb[0].mxu0
        %v1838 = vadd.f32 %v1741, %v1837
        %v1839 = vpop.f32.mrb[0].mxu0
        %1840 = vmatprep.mubr.bf16.mxu0 %v1012
        %1841 = vmatmul.mubr.bf16.gmra.mrb[0].mxu0 %v1011
        %v1842 = vpop.f32.mrb[0].mxu0
        %v1843 = vadd.f32 %v1746, %v1842
        %v1844 = vpop.f32.mrb[0].mxu0
        %v1845 = vpop.f32.mrb[0].mxu0
        %v1846 = vadd.f32 %v1749, %v1845
        %v1847 = vpop.f32.mrb[0].mxu0
        %1848 = vmatprep.mubr.bf16.mxu0 %v1020
        %1849 = vmatmul.mubr.bf16.gmra.mrb[0].mxu0 %v1019
        %v1850 = vpop.f32.mrb[0].mxu0
        %v1851 = vadd.f32 %v1754, %v1850
        %v1852 = vpop.f32.mrb[0].mxu0
        %v1853 = vpop.f32.mrb[0].mxu0
        %v1854 = vadd.f32 %v1757, %v1853
        %v1855 = vpop.f32.mrb[0].mxu0
        %1856 = vmatprep.mubr.bf16.mxu0 %v1028
        %1857 = vmatmul.mubr.bf16.gmra.mrb[0].mxu0 %v1027
        %v1858 = vpop.f32.mrb[0].mxu0
        %v1859 = vadd.f32 %v1762, %v1858
        %v1860 = vpop.f32.mrb[0].mxu0
        %v1861 = vpop.f32.mrb[0].mxu0
        %v1862 = vadd.f32 %v1765, %v1861
        %v1863 = vpop.f32.mrb[0].mxu0
        %1864 = vmatprep.mubr.bf16.mxu0 %v1036
        %1865 = vmatmul.mubr.bf16.gmra.mrb[0].mxu0 %v1035
        %v1866 = vpop.f32.mrb[0].mxu0
        %v1867 = vadd.f32 %v1770, %v1866
        %v1868 = vpop.f32.mrb[0].mxu0
        %v1869 = vpop.f32.mrb[0].mxu0
        %v1870 = vadd.f32 %v1773, %v1869
        %v1871 = vpop.f32.mrb[0].mxu0
        %1872 = vdwg.mxu0
        %v1873 = vpack.c.bf16 %v1814, %v1811
        %v1874 = vpack.c.bf16 %v1822, %v1819
        %v1875 = vpack.c.bf16 %v1830, %v1827
        %v1876 = vpack.c.bf16 %v1838, %v1835
        %v1877 = vpack.c.bf16 %v1846, %v1843
        %v1878 = vpack.c.bf16 %v1854, %v1851
        %v1879 = vpack.c.bf16 %v1862, %v1859
        %v1880 = vpack.c.bf16 %v1870, %v1867
        %v1881 = vld [vmem:[#allocation7] sm:$0xf]
        %v1882 = vld [vmem:[#allocation7 + $0x4] sm:$0xf]
        %v1883 = vld [vmem:[#allocation7 + $0x8] sm:$0xf]
        %v1884 = vld [vmem:[#allocation7 + $0xc] sm:$0xf]
        %v1885 = vld [vmem:[#allocation7 + $0x10] sm:$0xf]
        %v1886 = vld [vmem:[#allocation7 + $0x14] sm:$0xf]
        %v1887 = vld [vmem:[#allocation7 + $0x18] sm:$0xf]
        %v1888 = vld [vmem:[#allocation7 + $0x1c] sm:$0xf]
        %v1889 = vld [vmem:[#allocation7 + $0x20] sm:$0xf]
        %v1890 = vld [vmem:[#allocation7 + $0x24] sm:$0xf]
        %v1891 = vld [vmem:[#allocation7 + $0x28] sm:$0xf]
        %v1892 = vld [vmem:[#allocation7 + $0x2c] sm:$0xf]
        %v1893 = vld [vmem:[#allocation7 + $0x30] sm:$0xf]
        %v1894 = vld [vmem:[#allocation7 + $0x34] sm:$0xf]
        %v1895 = vld [vmem:[#allocation7 + $0x38] sm:$0xf]
        %v1896 = vld [vmem:[#allocation7 + $0x3c] sm:$0xf]
        %v1913 = vunpack.c.l.b16 %v1881
        %v1914 = vunpack.c.l.b16 %v1882
        %v1915 = vunpack.c.l.b16 %v1883
        %v1916 = vunpack.c.l.b16 %v1884
        %v1917 = vunpack.c.l.b16 %v1885
        %v1918 = vunpack.c.l.b16 %v1886
        %v1919 = vunpack.c.l.b16 %v1887
        %v1920 = vunpack.c.l.b16 %v1888
        %v1921 = vunpack.c.l.b16 %v1889
        %v1922 = vunpack.c.l.b16 %v1890
        %v1923 = vunpack.c.l.b16 %v1891
        %v1924 = vunpack.c.l.b16 %v1892
        %v1925 = vunpack.c.l.b16 %v1893
        %v1926 = vunpack.c.l.b16 %v1894
        %v1927 = vunpack.c.l.b16 %v1895
        %v1928 = vunpack.c.l.b16 %v1896
        %v1929 = vpack.c.b16 %v1914, %v1913
        %v1930 = vpack.c.b16 %v1916, %v1915
        %v1931 = vpack.c.b16 %v1918, %v1917
        %v1932 = vpack.c.b16 %v1920, %v1919
        %v1933 = vpack.c.b16 %v1922, %v1921
        %v1934 = vpack.c.b16 %v1924, %v1923
        %v1935 = vpack.c.b16 %v1926, %v1925
        %v1936 = vpack.c.b16 %v1928, %v1927
        %1945 = vmatprep.subr.bf16.mxu0 0
        %1946 = vmatpush1.bf16.msra.mxu0 %v1929
        %1947 = vmatprep.subr.bf16.mxu0 0
        %1948 = vmatpush1.bf16.msra.mxu0 %v1930
        %1949 = vmatprep.subr.bf16.mxu0 0
        %1950 = vmatpush1.bf16.msra.mxu0 %v1931
        %1951 = vmatprep.subr.bf16.mxu0 0
        %1952 = vmatpush1.bf16.msra.mxu0 %v1932
        %1953 = vmatprep.subr.bf16.mxu0 0
        %1954 = vmatpush1.bf16.msra.mxu0 %v1933
        %1955 = vmatprep.subr.bf16.mxu0 0
        %1956 = vmatpush1.bf16.msra.mxu0 %v1934
        %1957 = vmatprep.subr.bf16.mxu0 0
        %1958 = vmatpush1.bf16.msra.mxu0 %v1935
        %1959 = vmatprep.subr.bf16.mxu0 0
        %1960 = vmatpush1.bf16.msra.mxu0 %v1936
        %1961 = vmatprep.subr.bf16.mxu0 0
        %1962 = vmatpush1.bf16.msra.mxu0 0
        %1963 = vmatprep.subr.bf16.mxu0 0
        %1964 = vmatpush1.bf16.msra.mxu0 0
        %1965 = vmatprep.subr.bf16.mxu0 0
        %1966 = vmatpush1.bf16.msra.mxu0 0
        %1967 = vmatprep.subr.bf16.mxu0 0
        %1968 = vmatpush1.bf16.msra.mxu0 0
        %1969 = vmatprep.subr.bf16.mxu0 0
        %1970 = vmatpush1.bf16.msra.mxu0 0
        %1971 = vmatprep.subr.bf16.mxu0 0
        %1972 = vmatpush1.bf16.msra.mxu0 0
        %1973 = vmatprep.subr.bf16.mxu0 0
        %1974 = vmatpush1.bf16.msra.mxu0 0
        %1975 = vmatprep.subr.bf16.mxu0 0
        %1976 = vmatpush1.bf16.msra.mxu0 0
        %1977 = vmatprep.mubr.bf16.mxu0 0
        %1978 = vmatmul.mubr.bf16.gmra.mrb[0].mxu0 %v1873
        %v1979 = vpop.f32.mrb[0].mxu0
        %v1980 = vadd.f32 0.0, %v1979
        %v1981 = vpop.f32.mrb[0].mxu0
        %v1982 = vpop.f32.mrb[0].mxu0
        %v1983 = vadd.f32 0.0, %v1982
        %v1984 = vpop.f32.mrb[0].mxu0
        %1985 = vmatprep.mubr.bf16.mxu0 0
        %1986 = vmatmul.mubr.bf16.gmra.mrb[0].mxu0 %v1874
        %v1987 = vpop.f32.mrb[0].mxu0
        %v1988 = vadd.f32 0.0, %v1987
        %v1989 = vpop.f32.mrb[0].mxu0
        %v1990 = vpop.f32.mrb[0].mxu0
        %v1991 = vadd.f32 0.0, %v1990
        %v1992 = vpop.f32.mrb[0].mxu0
        %1993 = vmatprep.mubr.bf16.mxu0 0
        %1994 = vmatmul.mubr.bf16.gmra.mrb[0].mxu0 %v1875
        %v1995 = vpop.f32.mrb[0].mxu0
        %v1996 = vadd.f32 0.0, %v1995
        %v1997 = vpop.f32.mrb[0].mxu0
        %v1998 = vpop.f32.mrb[0].mxu0
        %v1999 = vadd.f32 0.0, %v1998
        %v2000 = vpop.f32.mrb[0].mxu0
        %2001 = vmatprep.mubr.bf16.mxu0 0
        %2002 = vmatmul.mubr.bf16.gmra.mrb[0].mxu0 %v1876
        %v2003 = vpop.f32.mrb[0].mxu0
        %v2004 = vadd.f32 0.0, %v2003
        %v2005 = vpop.f32.mrb[0].mxu0
        %v2006 = vpop.f32.mrb[0].mxu0
        %v2007 = vadd.f32 0.0, %v2006
        %v2008 = vpop.f32.mrb[0].mxu0
        %2009 = vmatprep.mubr.bf16.mxu0 0
        %2010 = vmatmul.mubr.bf16.gmra.mrb[0].mxu0 %v1877
        %v2011 = vpop.f32.mrb[0].mxu0
        %v2012 = vadd.f32 0.0, %v2011
        %v2013 = vpop.f32.mrb[0].mxu0
        %v2014 = vpop.f32.mrb[0].mxu0
        %v2015 = vadd.f32 0.0, %v2014
        %v2016 = vpop.f32.mrb[0].mxu0
        %2017 = vmatprep.mubr.bf16.mxu0 0
        %2018 = vmatmul.mubr.bf16.gmra.mrb[0].mxu0 %v1878
        %v2019 = vpop.f32.mrb[0].mxu0
        %v2020 = vadd.f32 0.0, %v2019
        %v2021 = vpop.f32.mrb[0].mxu0
        %v2022 = vpop.f32.mrb[0].mxu0
        %v2023 = vadd.f32 0.0, %v2022
        %v2024 = vpop.f32.mrb[0].mxu0
        %2025 = vmatprep.mubr.bf16.mxu0 0
        %2026 = vmatmul.mubr.bf16.gmra.mrb[0].mxu0 %v1879
        %v2027 = vpop.f32.mrb[0].mxu0
        %v2028 = vadd.f32 0.0, %v2027
        %v2029 = vpop.f32.mrb[0].mxu0
        %v2030 = vpop.f32.mrb[0].mxu0
        %v2031 = vadd.f32 0.0, %v2030
        %v2032 = vpop.f32.mrb[0].mxu0
        %2033 = vmatprep.mubr.bf16.mxu0 0
        %2034 = vmatmul.mubr.bf16.gmra.mrb[0].mxu0 %v1880
        %v2035 = vpop.f32.mrb[0].mxu0
        %v2036 = vadd.f32 0.0, %v2035
        %v2037 = vpop.f32.mrb[0].mxu0
        %v2038 = vpop.f32.mrb[0].mxu0
        %v2039 = vadd.f32 0.0, %v2038
        %v2040 = vpop.f32.mrb[0].mxu0
        %2041 = vdwg.mxu0
        %v2042 = vpack.c.bf16 %v1983, %v1980
        %v2043 = vpack.c.bf16 %v1991, %v1988
        %v2044 = vpack.c.bf16 %v1999, %v1996
        %v2045 = vpack.c.bf16 %v2007, %v2004
        %v2046 = vpack.c.bf16 %v2015, %v2012
        %v2047 = vpack.c.bf16 %v2023, %v2020
        %v2048 = vpack.c.bf16 %v2031, %v2028
        %v2049 = vpack.c.bf16 %v2039, %v2036
        %v2050 = vld [vmem:[%s5] sm:$0x1]
        %v2052 = vlaneseq
        %v2053 = vshrl.u32 %v2052, 7
        %v2054 = vsub.s32 0, %v2053
        %v2055 = vrot.slane %v2050, %v2054
        %v2073 = vunpack.c.l.b16 %v630
        %v2074 = vunpack.c.l.b16 %v631
        %v2075 = vunpack.c.l.b16 %v632
        %v2076 = vunpack.c.l.b16 %v633
        %v2077 = vunpack.c.l.b16 %v634
        %v2078 = vunpack.c.l.b16 %v635
        %v2079 = vunpack.c.l.b16 %v636
        %v2080 = vunpack.c.l.b16 %v637
        %v2081 = vunpack.c.l.b16 %v638
        %v2082 = vunpack.c.l.b16 %v639
        %v2083 = vunpack.c.l.b16 %v640
        %v2084 = vunpack.c.l.b16 %v641
        %v2085 = vunpack.c.l.b16 %v642
        %v2086 = vunpack.c.l.b16 %v643
        %v2087 = vunpack.c.l.b16 %v644
        %v2088 = vunpack.c.l.b16 %v645
        %v2089 = vpack.c.b16 %v2074, %v2073
        %v2090 = vpack.c.b16 %v2076, %v2075
        %v2091 = vpack.c.b16 %v2078, %v2077
        %v2092 = vpack.c.b16 %v2080, %v2079
        %v2093 = vpack.c.b16 %v2082, %v2081
        %v2094 = vpack.c.b16 %v2084, %v2083
        %v2095 = vpack.c.b16 %v2086, %v2085
        %v2096 = vpack.c.b16 %v2088, %v2087
        %2105 = vmatprep.subr.bf16.mxu0 0
        %2106 = vmatpush1.bf16.msra.mxu0 %v2042
        %2107 = vmatprep.subr.bf16.mxu0 0
        %2108 = vmatpush1.bf16.msra.mxu0 %v2043
        %2109 = vmatprep.subr.bf16.mxu0 0
        %2110 = vmatpush1.bf16.msra.mxu0 %v2044
        %2111 = vmatprep.subr.bf16.mxu0 0
        %2112 = vmatpush1.bf16.msra.mxu0 %v2045
        %2113 = vmatprep.subr.bf16.mxu0 0
        %2114 = vmatpush1.bf16.msra.mxu0 %v2046
        %2115 = vmatprep.subr.bf16.mxu0 0
        %2116 = vmatpush1.bf16.msra.mxu0 %v2047
        %2117 = vmatprep.subr.bf16.mxu0 0
        %2118 = vmatpush1.bf16.msra.mxu0 %v2048
        %2119 = vmatprep.subr.bf16.mxu0 0
        %2120 = vmatpush1.bf16.msra.mxu0 %v2049
        %2121 = vmatprep.subr.bf16.mxu0 0
        %2122 = vmatpush1.bf16.msra.mxu0 0
        %2123 = vmatprep.subr.bf16.mxu0 0
        %2124 = vmatpush1.bf16.msra.mxu0 0
        %2125 = vmatprep.subr.bf16.mxu0 0
        %2126 = vmatpush1.bf16.msra.mxu0 0
        %2127 = vmatprep.subr.bf16.mxu0 0
        %2128 = vmatpush1.bf16.msra.mxu0 0
        %2129 = vmatprep.subr.bf16.mxu0 0
        %2130 = vmatpush1.bf16.msra.mxu0 0
        %2131 = vmatprep.subr.bf16.mxu0 0
        %2132 = vmatpush1.bf16.msra.mxu0 0
        %2133 = vmatprep.subr.bf16.mxu0 0
        %2134 = vmatpush1.bf16.msra.mxu0 0
        %2135 = vmatprep.subr.bf16.mxu0 0
        %2136 = vmatpush1.bf16.msra.mxu0 0
        %2137 = vmatprep.mubr.bf16.mxu0 0
        %2138 = vmatmul.mubr.bf16.gmra.mrb[0].mxu0 %v2089
        %v2139 = vpop.f32.mrb[0].mxu0
        %v2140 = vadd.f32 %v2055, %v2139
        %v2141 = vpop.f32.mrb[0].mxu0
        %v2142 = vpop.f32.mrb[0].mxu0
        %v2143 = vadd.f32 %v2055, %v2142
        %v2144 = vpop.f32.mrb[0].mxu0
        %2145 = vmatprep.mubr.bf16.mxu0 0
        %2146 = vmatmul.mubr.bf16.gmra.mrb[0].mxu0 %v2090
        %v2147 = vpop.f32.mrb[0].mxu0
        %v2148 = vadd.f32 %v2055, %v2147
        %v2149 = vpop.f32.mrb[0].mxu0
        %v2150 = vpop.f32.mrb[0].mxu0
        %v2151 = vadd.f32 %v2055, %v2150
        %v2152 = vpop.f32.mrb[0].mxu0
        %2153 = vmatprep.mubr.bf16.mxu0 0
        %2154 = vmatmul.mubr.bf16.gmra.mrb[0].mxu0 %v2091
        %v2155 = vpop.f32.mrb[0].mxu0
        %v2156 = vadd.f32 %v2055, %v2155
        %v2157 = vpop.f32.mrb[0].mxu0
        %v2158 = vpop.f32.mrb[0].mxu0
        %v2159 = vadd.f32 %v2055, %v2158
        %v2160 = vpop.f32.mrb[0].mxu0
        %2161 = vmatprep.mubr.bf16.mxu0 0
        %2162 = vmatmul.mubr.bf16.gmra.mrb[0].mxu0 %v2092
        %v2163 = vpop.f32.mrb[0].mxu0
        %v2164 = vadd.f32 %v2055, %v2163
        %v2165 = vpop.f32.mrb[0].mxu0
        %v2166 = vpop.f32.mrb[0].mxu0
        %v2167 = vadd.f32 %v2055, %v2166
        %v2168 = vpop.f32.mrb[0].mxu0
        %2169 = vmatprep.mubr.bf16.mxu0 0
        %2170 = vmatmul.mubr.bf16.gmra.mrb[0].mxu0 %v2093
        %v2171 = vpop.f32.mrb[0].mxu0
        %v2172 = vadd.f32 %v2055, %v2171
        %v2173 = vpop.f32.mrb[0].mxu0
        %v2174 = vpop.f32.mrb[0].mxu0
        %v2175 = vadd.f32 %v2055, %v2174
        %v2176 = vpop.f32.mrb[0].mxu0
        %2177 = vmatprep.mubr.bf16.mxu0 0
        %2178 = vmatmul.mubr.bf16.gmra.mrb[0].mxu0 %v2094
        %v2179 = vpop.f32.mrb[0].mxu0
        %v2180 = vadd.f32 %v2055, %v2179
        %v2181 = vpop.f32.mrb[0].mxu0
        %v2182 = vpop.f32.mrb[0].mxu0
        %v2183 = vadd.f32 %v2055, %v2182
        %v2184 = vpop.f32.mrb[0].mxu0
        %2185 = vmatprep.mubr.bf16.mxu0 0
        %2186 = vmatmul.mubr.bf16.gmra.mrb[0].mxu0 %v2095
        %v2187 = vpop.f32.mrb[0].mxu0
        %v2188 = vadd.f32 %v2055, %v2187
        %v2189 = vpop.f32.mrb[0].mxu0
        %v2190 = vpop.f32.mrb[0].mxu0
        %v2191 = vadd.f32 %v2055, %v2190
        %v2192 = vpop.f32.mrb[0].mxu0
        %2193 = vmatprep.mubr.bf16.mxu0 0
        %2194 = vmatmul.mubr.bf16.gmra.mrb[0].mxu0 %v2096
        %v2195 = vpop.f32.mrb[0].mxu0
        %v2196 = vadd.f32 %v2055, %v2195
        %v2197 = vpop.f32.mrb[0].mxu0
        %v2198 = vpop.f32.mrb[0].mxu0
        %v2199 = vadd.f32 %v2055, %v2198
        %v2200 = vpop.f32.mrb[0].mxu0
        %2201 = vdwg.mxu0
        %v2202 = vmax.f32 %v2140, 0.0
        %v2203 = vmax.f32 %v2143, 0.0
        %v2204 = vmax.f32 %v2148, 0.0
        %v2205 = vmax.f32 %v2151, 0.0
        %v2206 = vmax.f32 %v2156, 0.0
        %v2207 = vmax.f32 %v2159, 0.0
        %v2208 = vmax.f32 %v2164, 0.0
        %v2209 = vmax.f32 %v2167, 0.0
        %v2210 = vmax.f32 %v2172, 0.0
        %v2211 = vmax.f32 %v2175, 0.0
        %v2212 = vmax.f32 %v2180, 0.0
        %v2213 = vmax.f32 %v2183, 0.0
        %v2214 = vmax.f32 %v2188, 0.0
        %v2215 = vmax.f32 %v2191, 0.0
        %v2216 = vmax.f32 %v2196, 0.0
        %v2217 = vmax.f32 %v2199, 0.0
        %v2218 = vpack.c.bf16 %v2203, %v2202
        %v2219 = vpack.c.bf16 %v2205, %v2204
        %v2220 = vpack.c.bf16 %v2207, %v2206
        %v2221 = vpack.c.bf16 %v2209, %v2208
        %v2222 = vpack.c.bf16 %v2211, %v2210
        %v2223 = vpack.c.bf16 %v2213, %v2212
        %v2224 = vpack.c.bf16 %v2215, %v2214
        %v2225 = vpack.c.bf16 %v2217, %v2216
        %s2226 = scalar_lea.vmem [#allocation7], 64
        %v2227 = vld [vmem:[%s2226] sm:$0xf]
        %v2228 = vld [vmem:[%s2226 + $0x4] sm:$0xf]
        %v2229 = vld [vmem:[%s2226 + $0x8] sm:$0xf]
        %v2230 = vld [vmem:[%s2226 + $0xc] sm:$0xf]
        %v2231 = vld [vmem:[%s2226 + $0x10] sm:$0xf]
        %v2232 = vld [vmem:[%s2226 + $0x14] sm:$0xf]
        %v2233 = vld [vmem:[%s2226 + $0x18] sm:$0xf]
        %v2234 = vld [vmem:[%s2226 + $0x1c] sm:$0xf]
        %v2235 = vld [vmem:[%s2226 + $0x20] sm:$0xf]
        %v2236 = vld [vmem:[%s2226 + $0x24] sm:$0xf]
        %v2237 = vld [vmem:[%s2226 + $0x28] sm:$0xf]
        %v2238 = vld [vmem:[%s2226 + $0x2c] sm:$0xf]
        %v2239 = vld [vmem:[%s2226 + $0x30] sm:$0xf]
        %v2240 = vld [vmem:[%s2226 + $0x34] sm:$0xf]
        %v2241 = vld [vmem:[%s2226 + $0x38] sm:$0xf]
        %v2242 = vld [vmem:[%s2226 + $0x3c] sm:$0xf]
        %v2259 = vunpack.c.l.b16 %v2227
        %v2260 = vunpack.c.l.b16 %v2228
        %v2261 = vunpack.c.l.b16 %v2229
        %v2262 = vunpack.c.l.b16 %v2230
        %v2263 = vunpack.c.l.b16 %v2231
        %v2264 = vunpack.c.l.b16 %v2232
        %v2265 = vunpack.c.l.b16 %v2233
        %v2266 = vunpack.c.l.b16 %v2234
        %v2267 = vunpack.c.l.b16 %v2235
        %v2268 = vunpack.c.l.b16 %v2236
        %v2269 = vunpack.c.l.b16 %v2237
        %v2270 = vunpack.c.l.b16 %v2238
        %v2271 = vunpack.c.l.b16 %v2239
        %v2272 = vunpack.c.l.b16 %v2240
        %v2273 = vunpack.c.l.b16 %v2241
        %v2274 = vunpack.c.l.b16 %v2242
        %v2275 = vpack.c.b16 %v2260, %v2259
        %v2276 = vpack.c.b16 %v2262, %v2261
        %v2277 = vpack.c.b16 %v2264, %v2263
        %v2278 = vpack.c.b16 %v2266, %v2265
        %v2279 = vpack.c.b16 %v2268, %v2267
        %v2280 = vpack.c.b16 %v2270, %v2269
        %v2281 = vpack.c.b16 %v2272, %v2271
        %v2282 = vpack.c.b16 %v2274, %v2273
        %2291 = vmatprep.subr.bf16.mxu0 0
        %2292 = vmatpush1.bf16.msra.mxu0 %v2275
        %2293 = vmatprep.subr.bf16.mxu0 0
        %2294 = vmatpush1.bf16.msra.mxu0 %v2276
        %2295 = vmatprep.subr.bf16.mxu0 0
        %2296 = vmatpush1.bf16.msra.mxu0 %v2277
        %2297 = vmatprep.subr.bf16.mxu0 0
        %2298 = vmatpush1.bf16.msra.mxu0 %v2278
        %2299 = vmatprep.subr.bf16.mxu0 0
        %2300 = vmatpush1.bf16.msra.mxu0 %v2279
        %2301 = vmatprep.subr.bf16.mxu0 0
        %2302 = vmatpush1.bf16.msra.mxu0 %v2280
        %2303 = vmatprep.subr.bf16.mxu0 0
        %2304 = vmatpush1.bf16.msra.mxu0 %v2281
        %2305 = vmatprep.subr.bf16.mxu0 0
        %2306 = vmatpush1.bf16.msra.mxu0 %v2282
        %2307 = vmatprep.subr.bf16.mxu0 0
        %2308 = vmatpush1.bf16.msra.mxu0 0
        %2309 = vmatprep.subr.bf16.mxu0 0
        %2310 = vmatpush1.bf16.msra.mxu0 0
        %2311 = vmatprep.subr.bf16.mxu0 0
        %2312 = vmatpush1.bf16.msra.mxu0 0
        %2313 = vmatprep.subr.bf16.mxu0 0
        %2314 = vmatpush1.bf16.msra.mxu0 0
        %2315 = vmatprep.subr.bf16.mxu0 0
        %2316 = vmatpush1.bf16.msra.mxu0 0
        %2317 = vmatprep.subr.bf16.mxu0 0
        %2318 = vmatpush1.bf16.msra.mxu0 0
        %2319 = vmatprep.subr.bf16.mxu0 0
        %2320 = vmatpush1.bf16.msra.mxu0 0
        %2321 = vmatprep.subr.bf16.mxu0 0
        %2322 = vmatpush1.bf16.msra.mxu0 0
        %2323 = vmatprep.mubr.bf16.mxu0 0
        %2324 = vmatmul.mubr.bf16.gmra.mrb[0].mxu0 %v2218
        %v2325 = vpop.f32.mrb[0].mxu0
        %v2326 = vadd.f32 0.0, %v2325
        %v2327 = vpop.f32.mrb[0].mxu0
        %v2328 = vpop.f32.mrb[0].mxu0
        %v2329 = vadd.f32 0.0, %v2328
        %v2330 = vpop.f32.mrb[0].mxu0
        %2331 = vmatprep.mubr.bf16.mxu0 0
        %2332 = vmatmul.mubr.bf16.gmra.mrb[0].mxu0 %v2219
        %v2333 = vpop.f32.mrb[0].mxu0
        %v2334 = vadd.f32 0.0, %v2333
        %v2335 = vpop.f32.mrb[0].mxu0
        %v2336 = vpop.f32.mrb[0].mxu0
        %v2337 = vadd.f32 0.0, %v2336
        %v2338 = vpop.f32.mrb[0].mxu0
        %2339 = vmatprep.mubr.bf16.mxu0 0
        %2340 = vmatmul.mubr.bf16.gmra.mrb[0].mxu0 %v2220
        %v2341 = vpop.f32.mrb[0].mxu0
        %v2342 = vadd.f32 0.0, %v2341
        %v2343 = vpop.f32.mrb[0].mxu0
        %v2344 = vpop.f32.mrb[0].mxu0
        %v2345 = vadd.f32 0.0, %v2344
        %v2346 = vpop.f32.mrb[0].mxu0
        %2347 = vmatprep.mubr.bf16.mxu0 0
        %2348 = vmatmul.mubr.bf16.gmra.mrb[0].mxu0 %v2221
        %v2349 = vpop.f32.mrb[0].mxu0
        %v2350 = vadd.f32 0.0, %v2349
        %v2351 = vpop.f32.mrb[0].mxu0
        %v2352 = vpop.f32.mrb[0].mxu0
        %v2353 = vadd.f32 0.0, %v2352
        %v2354 = vpop.f32.mrb[0].mxu0
        %2355 = vmatprep.mubr.bf16.mxu0 0
        %2356 = vmatmul.mubr.bf16.gmra.mrb[0].mxu0 %v2222
        %v2357 = vpop.f32.mrb[0].mxu0
        %v2358 = vadd.f32 0.0, %v2357
        %v2359 = vpop.f32.mrb[0].mxu0
        %v2360 = vpop.f32.mrb[0].mxu0
        %v2361 = vadd.f32 0.0, %v2360
        %v2362 = vpop.f32.mrb[0].mxu0
        %2363 = vmatprep.mubr.bf16.mxu0 0
        %2364 = vmatmul.mubr.bf16.gmra.mrb[0].mxu0 %v2223
        %v2365 = vpop.f32.mrb[0].mxu0
        %v2366 = vadd.f32 0.0, %v2365
        %v2367 = vpop.f32.mrb[0].mxu0
        %v2368 = vpop.f32.mrb[0].mxu0
        %v2369 = vadd.f32 0.0, %v2368
        %v2370 = vpop.f32.mrb[0].mxu0
        %2371 = vmatprep.mubr.bf16.mxu0 0
        %2372 = vmatmul.mubr.bf16.gmra.mrb[0].mxu0 %v2224
        %v2373 = vpop.f32.mrb[0].mxu0
        %v2374 = vadd.f32 0.0, %v2373
        %v2375 = vpop.f32.mrb[0].mxu0
        %v2376 = vpop.f32.mrb[0].mxu0
        %v2377 = vadd.f32 0.0, %v2376
        %v2378 = vpop.f32.mrb[0].mxu0
        %2379 = vmatprep.mubr.bf16.mxu0 0
        %2380 = vmatmul.mubr.bf16.gmra.mrb[0].mxu0 %v2225
        %v2381 = vpop.f32.mrb[0].mxu0
        %v2382 = vadd.f32 0.0, %v2381
        %v2383 = vpop.f32.mrb[0].mxu0
        %v2384 = vpop.f32.mrb[0].mxu0
        %v2385 = vadd.f32 0.0, %v2384
        %v2386 = vpop.f32.mrb[0].mxu0
        %2387 = vdwg.mxu0
        %v2388 = vpack.c.bf16 %v2329, %v2326
        %v2389 = vpack.c.bf16 %v2337, %v2334
        %v2390 = vpack.c.bf16 %v2345, %v2342
        %v2391 = vpack.c.bf16 %v2353, %v2350
        %v2392 = vpack.c.bf16 %v2361, %v2358
        %v2393 = vpack.c.bf16 %v2369, %v2366
        %v2394 = vpack.c.bf16 %v2377, %v2374
        %v2395 = vpack.c.bf16 %v2385, %v2382
        %s2396 = scalar_lea.vmem %s5, 1
        %v2397 = vld [vmem:[%s2396] sm:$0x1]
        %v2399 = vlaneseq
        %v2400 = vshrl.u32 %v2399, 7
        %v2401 = vsub.s32 0, %v2400
        %v2402 = vrot.slane %v2397, %v2401
        %2404 = vmatprep.subr.bf16.mxu0 0
        %2405 = vmatpush1.bf16.msra.mxu0 %v2388
        %2406 = vmatprep.subr.bf16.mxu0 0
        %2407 = vmatpush1.bf16.msra.mxu0 %v2389
        %2408 = vmatprep.subr.bf16.mxu0 0
        %2409 = vmatpush1.bf16.msra.mxu0 %v2390
        %2410 = vmatprep.subr.bf16.mxu0 0
        %2411 = vmatpush1.bf16.msra.mxu0 %v2391
        %2412 = vmatprep.subr.bf16.mxu0 0
        %2413 = vmatpush1.bf16.msra.mxu0 %v2392
        %2414 = vmatprep.subr.bf16.mxu0 0
        %2415 = vmatpush1.bf16.msra.mxu0 %v2393
        %2416 = vmatprep.subr.bf16.mxu0 0
        %2417 = vmatpush1.bf16.msra.mxu0 %v2394
        %2418 = vmatprep.subr.bf16.mxu0 0
        %2419 = vmatpush1.bf16.msra.mxu0 %v2395
        %2420 = vmatprep.subr.bf16.mxu0 0
        %2421 = vmatpush1.bf16.msra.mxu0 0
        %2422 = vmatprep.subr.bf16.mxu0 0
        %2423 = vmatpush1.bf16.msra.mxu0 0
        %2424 = vmatprep.subr.bf16.mxu0 0
        %2425 = vmatpush1.bf16.msra.mxu0 0
        %2426 = vmatprep.subr.bf16.mxu0 0
        %2427 = vmatpush1.bf16.msra.mxu0 0
        %2428 = vmatprep.subr.bf16.mxu0 0
        %2429 = vmatpush1.bf16.msra.mxu0 0
        %2430 = vmatprep.subr.bf16.mxu0 0
        %2431 = vmatpush1.bf16.msra.mxu0 0
        %2432 = vmatprep.subr.bf16.mxu0 0
        %2433 = vmatpush1.bf16.msra.mxu0 0
        %2434 = vmatprep.subr.bf16.mxu0 0
        %2435 = vmatpush1.bf16.msra.mxu0 0
        %2436 = vmatprep.mubr.bf16.mxu0 0
        %2437 = vmatmul.mubr.bf16.gmra.mrb[0].mxu0 %v2089
        %v2438 = vpop.f32.mrb[0].mxu0
        %v2439 = vadd.f32 %v2402, %v2438
        %v2440 = vpop.f32.mrb[0].mxu0
        %v2441 = vpop.f32.mrb[0].mxu0
        %v2442 = vadd.f32 %v2402, %v2441
        %v2443 = vpop.f32.mrb[0].mxu0
        %2444 = vmatprep.mubr.bf16.mxu0 0
        %2445 = vmatmul.mubr.bf16.gmra.mrb[0].mxu0 %v2090
        %v2446 = vpop.f32.mrb[0].mxu0
        %v2447 = vadd.f32 %v2402, %v2446
        %v2448 = vpop.f32.mrb[0].mxu0
        %v2449 = vpop.f32.mrb[0].mxu0
        %v2450 = vadd.f32 %v2402, %v2449
        %v2451 = vpop.f32.mrb[0].mxu0
        %2452 = vmatprep.mubr.bf16.mxu0 0
        %2453 = vmatmul.mubr.bf16.gmra.mrb[0].mxu0 %v2091
        %v2454 = vpop.f32.mrb[0].mxu0
        %v2455 = vadd.f32 %v2402, %v2454
        %v2456 = vpop.f32.mrb[0].mxu0
        %v2457 = vpop.f32.mrb[0].mxu0
        %v2458 = vadd.f32 %v2402, %v2457
        %v2459 = vpop.f32.mrb[0].mxu0
        %2460 = vmatprep.mubr.bf16.mxu0 0
        %2461 = vmatmul.mubr.bf16.gmra.mrb[0].mxu0 %v2092
        %v2462 = vpop.f32.mrb[0].mxu0
        %v2463 = vadd.f32 %v2402, %v2462
        %v2464 = vpop.f32.mrb[0].mxu0
        %v2465 = vpop.f32.mrb[0].mxu0
        %v2466 = vadd.f32 %v2402, %v2465
        %v2467 = vpop.f32.mrb[0].mxu0
        %2468 = vmatprep.mubr.bf16.mxu0 0
        %2469 = vmatmul.mubr.bf16.gmra.mrb[0].mxu0 %v2093
        %v2470 = vpop.f32.mrb[0].mxu0
        %v2471 = vadd.f32 %v2402, %v2470
        %v2472 = vpop.f32.mrb[0].mxu0
        %v2473 = vpop.f32.mrb[0].mxu0
        %v2474 = vadd.f32 %v2402, %v2473
        %v2475 = vpop.f32.mrb[0].mxu0
        %2476 = vmatprep.mubr.bf16.mxu0 0
        %2477 = vmatmul.mubr.bf16.gmra.mrb[0].mxu0 %v2094
        %v2478 = vpop.f32.mrb[0].mxu0
        %v2479 = vadd.f32 %v2402, %v2478
        %v2480 = vpop.f32.mrb[0].mxu0
        %v2481 = vpop.f32.mrb[0].mxu0
        %v2482 = vadd.f32 %v2402, %v2481
        %v2483 = vpop.f32.mrb[0].mxu0
        %2484 = vmatprep.mubr.bf16.mxu0 0
        %2485 = vmatmul.mubr.bf16.gmra.mrb[0].mxu0 %v2095
        %v2486 = vpop.f32.mrb[0].mxu0
        %v2487 = vadd.f32 %v2402, %v2486
        %v2488 = vpop.f32.mrb[0].mxu0
        %v2489 = vpop.f32.mrb[0].mxu0
        %v2490 = vadd.f32 %v2402, %v2489
        %v2491 = vpop.f32.mrb[0].mxu0
        %2492 = vmatprep.mubr.bf16.mxu0 0
        %2493 = vmatmul.mubr.bf16.gmra.mrb[0].mxu0 %v2096
        %v2494 = vpop.f32.mrb[0].mxu0
        %v2495 = vadd.f32 %v2402, %v2494
        %v2496 = vpop.f32.mrb[0].mxu0
        %v2497 = vpop.f32.mrb[0].mxu0
        %v2498 = vadd.f32 %v2402, %v2497
        %v2499 = vpop.f32.mrb[0].mxu0
        %2500 = vdwg.mxu0
        %v2501 = vmax.f32 %v2439, 0.0
        %v2502 = vmax.f32 %v2442, 0.0
        %v2503 = vmax.f32 %v2447, 0.0
        %v2504 = vmax.f32 %v2450, 0.0
        %v2505 = vmax.f32 %v2455, 0.0
        %v2506 = vmax.f32 %v2458, 0.0
        %v2507 = vmax.f32 %v2463, 0.0
        %v2508 = vmax.f32 %v2466, 0.0
        %v2509 = vmax.f32 %v2471, 0.0
        %v2510 = vmax.f32 %v2474, 0.0
        %v2511 = vmax.f32 %v2479, 0.0
        %v2512 = vmax.f32 %v2482, 0.0
        %v2513 = vmax.f32 %v2487, 0.0
        %v2514 = vmax.f32 %v2490, 0.0
        %v2515 = vmax.f32 %v2495, 0.0
        %v2516 = vmax.f32 %v2498, 0.0
        %v2517 = vpack.c.bf16 %v2502, %v2501
        %v2518 = vpack.c.bf16 %v2504, %v2503
        %v2519 = vpack.c.bf16 %v2506, %v2505
        %v2520 = vpack.c.bf16 %v2508, %v2507
        %v2521 = vpack.c.bf16 %v2510, %v2509
        %v2522 = vpack.c.bf16 %v2512, %v2511
        %v2523 = vpack.c.bf16 %v2514, %v2513
        %v2524 = vpack.c.bf16 %v2516, %v2515
        %v2525 = vld [vmem:[#allocation8] sm:$0xf]
        %v2526 = vld [vmem:[#allocation8 + $0x4] sm:$0xf]
        %v2527 = vld [vmem:[#allocation8 + $0x8] sm:$0xf]
        %v2528 = vld [vmem:[#allocation8 + $0xc] sm:$0xf]
        %v2529 = vld [vmem:[#allocation8 + $0x10] sm:$0xf]
        %v2530 = vld [vmem:[#allocation8 + $0x14] sm:$0xf]
        %v2531 = vld [vmem:[#allocation8 + $0x18] sm:$0xf]
        %v2532 = vld [vmem:[#allocation8 + $0x1c] sm:$0xf]
        %v2533 = vld [vmem:[#allocation8 + $0x20] sm:$0xf]
        %v2534 = vld [vmem:[#allocation8 + $0x24] sm:$0xf]
        %v2535 = vld [vmem:[#allocation8 + $0x28] sm:$0xf]
        %v2536 = vld [vmem:[#allocation8 + $0x2c] sm:$0xf]
        %v2537 = vld [vmem:[#allocation8 + $0x30] sm:$0xf]
        %v2538 = vld [vmem:[#allocation8 + $0x34] sm:$0xf]
        %v2539 = vld [vmem:[#allocation8 + $0x38] sm:$0xf]
        %v2540 = vld [vmem:[#allocation8 + $0x3c] sm:$0xf]
        %v2541 = vld [vmem:[#allocation8 + $0x40] sm:$0xf]
        %v2542 = vld [vmem:[#allocation8 + $0x44] sm:$0xf]
        %v2543 = vld [vmem:[#allocation8 + $0x48] sm:$0xf]
        %v2544 = vld [vmem:[#allocation8 + $0x4c] sm:$0xf]
        %v2545 = vld [vmem:[#allocation8 + $0x50] sm:$0xf]
        %v2546 = vld [vmem:[#allocation8 + $0x54] sm:$0xf]
        %v2547 = vld [vmem:[#allocation8 + $0x58] sm:$0xf]
        %v2548 = vld [vmem:[#allocation8 + $0x5c] sm:$0xf]
        %v2549 = vld [vmem:[#allocation8 + $0x60] sm:$0xf]
        %v2550 = vld [vmem:[#allocation8 + $0x64] sm:$0xf]
        %v2551 = vld [vmem:[#allocation8 + $0x68] sm:$0xf]
        %v2552 = vld [vmem:[#allocation8 + $0x6c] sm:$0xf]
        %v2553 = vld [vmem:[#allocation8 + $0x70] sm:$0xf]
        %v2554 = vld [vmem:[#allocation8 + $0x74] sm:$0xf]
        %v2555 = vld [vmem:[#allocation8 + $0x78] sm:$0xf]
        %v2556 = vld [vmem:[#allocation8 + $0x7c] sm:$0xf]
        %v2557 = vld [vmem:[%s7] sm:$0x1]
        %v2559 = vlaneseq
        %v2560 = vshrl.u32 %v2559, 7
        %v2561 = vsub.s32 0, %v2560
        %v2562 = vrot.slane %v2557, %v2561
        %v2596 = vunpack.c.l.b16 %v2525
        %v2597 = vunpack.c.l.b16 %v2526
        %v2598 = vunpack.c.l.b16 %v2527
        %v2599 = vunpack.c.l.b16 %v2528
        %v2600 = vunpack.c.l.b16 %v2529
        %v2601 = vunpack.c.l.b16 %v2530
        %v2602 = vunpack.c.l.b16 %v2531
        %v2603 = vunpack.c.l.b16 %v2532
        %v2604 = vunpack.c.l.b16 %v2533
        %v2605 = vunpack.c.l.b16 %v2534
        %v2606 = vunpack.c.l.b16 %v2535
        %v2607 = vunpack.c.l.b16 %v2536
        %v2608 = vunpack.c.l.b16 %v2537
        %v2609 = vunpack.c.l.b16 %v2538
        %v2610 = vunpack.c.l.b16 %v2539
        %v2611 = vunpack.c.l.b16 %v2540
        %v2612 = vunpack.c.l.b16 %v2541
        %v2613 = vunpack.c.l.b16 %v2542
        %v2614 = vunpack.c.l.b16 %v2543
        %v2615 = vunpack.c.l.b16 %v2544
        %v2616 = vunpack.c.l.b16 %v2545
        %v2617 = vunpack.c.l.b16 %v2546
        %v2618 = vunpack.c.l.b16 %v2547
        %v2619 = vunpack.c.l.b16 %v2548
        %v2620 = vunpack.c.l.b16 %v2549
        %v2621 = vunpack.c.l.b16 %v2550
        %v2622 = vunpack.c.l.b16 %v2551
        %v2623 = vunpack.c.l.b16 %v2552
        %v2624 = vunpack.c.l.b16 %v2553
        %v2625 = vunpack.c.l.b16 %v2554
        %v2626 = vunpack.c.l.b16 %v2555
        %v2627 = vunpack.c.l.b16 %v2556
        %v2628 = vpack.c.b16 %v2597, %v2596
        %v2629 = vpack.c.b16 %v2599, %v2598
        %v2630 = vpack.c.b16 %v2601, %v2600
        %v2631 = vpack.c.b16 %v2603, %v2602
        %v2632 = vpack.c.b16 %v2605, %v2604
        %v2633 = vpack.c.b16 %v2607, %v2606
        %v2634 = vpack.c.b16 %v2609, %v2608
        %v2635 = vpack.c.b16 %v2611, %v2610
        %v2636 = vpack.c.b16 %v2613, %v2612
        %v2637 = vpack.c.b16 %v2615, %v2614
        %v2638 = vpack.c.b16 %v2617, %v2616
        %v2639 = vpack.c.b16 %v2619, %v2618
        %v2640 = vpack.c.b16 %v2621, %v2620
        %v2641 = vpack.c.b16 %v2623, %v2622
        %v2642 = vpack.c.b16 %v2625, %v2624
        %v2643 = vpack.c.b16 %v2627, %v2626
        %2660 = vmatprep.subr.bf16.mxu0 0
        %2661 = vmatpush1.bf16.msra.mxu0 %v2628
        %2662 = vmatprep.subr.bf16.mxu0 0
        %2663 = vmatpush1.bf16.msra.mxu0 %v2629
        %2664 = vmatprep.subr.bf16.mxu0 0
        %2665 = vmatpush1.bf16.msra.mxu0 %v2630
        %2666 = vmatprep.subr.bf16.mxu0 0
        %2667 = vmatpush1.bf16.msra.mxu0 %v2631
        %2668 = vmatprep.subr.bf16.mxu0 0
        %2669 = vmatpush1.bf16.msra.mxu0 %v2632
        %2670 = vmatprep.subr.bf16.mxu0 0
        %2671 = vmatpush1.bf16.msra.mxu0 %v2633
        %2672 = vmatprep.subr.bf16.mxu0 0
        %2673 = vmatpush1.bf16.msra.mxu0 %v2634
        %2674 = vmatprep.subr.bf16.mxu0 0
        %2675 = vmatpush1.bf16.msra.mxu0 %v2635
        %2676 = vmatprep.subr.bf16.mxu0 0
        %2677 = vmatpush1.bf16.msra.mxu0 %v2636
        %2678 = vmatprep.subr.bf16.mxu0 0
        %2679 = vmatpush1.bf16.msra.mxu0 %v2637
        %2680 = vmatprep.subr.bf16.mxu0 0
        %2681 = vmatpush1.bf16.msra.mxu0 %v2638
        %2682 = vmatprep.subr.bf16.mxu0 0
        %2683 = vmatpush1.bf16.msra.mxu0 %v2639
        %2684 = vmatprep.subr.bf16.mxu0 0
        %2685 = vmatpush1.bf16.msra.mxu0 %v2640
        %2686 = vmatprep.subr.bf16.mxu0 0
        %2687 = vmatpush1.bf16.msra.mxu0 %v2641
        %2688 = vmatprep.subr.bf16.mxu0 0
        %2689 = vmatpush1.bf16.msra.mxu0 %v2642
        %2690 = vmatprep.subr.bf16.mxu0 0
        %2691 = vmatpush1.bf16.msra.mxu0 %v2643
        %2692 = vmatprep.mubr.bf16.mxu0 %v2517
        %2693 = vmatmul.mubr.bf16.gmra.mrb[0].mxu0 %v1873
        %v2694 = vpop.f32.mrb[0].mxu0
        %v2695 = vadd.f32 %v2562, %v2694
        %v2696 = vpop.f32.mrb[0].mxu0
        %v2697 = vpop.f32.mrb[0].mxu0
        %v2698 = vadd.f32 %v2562, %v2697
        %v2699 = vpop.f32.mrb[0].mxu0
        %2700 = vmatprep.mubr.bf16.mxu0 %v2518
        %2701 = vmatmul.mubr.bf16.gmra.mrb[0].mxu0 %v1874
        %v2702 = vpop.f32.mrb[0].mxu0
        %v2703 = vadd.f32 %v2562, %v2702
        %v2704 = vpop.f32.mrb[0].mxu0
        %v2705 = vpop.f32.mrb[0].mxu0
        %v2706 = vadd.f32 %v2562, %v2705
        %v2707 = vpop.f32.mrb[0].mxu0
        %2708 = vmatprep.mubr.bf16.mxu0 %v2519
        %2709 = vmatmul.mubr.bf16.gmra.mrb[0].mxu0 %v1875
        %v2710 = vpop.f32.mrb[0].mxu0
        %v2711 = vadd.f32 %v2562, %v2710
        %v2712 = vpop.f32.mrb[0].mxu0
        %v2713 = vpop.f32.mrb[0].mxu0
        %v2714 = vadd.f32 %v2562, %v2713
        %v2715 = vpop.f32.mrb[0].mxu0
        %2716 = vmatprep.mubr.bf16.mxu0 %v2520
        %2717 = vmatmul.mubr.bf16.gmra.mrb[0].mxu0 %v1876
        %v2718 = vpop.f32.mrb[0].mxu0
        %v2719 = vadd.f32 %v2562, %v2718
        %v2720 = vpop.f32.mrb[0].mxu0
        %v2721 = vpop.f32.mrb[0].mxu0
        %v2722 = vadd.f32 %v2562, %v2721
        %v2723 = vpop.f32.mrb[0].mxu0
        %2724 = vmatprep.mubr.bf16.mxu0 %v2521
        %2725 = vmatmul.mubr.bf16.gmra.mrb[0].mxu0 %v1877
        %v2726 = vpop.f32.mrb[0].mxu0
        %v2727 = vadd.f32 %v2562, %v2726
        %v2728 = vpop.f32.mrb[0].mxu0
        %v2729 = vpop.f32.mrb[0].mxu0
        %v2730 = vadd.f32 %v2562, %v2729
        %v2731 = vpop.f32.mrb[0].mxu0
        %2732 = vmatprep.mubr.bf16.mxu0 %v2522
        %2733 = vmatmul.mubr.bf16.gmra.mrb[0].mxu0 %v1878
        %v2734 = vpop.f32.mrb[0].mxu0
        %v2735 = vadd.f32 %v2562, %v2734
        %v2736 = vpop.f32.mrb[0].mxu0
        %v2737 = vpop.f32.mrb[0].mxu0
        %v2738 = vadd.f32 %v2562, %v2737
        %v2739 = vpop.f32.mrb[0].mxu0
        %2740 = vmatprep.mubr.bf16.mxu0 %v2523
        %2741 = vmatmul.mubr.bf16.gmra.mrb[0].mxu0 %v1879
        %v2742 = vpop.f32.mrb[0].mxu0
        %v2743 = vadd.f32 %v2562, %v2742
        %v2744 = vpop.f32.mrb[0].mxu0
        %v2745 = vpop.f32.mrb[0].mxu0
        %v2746 = vadd.f32 %v2562, %v2745
        %v2747 = vpop.f32.mrb[0].mxu0
        %2748 = vmatprep.mubr.bf16.mxu0 %v2524
        %2749 = vmatmul.mubr.bf16.gmra.mrb[0].mxu0 %v1880
        %v2750 = vpop.f32.mrb[0].mxu0
        %v2751 = vadd.f32 %v2562, %v2750
        %v2752 = vpop.f32.mrb[0].mxu0
        %v2753 = vpop.f32.mrb[0].mxu0
        %v2754 = vadd.f32 %v2562, %v2753
        %v2755 = vpop.f32.mrb[0].mxu0
        %2756 = vdwg.mxu0
        %v2757 = vpack.c.bf16 %v2698, %v2695
        %v2758 = vpack.c.bf16 %v2706, %v2703
        %v2759 = vpack.c.bf16 %v2714, %v2711
        %v2760 = vpack.c.bf16 %v2722, %v2719
        %v2761 = vpack.c.bf16 %v2730, %v2727
        %v2762 = vpack.c.bf16 %v2738, %v2735
        %v2763 = vpack.c.bf16 %v2746, %v2743
        %v2764 = vpack.c.bf16 %v2754, %v2751
        %v2773 = vunpack.c.l.b16 %v2757
        %v2774 = vunpack.c.h.b16 %v2757
        %v2775 = vunpack.c.l.b16 %v2758
        %v2776 = vunpack.c.h.b16 %v2758
        %v2777 = vunpack.c.l.b16 %v2759
        %v2778 = vunpack.c.h.b16 %v2759
        %v2779 = vunpack.c.l.b16 %v2760
        %v2780 = vunpack.c.h.b16 %v2760
        %v2781 = vunpack.c.l.b16 %v2761
        %v2782 = vunpack.c.h.b16 %v2761
        %v2783 = vunpack.c.l.b16 %v2762
        %v2784 = vunpack.c.h.b16 %v2762
        %v2785 = vunpack.c.l.b16 %v2763
        %v2786 = vunpack.c.h.b16 %v2763
        %v2787 = vunpack.c.l.b16 %v2764
        %v2788 = vunpack.c.h.b16 %v2764
        %v2789 = vpack.c.b16 %v2773, %v2773
        %v2790 = vpack.c.b16 %v2774, %v2774
        %v2791 = vpack.c.b16 %v2775, %v2775
        %v2792 = vpack.c.b16 %v2776, %v2776
        %v2793 = vpack.c.b16 %v2777, %v2777
        %v2794 = vpack.c.b16 %v2778, %v2778
        %v2795 = vpack.c.b16 %v2779, %v2779
        %v2796 = vpack.c.b16 %v2780, %v2780
        %v2797 = vpack.c.b16 %v2781, %v2781
        %v2798 = vpack.c.b16 %v2782, %v2782
        %v2799 = vpack.c.b16 %v2783, %v2783
        %v2800 = vpack.c.b16 %v2784, %v2784
        %v2801 = vpack.c.b16 %v2785, %v2785
        %v2802 = vpack.c.b16 %v2786, %v2786
        %v2803 = vpack.c.b16 %v2787, %v2787
        %v2804 = vpack.c.b16 %v2788, %v2788
        %2821 = vst [vmem:[%s537] sm:$0xf] %v2789
        %2822 = vst [vmem:[%s537 + $0x4] sm:$0xf] %v2790
        %2823 = vst [vmem:[%s537 + $0x8] sm:$0xf] %v2791
        %2824 = vst [vmem:[%s537 + $0xc] sm:$0xf] %v2792
        %2825 = vst [vmem:[%s537 + $0x10] sm:$0xf] %v2793
        %2826 = vst [vmem:[%s537 + $0x14] sm:$0xf] %v2794
        %2827 = vst [vmem:[%s537 + $0x18] sm:$0xf] %v2795
        %2828 = vst [vmem:[%s537 + $0x1c] sm:$0xf] %v2796
        %2829 = vst [vmem:[%s537 + $0x20] sm:$0xf] %v2797
        %2830 = vst [vmem:[%s537 + $0x24] sm:$0xf] %v2798
        %2831 = vst [vmem:[%s537 + $0x28] sm:$0xf] %v2799
        %2832 = vst [vmem:[%s537 + $0x2c] sm:$0xf] %v2800
        %2833 = vst [vmem:[%s537 + $0x30] sm:$0xf] %v2801
        %2834 = vst [vmem:[%s537 + $0x34] sm:$0xf] %v2802
        %2835 = vst [vmem:[%s537 + $0x38] sm:$0xf] %v2803
        %2836 = vst [vmem:[%s537 + $0x3c] sm:$0xf] %v2804
        %v2837 = vld [vmem:[%s556] sm:$0xff]
        %v2838 = vld [vmem:[%s556 + $0x8] sm:$0xff]
        %v2839 = vld [vmem:[%s556 + $0x10] sm:$0xff]
        %v2840 = vld [vmem:[%s556 + $0x18] sm:$0xff]
        %v2841 = vld [vmem:[%s556 + $0x20] sm:$0xff]
        %v2842 = vld [vmem:[%s556 + $0x28] sm:$0xff]
        %v2843 = vld [vmem:[%s556 + $0x30] sm:$0xff]
        %v2844 = vld [vmem:[%s556 + $0x38] sm:$0xff]
        %v2845 = vld [vmem:[%s556 + $0x40] sm:$0xff]
        %v2846 = vld [vmem:[%s556 + $0x48] sm:$0xff]
        %v2847 = vld [vmem:[%s556 + $0x50] sm:$0xff]
        %v2848 = vld [vmem:[%s556 + $0x58] sm:$0xff]
        %v2849 = vld [vmem:[%s556 + $0x60] sm:$0xff]
        %v2850 = vld [vmem:[%s556 + $0x68] sm:$0xff]
        %v2851 = vld [vmem:[%s556 + $0x70] sm:$0xff]
        %v2852 = vld [vmem:[%s556 + $0x78] sm:$0xff]
        %v2853 = vld [vmem:[%s562] sm:$0xff]
        %v2854 = vld [vmem:[%s562 + $0x8] sm:$0xff]
        %v2855 = vld [vmem:[%s562 + $0x10] sm:$0xff]
        %v2856 = vld [vmem:[%s562 + $0x18] sm:$0xff]
        %v2857 = vld [vmem:[%s562 + $0x20] sm:$0xff]
        %v2858 = vld [vmem:[%s562 + $0x28] sm:$0xff]
        %v2859 = vld [vmem:[%s562 + $0x30] sm:$0xff]
        %v2860 = vld [vmem:[%s562 + $0x38] sm:$0xff]
        %v2861 = vld [vmem:[%s562 + $0x40] sm:$0xff]
        %v2862 = vld [vmem:[%s562 + $0x48] sm:$0xff]
        %v2863 = vld [vmem:[%s562 + $0x50] sm:$0xff]
        %v2864 = vld [vmem:[%s562 + $0x58] sm:$0xff]
        %v2865 = vld [vmem:[%s562 + $0x60] sm:$0xff]
        %v2866 = vld [vmem:[%s562 + $0x68] sm:$0xff]
        %v2867 = vld [vmem:[%s562 + $0x70] sm:$0xff]
        %v2868 = vld [vmem:[%s562 + $0x78] sm:$0xff]
        %vm2869 = vcmp.eq.s32.totalorder %v2853, 1
        %vm2870 = vcmp.eq.s32.totalorder %v2854, 1
        %vm2871 = vcmp.eq.s32.totalorder %v2855, 1
        %vm2872 = vcmp.eq.s32.totalorder %v2856, 1
        %vm2873 = vcmp.eq.s32.totalorder %v2857, 1
        %vm2874 = vcmp.eq.s32.totalorder %v2858, 1
        %vm2875 = vcmp.eq.s32.totalorder %v2859, 1
        %vm2876 = vcmp.eq.s32.totalorder %v2860, 1
        %vm2877 = vcmp.eq.s32.totalorder %v2861, 1
        %vm2878 = vcmp.eq.s32.totalorder %v2862, 1
        %vm2879 = vcmp.eq.s32.totalorder %v2863, 1
        %vm2880 = vcmp.eq.s32.totalorder %v2864, 1
        %vm2881 = vcmp.eq.s32.totalorder %v2865, 1
        %vm2882 = vcmp.eq.s32.totalorder %v2866, 1
        %vm2883 = vcmp.eq.s32.totalorder %v2867, 1
        %vm2884 = vcmp.eq.s32.totalorder %v2868, 1
        %v2885 = vsel %vm2869, %v2837, 4294967196
        %v2886 = vsel %vm2870, %v2838, 4294967196
        %v2887 = vsel %vm2871, %v2839, 4294967196
        %v2888 = vsel %vm2872, %v2840, 4294967196
        %v2889 = vsel %vm2873, %v2841, 4294967196
        %v2890 = vsel %vm2874, %v2842, 4294967196
        %v2891 = vsel %vm2875, %v2843, 4294967196
        %v2892 = vsel %vm2876, %v2844, 4294967196
        %v2893 = vsel %vm2877, %v2845, 4294967196
        %v2894 = vsel %vm2878, %v2846, 4294967196
        %v2895 = vsel %vm2879, %v2847, 4294967196
        %v2896 = vsel %vm2880, %v2848, 4294967196
        %v2897 = vsel %vm2881, %v2849, 4294967196
        %v2898 = vsel %vm2882, %v2850, 4294967196
        %v2899 = vsel %vm2883, %v2851, 4294967196
        %v2900 = vsel %vm2884, %v2852, 4294967196
        %vm2901 = vcmp.ne.s32.totalorder %v2885, 4294967196
        %vm2902 = vcmp.ne.s32.totalorder %v2886, 4294967196
        %vm2903 = vcmp.ne.s32.totalorder %v2887, 4294967196
        %vm2904 = vcmp.ne.s32.totalorder %v2888, 4294967196
        %vm2905 = vcmp.ne.s32.totalorder %v2889, 4294967196
        %vm2906 = vcmp.ne.s32.totalorder %v2890, 4294967196
        %vm2907 = vcmp.ne.s32.totalorder %v2891, 4294967196
        %vm2908 = vcmp.ne.s32.totalorder %v2892, 4294967196
        %vm2909 = vcmp.ne.s32.totalorder %v2893, 4294967196
        %vm2910 = vcmp.ne.s32.totalorder %v2894, 4294967196
        %vm2911 = vcmp.ne.s32.totalorder %v2895, 4294967196
        %vm2912 = vcmp.ne.s32.totalorder %v2896, 4294967196
        %vm2913 = vcmp.ne.s32.totalorder %v2897, 4294967196
        %vm2914 = vcmp.ne.s32.totalorder %v2898, 4294967196
        %vm2915 = vcmp.ne.s32.totalorder %v2899, 4294967196
        %vm2916 = vcmp.ne.s32.totalorder %v2900, 4294967196
        %v2917 = vsel %vm2901, 1, 0
        %v2918 = vsel %vm2902, 1, 0
        %v2919 = vsel %vm2903, 1, 0
        %v2920 = vsel %vm2904, 1, 0
        %v2921 = vsel %vm2905, 1, 0
        %v2922 = vsel %vm2906, 1, 0
        %v2923 = vsel %vm2907, 1, 0
        %v2924 = vsel %vm2908, 1, 0
        %v2925 = vsel %vm2909, 1, 0
        %v2926 = vsel %vm2910, 1, 0
        %v2927 = vsel %vm2911, 1, 0
        %v2928 = vsel %vm2912, 1, 0
        %v2929 = vsel %vm2913, 1, 0
        %v2930 = vsel %vm2914, 1, 0
        %v2931 = vsel %vm2915, 1, 0
        %v2932 = vsel %vm2916, 1, 0
        %v2933 = vcvt.s32.f32 %v2917
        %v2934 = vcvt.s32.f32 %v2918
        %v2935 = vcvt.s32.f32 %v2919
        %v2936 = vcvt.s32.f32 %v2920
        %v2937 = vcvt.s32.f32 %v2921
        %v2938 = vcvt.s32.f32 %v2922
        %v2939 = vcvt.s32.f32 %v2923
        %v2940 = vcvt.s32.f32 %v2924
        %v2941 = vcvt.s32.f32 %v2925
        %v2942 = vcvt.s32.f32 %v2926
        %v2943 = vcvt.s32.f32 %v2927
        %v2944 = vcvt.s32.f32 %v2928
        %v2945 = vcvt.s32.f32 %v2929
        %v2946 = vcvt.s32.f32 %v2930
        %v2947 = vcvt.s32.f32 %v2931
        %v2948 = vcvt.s32.f32 %v2932
        %v2949 = vlaneseq
        %v2950 = vand.u32 %v2949, 127
        %2951 = vset.pattern.permute.xlu0 0
        %2952 = vperm.xlu0 %2951, %v2885
        %v2953 = vpop.permute.xlu0 %2952
        %2954 = vset.pattern.permute.xlu0 0
        %2955 = vperm.xlu0 %2954, %v2886
        %v2956 = vpop.permute.xlu0 %2955
        %2957 = vset.pattern.permute.xlu0 0
        %2958 = vperm.xlu0 %2957, %v2887
        %v2959 = vpop.permute.xlu0 %2958
        %2960 = vset.pattern.permute.xlu0 0
        %2961 = vperm.xlu0 %2960, %v2888
        %v2962 = vpop.permute.xlu0 %2961
        %2963 = vset.pattern.permute.xlu0 0
        %2964 = vperm.xlu0 %2963, %v2889
        %v2965 = vpop.permute.xlu0 %2964
        %2966 = vset.pattern.permute.xlu0 0
        %2967 = vperm.xlu0 %2966, %v2890
        %v2968 = vpop.permute.xlu0 %2967
        %2969 = vset.pattern.permute.xlu0 0
        %2970 = vperm.xlu0 %2969, %v2891
        %v2971 = vpop.permute.xlu0 %2970
        %2972 = vset.pattern.permute.xlu0 0
        %2973 = vperm.xlu0 %2972, %v2892
        %v2974 = vpop.permute.xlu0 %2973
        %2975 = vset.pattern.permute.xlu0 0
        %2976 = vperm.xlu0 %2975, %v2893
        %v2977 = vpop.permute.xlu0 %2976
        %2978 = vset.pattern.permute.xlu0 0
        %2979 = vperm.xlu0 %2978, %v2894
        %v2980 = vpop.permute.xlu0 %2979
        %2981 = vset.pattern.permute.xlu0 0
        %2982 = vperm.xlu0 %2981, %v2895
        %v2983 = vpop.permute.xlu0 %2982
        %2984 = vset.pattern.permute.xlu0 0
        %2985 = vperm.xlu0 %2984, %v2896
        %v2986 = vpop.permute.xlu0 %2985
        %2987 = vset.pattern.permute.xlu0 0
        %2988 = vperm.xlu0 %2987, %v2897
        %v2989 = vpop.permute.xlu0 %2988
        %2990 = vset.pattern.permute.xlu0 0
        %2991 = vperm.xlu0 %2990, %v2898
        %v2992 = vpop.permute.xlu0 %2991
        %2993 = vset.pattern.permute.xlu0 0
        %2994 = vperm.xlu0 %2993, %v2899
        %v2995 = vpop.permute.xlu0 %2994
        %2996 = vset.pattern.permute.xlu0 0
        %2997 = vperm.xlu0 %2996, %v2900
        %v2998 = vpop.permute.xlu0 %2997
        %vm2999 = vcmp.eq.s32.totalorder %v2950, %v2953
        %vm3000 = vcmp.eq.s32.totalorder %v2950, %v2956
        %vm3001 = vcmp.eq.s32.totalorder %v2950, %v2959
        %vm3002 = vcmp.eq.s32.totalorder %v2950, %v2962
        %vm3003 = vcmp.eq.s32.totalorder %v2950, %v2965
        %vm3004 = vcmp.eq.s32.totalorder %v2950, %v2968
        %vm3005 = vcmp.eq.s32.totalorder %v2950, %v2971
        %vm3006 = vcmp.eq.s32.totalorder %v2950, %v2974
        %vm3007 = vcmp.eq.s32.totalorder %v2950, %v2977
        %vm3008 = vcmp.eq.s32.totalorder %v2950, %v2980
        %vm3009 = vcmp.eq.s32.totalorder %v2950, %v2983
        %vm3010 = vcmp.eq.s32.totalorder %v2950, %v2986
        %vm3011 = vcmp.eq.s32.totalorder %v2950, %v2989
        %vm3012 = vcmp.eq.s32.totalorder %v2950, %v2992
        %vm3013 = vcmp.eq.s32.totalorder %v2950, %v2995
        %vm3014 = vcmp.eq.s32.totalorder %v2950, %v2998
        %v3015 = vsel %vm2999, 1, 0
        %v3016 = vsel %vm3000, 1, 0
        %v3017 = vsel %vm3001, 1, 0
        %v3018 = vsel %vm3002, 1, 0
        %v3019 = vsel %vm3003, 1, 0
        %v3020 = vsel %vm3004, 1, 0
        %v3021 = vsel %vm3005, 1, 0
        %v3022 = vsel %vm3006, 1, 0
        %v3023 = vsel %vm3007, 1, 0
        %v3024 = vsel %vm3008, 1, 0
        %v3025 = vsel %vm3009, 1, 0
        %v3026 = vsel %vm3010, 1, 0
        %v3027 = vsel %vm3011, 1, 0
        %v3028 = vsel %vm3012, 1, 0
        %v3029 = vsel %vm3013, 1, 0
        %v3030 = vsel %vm3014, 1, 0
        %v3031 = vcvt.s32.f32 %v3015
        %v3032 = vcvt.s32.f32 %v3016
        %v3033 = vcvt.s32.f32 %v3017
        %v3034 = vcvt.s32.f32 %v3018
        %v3035 = vcvt.s32.f32 %v3019
        %v3036 = vcvt.s32.f32 %v3020
        %v3037 = vcvt.s32.f32 %v3021
        %v3038 = vcvt.s32.f32 %v3022
        %v3039 = vcvt.s32.f32 %v3023
        %v3040 = vcvt.s32.f32 %v3024
        %v3041 = vcvt.s32.f32 %v3025
        %v3042 = vcvt.s32.f32 %v3026
        %v3043 = vcvt.s32.f32 %v3027
        %v3044 = vcvt.s32.f32 %v3028
        %v3045 = vcvt.s32.f32 %v3029
        %v3046 = vcvt.s32.f32 %v3030
        %3047 = vmax.xlane.f32.xlu0 %v2695
        %v3048 = vpop.xlane.xlu0 %3047
        %3049 = vmax.xlane.f32.xlu0 %v2698
        %v3050 = vpop.xlane.xlu0 %3049
        %3051 = vmax.xlane.f32.xlu0 %v2703
        %v3052 = vpop.xlane.xlu0 %3051
        %3053 = vmax.xlane.f32.xlu0 %v2706
        %v3054 = vpop.xlane.xlu0 %3053
        %3055 = vmax.xlane.f32.xlu0 %v2711
        %v3056 = vpop.xlane.xlu0 %3055
        %3057 = vmax.xlane.f32.xlu0 %v2714
        %v3058 = vpop.xlane.xlu0 %3057
        %3059 = vmax.xlane.f32.xlu0 %v2719
        %v3060 = vpop.xlane.xlu0 %3059
        %3061 = vmax.xlane.f32.xlu0 %v2722
        %v3062 = vpop.xlane.xlu0 %3061
        %3063 = vmax.xlane.f32.xlu0 %v2727
        %v3064 = vpop.xlane.xlu0 %3063
        %3065 = vmax.xlane.f32.xlu0 %v2730
        %v3066 = vpop.xlane.xlu0 %3065
        %3067 = vmax.xlane.f32.xlu0 %v2735
        %v3068 = vpop.xlane.xlu0 %3067
        %3069 = vmax.xlane.f32.xlu0 %v2738
        %v3070 = vpop.xlane.xlu0 %3069
        %3071 = vmax.xlane.f32.xlu0 %v2743
        %v3072 = vpop.xlane.xlu0 %3071
        %3073 = vmax.xlane.f32.xlu0 %v2746
        %v3074 = vpop.xlane.xlu0 %3073
        %3075 = vmax.xlane.f32.xlu0 %v2751
        %v3076 = vpop.xlane.xlu0 %3075
        %3077 = vmax.xlane.f32.xlu0 %v2754
        %v3078 = vpop.xlane.xlu0 %3077
        %v3079 = vsub.f32 %v2695, %v3048
        %v3080 = vsub.f32 %v2698, %v3050
        %v3081 = vsub.f32 %v2703, %v3052
        %v3082 = vsub.f32 %v2706, %v3054
        %v3083 = vsub.f32 %v2711, %v3056
        %v3084 = vsub.f32 %v2714, %v3058
        %v3085 = vsub.f32 %v2719, %v3060
        %v3086 = vsub.f32 %v2722, %v3062
        %v3087 = vsub.f32 %v2727, %v3064
        %v3088 = vsub.f32 %v2730, %v3066
        %v3089 = vsub.f32 %v2735, %v3068
        %v3090 = vsub.f32 %v2738, %v3070
        %v3091 = vsub.f32 %v2743, %v3072
        %v3092 = vsub.f32 %v2746, %v3074
        %v3093 = vsub.f32 %v2751, %v3076
        %v3094 = vsub.f32 %v2754, %v3078
        %v3095 = vmul.f32 %v3079, 1.442695
        %v3096 = vpow.pop %v3095
        %v3097 = vmul.f32 %v3080, 1.442695
        %v3098 = vpow.pop %v3097
        %v3099 = vmul.f32 %v3081, 1.442695
        %v3100 = vpow.pop %v3099
        %v3101 = vmul.f32 %v3082, 1.442695
        %v3102 = vpow.pop %v3101
        %v3103 = vmul.f32 %v3083, 1.442695
        %v3104 = vpow.pop %v3103
        %v3105 = vmul.f32 %v3084, 1.442695
        %v3106 = vpow.pop %v3105
        %v3107 = vmul.f32 %v3085, 1.442695
        %v3108 = vpow.pop %v3107
        %v3109 = vmul.f32 %v3086, 1.442695
        %v3110 = vpow.pop %v3109
        %v3111 = vmul.f32 %v3087, 1.442695
        %v3112 = vpow.pop %v3111
        %v3113 = vmul.f32 %v3088, 1.442695
        %v3114 = vpow.pop %v3113
        %v3115 = vmul.f32 %v3089, 1.442695
        %v3116 = vpow.pop %v3115
        %v3117 = vmul.f32 %v3090, 1.442695
        %v3118 = vpow.pop %v3117
        %v3119 = vmul.f32 %v3091, 1.442695
        %v3120 = vpow.pop %v3119
        %v3121 = vmul.f32 %v3092, 1.442695
        %v3122 = vpow.pop %v3121
        %v3123 = vmul.f32 %v3093, 1.442695
        %v3124 = vpow.pop %v3123
        %v3125 = vmul.f32 %v3094, 1.442695
        %v3126 = vpow.pop %v3125
        %3127 = vadd.xlane.f32.xlu0 %v3096
        %v3128 = vpop.xlane.xlu0 %3127
        %3129 = vadd.xlane.f32.xlu0 %v3098
        %v3130 = vpop.xlane.xlu0 %3129
        %3131 = vadd.xlane.f32.xlu0 %v3100
        %v3132 = vpop.xlane.xlu0 %3131
        %3133 = vadd.xlane.f32.xlu0 %v3102
        %v3134 = vpop.xlane.xlu0 %3133
        %3135 = vadd.xlane.f32.xlu0 %v3104
        %v3136 = vpop.xlane.xlu0 %3135
        %3137 = vadd.xlane.f32.xlu0 %v3106
        %v3138 = vpop.xlane.xlu0 %3137
        %3139 = vadd.xlane.f32.xlu0 %v3108
        %v3140 = vpop.xlane.xlu0 %3139
        %3141 = vadd.xlane.f32.xlu0 %v3110
        %v3142 = vpop.xlane.xlu0 %3141
        %3143 = vadd.xlane.f32.xlu0 %v3112
        %v3144 = vpop.xlane.xlu0 %3143
        %3145 = vadd.xlane.f32.xlu0 %v3114
        %v3146 = vpop.xlane.xlu0 %3145
        %3147 = vadd.xlane.f32.xlu0 %v3116
        %v3148 = vpop.xlane.xlu0 %3147
        %3149 = vadd.xlane.f32.xlu0 %v3118
        %v3150 = vpop.xlane.xlu0 %3149
        %3151 = vadd.xlane.f32.xlu0 %v3120
        %v3152 = vpop.xlane.xlu0 %3151
        %3153 = vadd.xlane.f32.xlu0 %v3122
        %v3154 = vpop.xlane.xlu0 %3153
        %3155 = vadd.xlane.f32.xlu0 %v3124
        %v3156 = vpop.xlane.xlu0 %3155
        %3157 = vadd.xlane.f32.xlu0 %v3126
        %v3158 = vpop.xlane.xlu0 %3157
        %v3159 = vlog2.pop %v3128
        %v3160 = vmul.f32 %v3159, 0.6931472
        %v3161 = vlog2.pop %v3130
        %v3162 = vmul.f32 %v3161, 0.6931472
        %v3163 = vlog2.pop %v3132
        %v3164 = vmul.f32 %v3163, 0.6931472
        %v3165 = vlog2.pop %v3134
        %v3166 = vmul.f32 %v3165, 0.6931472
        %v3167 = vlog2.pop %v3136
        %v3168 = vmul.f32 %v3167, 0.6931472
        %v3169 = vlog2.pop %v3138
        %v3170 = vmul.f32 %v3169, 0.6931472
        %v3171 = vlog2.pop %v3140
        %v3172 = vmul.f32 %v3171, 0.6931472
        %v3173 = vlog2.pop %v3142
        %v3174 = vmul.f32 %v3173, 0.6931472
        %v3175 = vlog2.pop %v3144
        %v3176 = vmul.f32 %v3175, 0.6931472
        %v3177 = vlog2.pop %v3146
        %v3178 = vmul.f32 %v3177, 0.6931472
        %v3179 = vlog2.pop %v3148
        %v3180 = vmul.f32 %v3179, 0.6931472
        %v3181 = vlog2.pop %v3150
        %v3182 = vmul.f32 %v3181, 0.6931472
        %v3183 = vlog2.pop %v3152
        %v3184 = vmul.f32 %v3183, 0.6931472
        %v3185 = vlog2.pop %v3154
        %v3186 = vmul.f32 %v3185, 0.6931472
        %v3187 = vlog2.pop %v3156
        %v3188 = vmul.f32 %v3187, 0.6931472
        %v3189 = vlog2.pop %v3158
        %v3190 = vmul.f32 %v3189, 0.6931472
        %v3191 = vadd.f32 %v3048, %v3160
        %v3192 = vadd.f32 %v3050, %v3162
        %v3193 = vadd.f32 %v3052, %v3164
        %v3194 = vadd.f32 %v3054, %v3166
        %v3195 = vadd.f32 %v3056, %v3168
        %v3196 = vadd.f32 %v3058, %v3170
        %v3197 = vadd.f32 %v3060, %v3172
        %v3198 = vadd.f32 %v3062, %v3174
        %v3199 = vadd.f32 %v3064, %v3176
        %v3200 = vadd.f32 %v3066, %v3178
        %v3201 = vadd.f32 %v3068, %v3180
        %v3202 = vadd.f32 %v3070, %v3182
        %v3203 = vadd.f32 %v3072, %v3184
        %v3204 = vadd.f32 %v3074, %v3186
        %v3205 = vadd.f32 %v3076, %v3188
        %v3206 = vadd.f32 %v3078, %v3190
        %v3207 = vmul.f32 %v3031, %v2695
        %v3208 = vmul.f32 %v3032, %v2698
        %v3209 = vmul.f32 %v3033, %v2703
        %v3210 = vmul.f32 %v3034, %v2706
        %v3211 = vmul.f32 %v3035, %v2711
        %v3212 = vmul.f32 %v3036, %v2714
        %v3213 = vmul.f32 %v3037, %v2719
        %v3214 = vmul.f32 %v3038, %v2722
        %v3215 = vmul.f32 %v3039, %v2727
        %v3216 = vmul.f32 %v3040, %v2730
        %v3217 = vmul.f32 %v3041, %v2735
        %v3218 = vmul.f32 %v3042, %v2738
        %v3219 = vmul.f32 %v3043, %v2743
        %v3220 = vmul.f32 %v3044, %v2746
        %v3221 = vmul.f32 %v3045, %v2751
        %v3222 = vmul.f32 %v3046, %v2754
        %3223 = vadd.xlane.f32.xlu0 %v3207
        %v3224 = vpop.xlane.xlu0 %3223
        %3225 = vadd.xlane.f32.xlu0 %v3208
        %v3226 = vpop.xlane.xlu0 %3225
        %3227 = vadd.xlane.f32.xlu0 %v3209
        %v3228 = vpop.xlane.xlu0 %3227
        %3229 = vadd.xlane.f32.xlu0 %v3210
        %v3230 = vpop.xlane.xlu0 %3229
        %3231 = vadd.xlane.f32.xlu0 %v3211
        %v3232 = vpop.xlane.xlu0 %3231
        %3233 = vadd.xlane.f32.xlu0 %v3212
        %v3234 = vpop.xlane.xlu0 %3233
        %3235 = vadd.xlane.f32.xlu0 %v3213
        %v3236 = vpop.xlane.xlu0 %3235
        %3237 = vadd.xlane.f32.xlu0 %v3214
        %v3238 = vpop.xlane.xlu0 %3237
        %3239 = vadd.xlane.f32.xlu0 %v3215
        %v3240 = vpop.xlane.xlu0 %3239
        %3241 = vadd.xlane.f32.xlu0 %v3216
        %v3242 = vpop.xlane.xlu0 %3241
        %3243 = vadd.xlane.f32.xlu0 %v3217
        %v3244 = vpop.xlane.xlu0 %3243
        %3245 = vadd.xlane.f32.xlu0 %v3218
        %v3246 = vpop.xlane.xlu0 %3245
        %3247 = vadd.xlane.f32.xlu0 %v3219
        %v3248 = vpop.xlane.xlu0 %3247
        %3249 = vadd.xlane.f32.xlu0 %v3220
        %v3250 = vpop.xlane.xlu0 %3249
        %3251 = vadd.xlane.f32.xlu0 %v3221
        %v3252 = vpop.xlane.xlu0 %3251
        %3253 = vadd.xlane.f32.xlu0 %v3222
        %v3254 = vpop.xlane.xlu0 %3253
        %v3255 = vsub.f32 %v3191, %v3224
        %v3256 = vsub.f32 %v3192, %v3226
        %v3257 = vsub.f32 %v3193, %v3228
        %v3258 = vsub.f32 %v3194, %v3230
        %v3259 = vsub.f32 %v3195, %v3232
        %v3260 = vsub.f32 %v3196, %v3234
        %v3261 = vsub.f32 %v3197, %v3236
        %v3262 = vsub.f32 %v3198, %v3238
        %v3263 = vsub.f32 %v3199, %v3240
        %v3264 = vsub.f32 %v3200, %v3242
        %v3265 = vsub.f32 %v3201, %v3244
        %v3266 = vsub.f32 %v3202, %v3246
        %v3267 = vsub.f32 %v3203, %v3248
        %v3268 = vsub.f32 %v3204, %v3250
        %v3269 = vsub.f32 %v3205, %v3252
        %v3270 = vsub.f32 %v3206, %v3254
        %v3271 = vmul.f32 %v3255, %v2933
        %v3272 = vmul.f32 %v3256, %v2934
        %v3273 = vmul.f32 %v3257, %v2935
        %v3274 = vmul.f32 %v3258, %v2936
        %v3275 = vmul.f32 %v3259, %v2937
        %v3276 = vmul.f32 %v3260, %v2938
        %v3277 = vmul.f32 %v3261, %v2939
        %v3278 = vmul.f32 %v3262, %v2940
        %v3279 = vmul.f32 %v3263, %v2941
        %v3280 = vmul.f32 %v3264, %v2942
        %v3281 = vmul.f32 %v3265, %v2943
        %v3282 = vmul.f32 %v3266, %v2944
        %v3283 = vmul.f32 %v3267, %v2945
        %v3284 = vmul.f32 %v3268, %v2946
        %v3285 = vmul.f32 %v3269, %v2947
        %v3286 = vmul.f32 %v3270, %v2948
        %vm3287 = vcmask 7168
        %v3288 = vsel %vm3287, %v3271, 0.0
        %v3289 = vsel %vm3287, %v3272, 0.0
        %v3290 = vadd.f32 %v3288, %v3289
        %v3291 = vsel %vm3287, %v3273, 0.0
        %v3292 = vadd.f32 %v3290, %v3291
        %v3293 = vsel %vm3287, %v3274, 0.0
        %v3294 = vadd.f32 %v3292, %v3293
        %v3295 = vsel %vm3287, %v3275, 0.0
        %v3296 = vadd.f32 %v3294, %v3295
        %v3297 = vsel %vm3287, %v3276, 0.0
        %v3298 = vadd.f32 %v3296, %v3297
        %v3299 = vsel %vm3287, %v3277, 0.0
        %v3300 = vadd.f32 %v3298, %v3299
        %v3301 = vsel %vm3287, %v3278, 0.0
        %v3302 = vadd.f32 %v3300, %v3301
        %v3303 = vsel %vm3287, %v3279, 0.0
        %v3304 = vadd.f32 %v3302, %v3303
        %v3305 = vsel %vm3287, %v3280, 0.0
        %v3306 = vadd.f32 %v3304, %v3305
        %v3307 = vsel %vm3287, %v3281, 0.0
        %v3308 = vadd.f32 %v3306, %v3307
        %v3309 = vsel %vm3287, %v3282, 0.0
        %v3310 = vadd.f32 %v3308, %v3309
        %v3311 = vsel %vm3287, %v3283, 0.0
        %v3312 = vadd.f32 %v3310, %v3311
        %v3313 = vsel %vm3287, %v3284, 0.0
        %v3314 = vadd.f32 %v3312, %v3313
        %v3315 = vsel %vm3287, %v3285, 0.0
        %v3316 = vadd.f32 %v3314, %v3315
        %v3317 = vsel %vm3287, %v3286, 0.0
        %v3318 = vadd.f32 %v3316, %v3317
        %3319 = vadd.xlane.f32.xlu0 %v3318
        %v3320 = vpop.xlane.xlu0 %3319
        %v3321 = vrot.slane %v3320, 4
        %v3322 = vadd.f32 %v3320, %v3321
        %v3323 = vrot.slane %v3322, 2
        %v3324 = vadd.f32 %v3322, %v3323
        %v3325 = vrot.slane %v3324, 1
        %v3326 = vadd.f32 %v3324, %v3325
        %s3327 = vtos %v3326
        %v3328 = vstv %s3327
        %v3329 = vadd.f32 %v3328, 0.0
        %3330 = vst [vmem:[%s543] sm:$0x1] %v3329
        %v3331 = vsel %vm3287, %v2933, 0.0
        %v3332 = vsel %vm3287, %v2934, 0.0
        %v3333 = vadd.f32 %v3331, %v3332
        %v3334 = vsel %vm3287, %v2935, 0.0
        %v3335 = vadd.f32 %v3333, %v3334
        %v3336 = vsel %vm3287, %v2936, 0.0
        %v3337 = vadd.f32 %v3335, %v3336
        %v3338 = vsel %vm3287, %v2937, 0.0
        %v3339 = vadd.f32 %v3337, %v3338
        %v3340 = vsel %vm3287, %v2938, 0.0
        %v3341 = vadd.f32 %v3339, %v3340
        %v3342 = vsel %vm3287, %v2939, 0.0
        %v3343 = vadd.f32 %v3341, %v3342
        %v3344 = vsel %vm3287, %v2940, 0.0
        %v3345 = vadd.f32 %v3343, %v3344
        %v3346 = vsel %vm3287, %v2941, 0.0
        %v3347 = vadd.f32 %v3345, %v3346
        %v3348 = vsel %vm3287, %v2942, 0.0
        %v3349 = vadd.f32 %v3347, %v3348
        %v3350 = vsel %vm3287, %v2943, 0.0
        %v3351 = vadd.f32 %v3349, %v3350
        %v3352 = vsel %vm3287, %v2944, 0.0
        %v3353 = vadd.f32 %v3351, %v3352
        %v3354 = vsel %vm3287, %v2945, 0.0
        %v3355 = vadd.f32 %v3353, %v3354
        %v3356 = vsel %vm3287, %v2946, 0.0
        %v3357 = vadd.f32 %v3355, %v3356
        %v3358 = vsel %vm3287, %v2947, 0.0
        %v3359 = vadd.f32 %v3357, %v3358
        %v3360 = vsel %vm3287, %v2948, 0.0
        %v3361 = vadd.f32 %v3359, %v3360
        %3362 = vadd.xlane.f32.xlu0 %v3361
        %v3363 = vpop.xlane.xlu0 %3362
        %v3364 = vrot.slane %v3363, 4
        %v3365 = vadd.f32 %v3363, %v3364
        %v3366 = vrot.slane %v3365, 2
        %v3367 = vadd.f32 %v3365, %v3366
        %v3368 = vrot.slane %v3367, 1
        %v3369 = vadd.f32 %v3367, %v3368
        %s3370 = vtos %v3369
        %v3371 = vstv %s3370
        %v3372 = vadd.f32 %v3371, 0.0
        %3373 = vst [vmem:[%s549] sm:$0x1] %v3372
        %s3374 = sand.u32 %s275, 1
        %s3375 = scalar_lea.sflag [#allocation4], %s3374
        %s3376 = sand.u32 %s275, 1
        %s3377 = smul.addr %s3376, 64
        %s3378 = scalar_lea.vmem [#allocation10], %s3377
        %s3379 = sand.u32 %s37, 1
        %s3380 = scalar_lea.sflag [#allocation12], %s3379
        %s3381 = sand.u32 %s301, 1
        %s3382 = scalar_lea.vmem [#allocation11], %s3381
        %s3383 = sand.u32 %s37, 1
        %s3384 = scalar_lea.sflag [#allocation12], %s3383
        %s3385 = sand.u32 %s327, 1
        %s3386 = scalar_lea.vmem [#allocation13], %s3385
        // Predicated region
        $region77: #{tpu_custom_call.1} parent=59 // pred_check
          %p3387 = pneg %p285
        $region78: #{tpu_custom_call.1} parent=59 // pred_check_branch
          %3389 = sbr.rel (%p3387) target = $region80
        $region79: #{tpu_custom_call.1} parent=59 // pred_region
          %s3390 = smul.u32 16, %s37
          %s3392 = ssub.s32 1024, 1024
          %3393 = vsyncadd %s3375, %s3392
          %s3394 = smul.addr %s3390, 64
          %s3395 = scalar_lea.hbm %s10, %s3394
          %s3396 = sshll.u32 %s3378, 4
          %s3397 = int_to_ptr.vmem [resolvable:$true] %s3396
          %3402 = dma.vmem_to_hbm [thread:$0]  %s3397, 1024, %s3395, %s3375, 64, 64, 4
        $region80: #{tpu_custom_call.1} parent=59 // pred_fallthru
          _
        // Predicated region
        $region81: #{tpu_custom_call.1} parent=59 // pred_check
          %p3403 = pneg %p311
        $region82: #{tpu_custom_call.1} parent=59 // pred_check_branch
          %3405 = sbr.rel (%p3403) target = $region84
        $region83: #{tpu_custom_call.1} parent=59 // pred_region
          %s3407 = ssub.s32 16, 16
          %3408 = vsyncadd %s3380, %s3407
          %s3409 = smul.addr %s37, 16
          %s3410 = scalar_lea.hbm %s11, %s3409
          %s3412 = sshll.u32 %s3382, 4
          %s3413 = int_to_ptr.vmem [resolvable:$true] %s3412
          %3415 = dma.vmem_to_hbm [thread:$0]  %s3413, 16, %s3410, %s3380
        $region84: #{tpu_custom_call.1} parent=59 // pred_fallthru
          _
        // Predicated region
        $region85: #{tpu_custom_call.1} parent=59 // pred_check
          %p3416 = pneg %p337
        $region86: #{tpu_custom_call.1} parent=59 // pred_check_branch
          %3418 = sbr.rel (%p3416) target = $region88
        $region87: #{tpu_custom_call.1} parent=59 // pred_region
          %s3420 = ssub.s32 16, 16
          %3421 = vsyncadd %s3384, %s3420
          %s3422 = smul.addr %s37, 16
          %s3423 = scalar_lea.hbm %s12, %s3422
          %s3425 = sshll.u32 %s3386, 4
          %s3426 = int_to_ptr.vmem [resolvable:$true] %s3425
          %3428 = dma.vmem_to_hbm [thread:$0]  %s3426, 16, %s3423, %s3384
        $region88: #{tpu_custom_call.1} parent=59 // pred_fallthru
          _
      $region60: #{tpu_custom_call.1} parent=5 // pred_fallthru
        _
      %p3429 = scmp.le.s32.totalorder 2, %s32
      // Predicated region
      $region89: #{tpu_custom_call.1} parent=5 // pred_check
        %p3430 = pneg %p3429
      $region90: #{tpu_custom_call.1} parent=5 // pred_check_branch
        %3432 = sbr.rel (%p3430) target = $region92
      $region91: #{tpu_custom_call.1} parent=5 // pred_region
        %s3433 = ssub.s32 %s32, 2
        // Predicated region
        $region93: #{tpu_custom_call.1} parent=91 // pred_check
          %p3434 = pneg %p291
        $region94: #{tpu_custom_call.1} parent=91 // pred_check_branch
          %3436 = sbr.rel (%p3434) target = $region96
        $region95: #{tpu_custom_call.1} parent=91 // pred_region
          %s3437 = sand.u32 %s276, 1
          %s3438 = scalar_lea.sflag [#allocation4], %s3437
          %s3439 = sand.u32 %s276, 1
          %s3440 = smul.addr %s3439, 64
          %s3441 = scalar_lea.vmem [#allocation10], %s3440
          %3442 = dma.done %s3438, 1024
        $region96: #{tpu_custom_call.1} parent=91 // pred_fallthru
          _
        // Predicated region
        $region97: #{tpu_custom_call.1} parent=91 // pred_check
          %p3443 = pneg %p317
        $region98: #{tpu_custom_call.1} parent=91 // pred_check_branch
          %3445 = sbr.rel (%p3443) target = $region100
        $region99: #{tpu_custom_call.1} parent=91 // pred_region
          %s3446 = sand.u32 %s38, 1
          %s3447 = scalar_lea.sflag [#allocation12], %s3446
          %s3448 = sand.u32 %s302, 1
          %s3449 = scalar_lea.vmem [#allocation11], %s3448
          %3450 = dma.done %s3447, 16
        $region100: #{tpu_custom_call.1} parent=91 // pred_fallthru
          _
        // Predicated region
        $region101: #{tpu_custom_call.1} parent=91 // pred_check
          %p3451 = pneg %p343
        $region102: #{tpu_custom_call.1} parent=91 // pred_check_branch
          %3453 = sbr.rel (%p3451) target = $region104
        $region103: #{tpu_custom_call.1} parent=91 // pred_region
          %s3454 = sand.u32 %s38, 1
          %s3455 = scalar_lea.sflag [#allocation12], %s3454
          %s3456 = sand.u32 %s328, 1
          %s3457 = scalar_lea.vmem [#allocation13], %s3456
          %3458 = dma.done %s3455, 16
        $region104: #{tpu_custom_call.1} parent=91 // pred_fallthru
          _
      $region92: #{tpu_custom_call.1} parent=5 // pred_fallthru
        _
    $region6: #{tpu_custom_call.1} parent=1 // loop_footer
      %s36 = sadd.s32 1, %s32
    $region7: #{tpu_custom_call.1} parent=1 // loop_footer_branch
      %31 = sbr.rel target = $region3
    $region8: #{tpu_custom_call.1} parent=1 // loop_exit
      _
    %3459 = vsyncpa [#allocation3], 1
    %s3460 = scalar_lea.sflag [#allocation3], 1
    %3461 = vsyncpa %s3460, 1
    %3462 = vsyncpa [#allocation6], 1
    %s3463 = scalar_lea.sflag [#allocation6], 1
    %3464 = vsyncpa %s3463, 1
    %3465 = vsyncpa [#allocation9], 1
    %3466 = vsyncpa [#allocation4], 1
    %s3467 = scalar_lea.sflag [#allocation4], 1
    %3468 = vsyncpa %s3467, 1
    %3469 = vsyncpa [#allocation12], 1
    %s3470 = scalar_lea.sflag [#allocation12], 1
    %3471 = vsyncpa %s3470, 1

</llo_original>
